<compile_context>
chip_gen: v7x
topology: tpu7x:2x2x1
jax: 0.10.0
libtpu: 0.0.40
codegen_flags: <defaults>
</compile_context>

<pallas_src>
import math
import functools

import jax
import jax.numpy as jnp
from jax.experimental import pallas as pl
from jax.experimental.pallas import tpu as pltpu


# ---------------------------------------------------------------------------
# Kernels
# ---------------------------------------------------------------------------

def _input_proj_kernel(x_ref, w_ref, b_ref, gx_ref):
    """One (row_tile, Ip) x (Ip, col_tile) MXU tile: gx = x @ W_ih^T + bias."""
    acc = jnp.dot(x_ref[...], w_ref[...], preferred_element_type=jnp.float32)
    gx_ref[...] = (acc + b_ref[...].astype(jnp.float32)).astype(gx_ref.dtype)


def _gru_recurrent_kernel(gx_ref, h0_ref, whh_ref, bn_ref, out_ref, h_scr):
    """Recurrent part over one time-chunk.

    gx_ref : (Tc, Bb, 3*Hp) bf16/f32 -- precomputed x @ W_ih^T + bias for this chunk
    h0_ref : (Bb, Hp)                -- initial hidden state for this batch block
    whh_ref: (Hp, 3*Hp)              -- fused recurrent weights (z|r|n chunks at k*Hp)
    bn_ref : (1, Hp) f32             -- n-chunk of the shared bias
    out_ref: (Tc, Bb, Hp) f32        -- h_t for every step in the chunk (lane-dense slab)
    h_scr  : (Bb, Hp) f32 VMEM       -- hidden state carried across time-chunks
    """
    # New batch block -> (re)load its initial hidden state.
    @pl.when(pl.program_id(1) == 0)
    def _():
        h_scr[...] = h0_ref[...].astype(jnp.float32)

    tc = gx_ref.shape[0]
    bb, hp = h_scr.shape
    # Hoisted out of the step loop: JAX does not CSE broadcast_in_dim, so doing this
    # inside step() would re-materialize the (Bb, Hp) broadcast every time step.
    bn_b = jnp.broadcast_to(bn_ref[...].astype(jnp.float32), (bb, hp))

    def step(t, h):
        gx = gx_ref[t].astype(jnp.float32)              # (Bb, 3Hp), already includes bias
        # Single fused recurrent matmul for all three gates (1 MXU push per step).
        gh = jnp.dot(h.astype(whh_ref.dtype), whh_ref[...],
                     preferred_element_type=jnp.float32)          # (Bb, 3Hp) f32
        z = jax.nn.sigmoid(gx[:, :hp] + gh[:, :hp])
        r = jax.nn.sigmoid(gx[:, hp:2 * hp] + gh[:, hp:2 * hp])
        hh_n = gh[:, 2 * hp:]
        # Reference semantics: n_pre (= gx_n + hh_n, gx_n already holds b_n) plus
        # r * (hh_n + b_n)  -> the (hh_n + b_n) term is double counted ON PURPOSE.
        n = jnp.tanh(gx[:, 2 * hp:] + hh_n + r * (hh_n + bn_b))
        h_next = (1.0 - z) * n + z * h
        out_ref[t] = h_next.astype(out_ref.dtype)        # per-step lane-dense (Bb,Hp) store
        return h_next

    # Moderate fixed unroll: keeps the loop visible to the LLO scheduler so the next
    # step's gx load / current out store overlap the serial MXU+EUP chain, without the
    # code bloat of a full unroll at large Tc.
    h_final = jax.lax.fori_loop(0, tc, step, h_scr[...], unroll=min(8, tc))
    h_scr[...] = h_final                                 # single hidden writeback per chunk


# ---------------------------------------------------------------------------
# Helpers
# ---------------------------------------------------------------------------

def _round_up(v, m):
    return (v + m - 1) // m * m


def _largest_divisor(n, cap, quantum=1):
    """Largest multiple of `quantum` that divides n and is <= max(cap, quantum)."""
    best = quantum
    d = quantum
    limit = min(max(cap, quantum), n)
    while d <= limit:
        if n % d == 0:
            best = d
        d += quantum
    return best


def _vmem_limit_bytes():
    """Generation-aware scoped-VMEM limit: ~3/4 of physical per-core VMEM with headroom
    (~48 MiB on v7x's 64 MiB, ~96 MiB on v5e/v6e's 128 MiB)."""
    cap = None
    try:
        cap = getattr(pltpu.get_tpu_info(), "vmem_capacity_bytes", None)
    except Exception:
        cap = None
    if not cap or cap <= 0:
        cap = 128 * 1024 * 1024
    return int(min(cap - 16 * 1024 * 1024, cap * 3 // 4))


def _single_buffered_spec(shape, index_map):
    """Constant-index operands never re-DMA; request buffer_count=1 so they do not
    waste a second (dead) VMEM buffer. Falls back to a plain spec if unsupported."""
    try:
        return pl.BlockSpec(shape, index_map, pipeline_mode=pl.Buffered(1))
    except Exception:
        return pl.BlockSpec(shape, index_map)


def _pad_gate_mat(w, rows_pad, h, hp):
    """(rows, 3H) -> (rows_pad, 3*Hp); each H-chunk (z|r|n) placed at column k*Hp."""
    out = jnp.zeros((rows_pad, 3 * hp), w.dtype)
    for k in range(3):
        out = out.at[:w.shape[0], k * hp:k * hp + h].set(w[:, k * h:(k + 1) * h])
    return out


# ---------------------------------------------------------------------------
# Wrapper
# ---------------------------------------------------------------------------

def gru_forward(x, h0, params, *, time_chunk=None, batch_block=None,
                compute_dtype=jnp.bfloat16):
    """x: (T, B, I); h0: (B, H); params = (W_ih^T (I,3H), W_hh^T (H,3H), bias (3H,)).

    Returns (output (T, B, H) f32, hn (1, B, H)).
    compute_dtype: dtype fed to the MXU for x / weights / the gates_x intermediate
    (default bf16; accumulation and all gate math stay f32).
    time_chunk: None -> solve Tc from the VMEM budget (capped at 128).
    batch_block: None (recommended on v5e/v6e, nb=1); on v7x pick it so nb == 2.
    """
    wih, whh, bias = params
    T, B, I = x.shape
    H = h0.shape[-1]

    f32 = jnp.float32
    cdt = jnp.dtype(compute_dtype if compute_dtype is not None else f32)
    gx_dtype = cdt if cdt.itemsize < 4 else jnp.dtype(f32)
    sub_q = 16 if cdt.itemsize < 4 else 8          # bf16 packs two rows per sublane

    # --- hardware-native padding -------------------------------------------------
    Hp = _round_up(H, 128)
    Ip = _round_up(I, 128)
    Bp = _round_up(B, sub_q)
    if batch_block is None:
        Bb = Bp                                    # nb=1: best for single-TC v5e/v6e
    else:
        Bb = _round_up(min(batch_block, Bp), sub_q)
        Bp = _round_up(Bp, Bb)
    nb = Bp // Bb

    # --- VMEM-aware time-chunk ----------------------------------------------------
    vmem_limit = _vmem_limit_bytes()
    budget = int(vmem_limit * 0.9)                 # slack inside the scoped limit
    gx_bytes = jnp.dtype(gx_dtype).itemsize
    w_bytes = cdt.itemsize
    # Resident blocks of the recurrent kernel:
    #   double-buffered: gx (Tc,Bb,3Hp) + f32 out (Tc,Bb,Hp) + h0 (Bb,Hp)
    #   weights counted at 2x to stay safe even if single-buffering is unavailable
    per_step = 2 * Bb * Hp * (3 * gx_bytes + 4)
    fixed = 2 * Hp * 3 * Hp * w_bytes + 3 * Bb * Hp * 4 + 4 * 3 * Hp * 4
    tc_fit = max(1, (budget - fixed) // per_step)
    tc_cap = time_chunk if time_chunk is not None else 128
    Tc = int(max(1, min(T, tc_cap, tc_fit)))
    Tp = _round_up(T, Tc)
    nt = Tp // Tc

    # --- padded / casted operands (cast BEFORE padding: no extra f32 HBM pass) ----
    x_p = jnp.zeros((Tp, Bp, Ip), cdt).at[:T, :B, :I].set(x.astype(cdt))
    h0_p = jnp.zeros((Bp, Hp), f32).at[:B, :H].set(h0.astype(f32))
    wih_p = _pad_gate_mat(wih.astype(cdt), Ip, H, Hp)            # (Ip, 3Hp)
    whh_p = _pad_gate_mat(whh.astype(cdt), Hp, H, Hp)            # (Hp, 3Hp)
    bias_p = _pad_gate_mat(bias.astype(f32)[None, :], 1, H, Hp)  # (1, 3Hp) f32
    bn_p = bias_p[:, 2 * Hp:]                                    # (1, Hp)   f32

    # --- 1) hoisted input projection: row- and column-tiled matmul ----------------
    rows = Tp * Bp
    x2d = x_p.reshape(rows, Ip)
    col_tile = _largest_divisor(3 * Hp, 1024, 128)      # 128..1024-lane output tiles
    n_col = (3 * Hp) // col_tile
    t_rows = _largest_divisor(Tp, max(1, 512 // Bp), 1)  # ~<=512 rows per tile
    row_tile = t_rows * Bp
    n_row = rows // row_tile

    gx2d = pl.pallas_call(
        _input_proj_kernel,
        out_shape=jax.ShapeDtypeStruct((rows, 3 * Hp), gx_dtype),
        grid=(n_row, n_col),                              # col innermost: x block reused
        in_specs=[
            pl.BlockSpec((row_tile, Ip), lambda r, c: (r, 0)),
            pl.BlockSpec((Ip, col_tile), lambda r, c: (0, c)),
            pl.BlockSpec((1, col_tile), lambda r, c: (0, c)),
        ],
        out_specs=pl.BlockSpec((row_tile, col_tile), lambda r, c: (r, c)),
        compiler_params=pltpu.CompilerParams(
            dimension_semantics=("parallel", "parallel"),
            vmem_limit_bytes=vmem_limit),
    )(x2d, wih_p, bias_p)
    gates_x = gx2d.reshape(Tp, Bp, 3 * Hp)

    # --- 2) recurrent kernel: (batch-block "parallel") x (time-chunk "arbitrary") --
    # NOTE: the h_scr carry relies on time being the LAST (sequential, "arbitrary")
    # grid axis, reset at program_id(1)==0 per batch block. Do not reorder.
    out_p = pl.pallas_call(
        _gru_recurrent_kernel,
        out_shape=jax.ShapeDtypeStruct((Tp, Bp, Hp), f32),
        grid=(nb, nt),
        in_specs=[
            pl.BlockSpec((Tc, Bb, 3 * Hp), lambda b, t: (t, b, 0)),       # gates_x chunk
            pl.BlockSpec((Bb, Hp), lambda b, t: (b, 0)),                  # h0 block
            _single_buffered_spec((Hp, 3 * Hp), lambda b, t: (0, 0)),     # fused W_hh^T
            _single_buffered_spec((1, Hp), lambda b, t: (0, 0)),          # b_n
        ],
        out_specs=pl.BlockSpec((Tc, Bb, Hp), lambda b, t: (t, b, 0)),
        scratch_shapes=[pltpu.VMEM((Bb, Hp), jnp.float32)],               # hidden carry
        compiler_params=pltpu.CompilerParams(
            dimension_semantics=("parallel", "arbitrary"),
            vmem_limit_bytes=vmem_limit),
    )(gates_x, h0_p, whh_p, bn_p)

    out = out_p[:T, :B, :H]
    # Reference module never writes the updated hidden back into h_t -> hn is the
    # *initial* hidden state (intentional quirk, reproduced faithfully).
    hn = h0[None, :, :]
    return out, hn


# ---------------------------------------------------------------------------
# Pure-JAX reference (same semantics, incl. quirks) and parameter init
# ---------------------------------------------------------------------------

def gru_reference(x, h0, params):
    wih, whh, bias = params
    H = h0.shape[-1]
    b_n = bias[2 * H:]
    h = h0
    outs = []
    for t in range(x.shape[0]):
        gx = x[t] @ wih + bias
        gh = h @ whh
        z = jax.nn.sigmoid(gx[:, :H] + gh[:, :H])
        r = jax.nn.sigmoid(gx[:, H:2 * H] + gh[:, H:2 * H])
        hh_n = gh[:, 2 * H:]
        n = jnp.tanh(gx[:, 2 * H:] + hh_n + r * (hh_n + b_n))
        h = (1.0 - z) * n + z * h
        outs.append(h)
    return jnp.stack(outs, axis=0), h0[None]


def init_params(key, input_size, hidden_size):
    """uniform(-stdv, stdv), stdv = 1/sqrt(hidden_size); pre-transposed & gate-fused."""
    stdv = 1.0 / math.sqrt(hidden_size)
    k_ih, k_hh, k_b = jax.random.split(key, 3)
    W_ih = jax.random.uniform(k_ih, (3 * hidden_size, input_size),
                              minval=-stdv, maxval=stdv, dtype=jnp.float32)
    W_hh = jax.random.uniform(k_hh, (3 * hidden_size, hidden_size),
                              minval=-stdv, maxval=stdv, dtype=jnp.float32)
    bias = jax.random.uniform(k_b, (3 * hidden_size,),
                              minval=-stdv, maxval=stdv, dtype=jnp.float32)
    return (W_ih.T, W_hh.T, bias)    # (I, 3H), (H, 3H), (3H,)


# ---------------------------------------------------------------------------
# Demo / checks
# ---------------------------------------------------------------------------

if __name__ == "__main__":
    key = jax.random.PRNGKey(0)

    seq_len, batch, input_size, hidden_size = 8, 2, 16, 32
    k_x, k_p, k_x2, k_h2 = jax.random.split(key, 4)
    x = jax.random.normal(k_x, (seq_len, batch, input_size), dtype=jnp.float32)
    h0 = jnp.zeros((batch, hidden_size), dtype=jnp.float32)
    params = init_params(k_p, input_size, hidden_size)
    out_ref, hn_ref = gru_reference(x, h0, params)

    # --- config 1: default path (bf16 compute/gates_x, VMEM-auto time chunk) ------
    fwd = jax.jit(gru_forward)
    out, hn = jax.block_until_ready(fwd(x, h0, params))
    assert out.shape == (seq_len, batch, hidden_size)
    assert hn.shape == (1, batch, hidden_size)
    err = float(jnp.max(jnp.abs(out - out_ref)))
    assert err < 5e-2, f"bf16 max err {err}"
    assert jnp.array_equal(hn, hn_ref)

    # --- config 2: f32 compute, explicit time chunking + batch blocks -------------
    T2, B2 = 6, 16
    x2 = jax.random.normal(k_x2, (T2, B2, input_size), dtype=jnp.float32)
    h02 = 0.1 * jax.random.normal(k_h2, (B2, hidden_size), dtype=jnp.float32)
    fwd2 = jax.jit(functools.partial(gru_forward, time_chunk=4, batch_block=8,
                                     compute_dtype=jnp.float32))
    out2, hn2 = jax.block_until_ready(fwd2(x2, h02, params))
    out2_ref, hn2_ref = gru_reference(x2, h02, params)
    err2 = float(jnp.max(jnp.abs(out2 - out2_ref)))
    assert jnp.allclose(out2, out2_ref, atol=1e-4, rtol=1e-4), f"f32 max err {err2}"
    assert jnp.array_equal(hn2, hn2_ref)

    # --- config 3: bf16 default dtype + multi time-chunk, larger batch ------------
    fwd3 = jax.jit(functools.partial(gru_forward, time_chunk=4))
    out3, _ = jax.block_until_ready(fwd3(x2, h02, params))
    err3 = float(jnp.max(jnp.abs(out3 - out2_ref)))
    assert err3 < 5e-2, f"bf16 chunked max err {err3}"

    print("KERNEL_OK")
</pallas_src>

<mosaic_0001>
module attributes {stable_mosaic.version = 11 : i64} {
  func.func @_input_proj_kernel(%arg0: i32, %arg1: i32, %arg2: memref<128x128xbf16, #tpu.memory_space<vmem>>, %arg3: memref<128x384xbf16, #tpu.memory_space<vmem>>, %arg4: memref<1x384xf32, #tpu.memory_space<vmem>>, %arg5: memref<128x384xbf16, #tpu.memory_space<vmem>>) attributes {dimension_semantics = [#tpu.dimension_semantics<parallel>, #tpu.dimension_semantics<parallel>], iteration_bounds = array<i64: 1, 1>, scalar_prefetch = 0 : i64, scratch_operands = 0 : i64, tpu.core_type = #tpu.core_type<tc>, window_params = [{transform_indices = @transform_0, window_bounds = array<i64: 128, 128>}, {transform_indices = @transform_1, window_bounds = array<i64: 128, 384>}, {transform_indices = @transform_2, window_bounds = array<i64: 1, 384>}, {transform_indices = @transform_3, window_bounds = array<i64: 128, 384>}]} {
    %c0 = arith.constant 0 : index
    %c0_0 = arith.constant 0 : index
    %0 = vector.load %arg2[%c0, %c0_0] : memref<128x128xbf16, #tpu.memory_space<vmem>>, vector<128x128xbf16>
    %c0_1 = arith.constant 0 : index
    %c0_2 = arith.constant 0 : index
    %1 = vector.load %arg3[%c0_1, %c0_2] : memref<128x384xbf16, #tpu.memory_space<vmem>>, vector<128x384xbf16>
    %cst = arith.constant dense<0.000000e+00> : vector<128x384xf32>
    %2 = tpu.matmul %0, %1, %cst {dimension_numbers = #tpu.dot_dimension_numbers<[1], [0], [0], [1], [0, 0, 1, 1], [], []>} : vector<128x128xbf16>, vector<128x384xbf16>, vector<128x384xf32> -> vector<128x384xf32>
    %c0_3 = arith.constant 0 : index
    %c0_4 = arith.constant 0 : index
    %3 = vector.load %arg4[%c0_3, %c0_4] : memref<1x384xf32, #tpu.memory_space<vmem>>, vector<1x384xf32>
    %4 = vector.broadcast %3 : vector<1x384xf32> to vector<128x384xf32>
    %5 = arith.addf %2, %4 : vector<128x384xf32>
    %6 = arith.truncf %5 : vector<128x384xf32> to vector<128x384xbf16>
    %c0_5 = arith.constant 0 : index
    %c0_6 = arith.constant 0 : index
    %7 = vector.load %arg5[%c0_5, %c0_6] : memref<128x384xbf16, #tpu.memory_space<vmem>>, vector<128x384xbf16>
    tpu.vector_store %arg5[%c0_5, %c0_6], %6 {strides = array<i32>} : memref<128x384xbf16, #tpu.memory_space<vmem>>, vector<128x384xbf16>,
    return
  }
  func.func @transform_0(%arg0: i32, %arg1: i32) -> (i32, i32) {
    %c0_i32 = arith.constant 0 : i32
    %c0_i32_0 = arith.constant 0 : i32
    return %arg0, %c0_i32 : i32, i32
  }
  func.func @transform_1(%arg0: i32, %arg1: i32) -> (i32, i32) {
    %c0_i32 = arith.constant 0 : i32
    %c0_i32_0 = arith.constant 0 : i32
    return %c0_i32, %arg1 : i32, i32
  }
  func.func @transform_2(%arg0: i32, %arg1: i32) -> (i32, i32) {
    %c0_i32 = arith.constant 0 : i32
    %c0_i32_0 = arith.constant 0 : i32
    return %c0_i32, %arg1 : i32, i32
  }
  func.func @transform_3(%arg0: i32, %arg1: i32) -> (i32, i32) {
    %c0_i32 = arith.constant 0 : i32
    return %arg0, %arg1 : i32, i32
  }
}

module attributes {stable_mosaic.version = 11 : i64} {
  func.func @_gru_recurrent_kernel(%arg0: i32, %arg1: i32, %arg2: memref<8x16x384xbf16, #tpu.memory_space<vmem>>, %arg3: memref<16x128xf32, #tpu.memory_space<vmem>>, %arg4: memref<128x384xbf16, #tpu.memory_space<vmem>>, %arg5: memref<1x128xf32, #tpu.memory_space<vmem>>, %arg6: memref<8x16x128xf32, #tpu.memory_space<vmem>>, %arg7: memref<16x128xf32, #tpu.memory_space<vmem>>) attributes {dimension_semantics = [#tpu.dimension_semantics<parallel>, #tpu.dimension_semantics<arbitrary>], iteration_bounds = array<i64: 1, 1>, scalar_prefetch = 0 : i64, scratch_operands = 1 : i64, tpu.core_type = #tpu.core_type<tc>, window_params = [{transform_indices = @transform_0, window_bounds = array<i64: 8, 16, 384>}, {transform_indices = @transform_1, window_bounds = array<i64: 16, 128>}, {pipeline_mode = #tpu.pipeline_mode<synchronous>, transform_indices = @transform_2, window_bounds = array<i64: 128, 384>}, {pipeline_mode = #tpu.pipeline_mode<synchronous>, transform_indices = @transform_3, window_bounds = array<i64: 1, 128>}, {transform_indices = @transform_4, window_bounds = array<i64: 8, 16, 128>}]} {
    %c0_i32 = arith.constant 0 : i32
    %0 = arith.cmpi eq, %arg1, %c0_i32 : i32
    %1 = arith.extui %0 : i1 to i32
    %c0_i32_0 = arith.constant 0 : i32
    %2 = arith.cmpi ne, %1, %c0_i32_0 : i32
    scf.if %2 {
      %c0_86 = arith.constant 0 : index
      %c0_87 = arith.constant 0 : index
      %320 = vector.load %arg3[%c0_86, %c0_87] : memref<16x128xf32, #tpu.memory_space<vmem>>, vector<16x128xf32>
      %c0_88 = arith.constant 0 : index
      %c0_89 = arith.constant 0 : index
      %321 = vector.load %arg7[%c0_88, %c0_89] : memref<16x128xf32, #tpu.memory_space<vmem>>, vector<16x128xf32>
      tpu.vector_store %arg7[%c0_88, %c0_89], %320 {strides = array<i32>} : memref<16x128xf32, #tpu.memory_space<vmem>>, vector<16x128xf32>,
    } else {
    }
    %c0 = arith.constant 0 : index
    %c0_1 = arith.constant 0 : index
    %3 = vector.load %arg5[%c0, %c0_1] : memref<1x128xf32, #tpu.memory_space<vmem>>, vector<1x128xf32>
    %4 = vector.shape_cast %3 : vector<1x128xf32> to vector<1x128xf32>
    %5 = vector.broadcast %4 : vector<1x128xf32> to vector<16x128xf32>
    %c0_2 = arith.constant 0 : index
    %c0_3 = arith.constant 0 : index
    %6 = vector.load %arg7[%c0_2, %c0_3] : memref<16x128xf32, #tpu.memory_space<vmem>>, vector<16x128xf32>
    %c0_i32_4 = arith.constant 0 : i32
    %7 = arith.index_cast %c0_i32_4 : i32 to index
    %c0_5 = arith.constant 0 : index
    %c0_6 = arith.constant 0 : index
    %8 = vector.load %arg2[%7, %c0_5, %c0_6] : memref<8x16x384xbf16, #tpu.memory_space<vmem>>, vector<1x16x384xbf16>
    %9 = vector.shape_cast %8 : vector<1x16x384xbf16> to vector<16x384xbf16>
    %10 = arith.extf %9 : vector<16x384xbf16> to vector<16x384xf32>
    %11 = arith.truncf %6 : vector<16x128xf32> to vector<16x128xbf16>
    %c0_7 = arith.constant 0 : index
    %c0_8 = arith.constant 0 : index
    %12 = vector.load %arg4[%c0_7, %c0_8] : memref<128x384xbf16, #tpu.memory_space<vmem>>, vector<128x384xbf16>
    %cst = arith.constant dense<0.000000e+00> : vector<16x384xf32>
    %13 = tpu.matmul %11, %12, %cst {dimension_numbers = #tpu.dot_dimension_numbers<[1], [0], [0], [1], [0, 0, 1, 1], [], []>} : vector<16x128xbf16>, vector<128x384xbf16>, vector<16x384xf32> -> vector<16x384xf32>
    %14 = vector.extract_strided_slice %10 {offsets = [0, 0], sizes = [16, 128], strides = [1, 1]} : vector<16x384xf32> to vector<16x128xf32>
    %15 = vector.extract_strided_slice %13 {offsets = [0, 0], sizes = [16, 128], strides = [1, 1]} : vector<16x384xf32> to vector<16x128xf32>
    %16 = arith.addf %14, %15 : vector<16x128xf32>
    %17 = arith.negf %16 : vector<16x128xf32>
    %18 = math.exp %17 : vector<16x128xf32>
    %cst_9 = arith.constant 1.000000e+00 : f32
    %19 = vector.broadcast %cst_9 : f32 to vector<16x128xf32>
    %20 = arith.addf %19, %18 : vector<16x128xf32>
    %21 = arith.divf %19, %20 : vector<16x128xf32>
    %22 = vector.extract_strided_slice %10 {offsets = [0, 128], sizes = [16, 128], strides = [1, 1]} : vector<16x384xf32> to vector<16x128xf32>
    %23 = vector.extract_strided_slice %13 {offsets = [0, 128], sizes = [16, 128], strides = [1, 1]} : vector<16x384xf32> to vector<16x128xf32>
    %24 = arith.addf %22, %23 : vector<16x128xf32>
    %25 = arith.negf %24 : vector<16x128xf32>
    %26 = math.exp %25 : vector<16x128xf32>
    %cst_10 = arith.constant 1.000000e+00 : f32
    %27 = vector.broadcast %cst_10 : f32 to vector<16x128xf32>
    %28 = arith.addf %27, %26 : vector<16x128xf32>
    %29 = arith.divf %27, %28 : vector<16x128xf32>
    %30 = vector.extract_strided_slice %13 {offsets = [0, 256], sizes = [16, 128], strides = [1, 1]} : vector<16x384xf32> to vector<16x128xf32>
    %31 = vector.extract_strided_slice %10 {offsets = [0, 256], sizes = [16, 128], strides = [1, 1]} : vector<16x384xf32> to vector<16x128xf32>
    %32 = arith.addf %31, %30 : vector<16x128xf32>
    %33 = arith.addf %30, %5 : vector<16x128xf32>
    %34 = arith.mulf %29, %33 : vector<16x128xf32>
    %35 = arith.addf %32, %34 : vector<16x128xf32>
    %36 = math.tanh %35 : vector<16x128xf32>
    %cst_11 = arith.constant 1.000000e+00 : f32
    %37 = vector.broadcast %cst_11 : f32 to vector<16x128xf32>
    %38 = arith.subf %37, %21 : vector<16x128xf32>
    %39 = arith.mulf %38, %36 : vector<16x128xf32>
    %40 = arith.mulf %21, %6 : vector<16x128xf32>
    %41 = arith.addf %39, %40 : vector<16x128xf32>
    %42 = arith.index_cast %c0_i32_4 : i32 to index
    %c0_12 = arith.constant 0 : index
    %c0_13 = arith.constant 0 : index
    %43 = vector.load %arg6[%42, %c0_12, %c0_13] : memref<8x16x128xf32, #tpu.memory_space<vmem>>, vector<1x16x128xf32>
    %44 = vector.shape_cast %43 : vector<1x16x128xf32> to vector<16x128xf32>
    %45 = vector.shape_cast %41 : vector<16x128xf32> to vector<1x16x128xf32>
    tpu.vector_store %arg6[%42, %c0_12, %c0_13], %45 {strides = array<i32>} : memref<8x16x128xf32, #tpu.memory_space<vmem>>, vector<1x16x128xf32>,
    %c1_i32 = arith.constant 1 : i32
    %46 = arith.index_cast %c1_i32 : i32 to index
    %c0_14 = arith.constant 0 : index
    %c0_15 = arith.constant 0 : index
    %47 = vector.load %arg2[%46, %c0_14, %c0_15] : memref<8x16x384xbf16, #tpu.memory_space<vmem>>, vector<1x16x384xbf16>
    %48 = vector.shape_cast %47 : vector<1x16x384xbf16> to vector<16x384xbf16>
    %49 = arith.extf %48 : vector<16x384xbf16> to vector<16x384xf32>
    %50 = arith.truncf %41 : vector<16x128xf32> to vector<16x128xbf16>
    %c0_16 = arith.constant 0 : index
    %c0_17 = arith.constant 0 : index
    %51 = vector.load %arg4[%c0_16, %c0_17] : memref<128x384xbf16, #tpu.memory_space<vmem>>, vector<128x384xbf16>
    %cst_18 = arith.constant dense<0.000000e+00> : vector<16x384xf32>
    %52 = tpu.matmul %50, %51, %cst_18 {dimension_numbers = #tpu.dot_dimension_numbers<[1], [0], [0], [1], [0, 0, 1, 1], [], []>} : vector<16x128xbf16>, vector<128x384xbf16>, vector<16x384xf32> -> vector<16x384xf32>
    %53 = vector.extract_strided_slice %49 {offsets = [0, 0], sizes = [16, 128], strides = [1, 1]} : vector<16x384xf32> to vector<16x128xf32>
    %54 = vector.extract_strided_slice %52 {offsets = [0, 0], sizes = [16, 128], strides = [1, 1]} : vector<16x384xf32> to vector<16x128xf32>
    %55 = arith.addf %53, %54 : vector<16x128xf32>
    %56 = arith.negf %55 : vector<16x128xf32>
    %57 = math.exp %56 : vector<16x128xf32>
    %cst_19 = arith.constant 1.000000e+00 : f32
    %58 = vector.broadcast %cst_19 : f32 to vector<16x128xf32>
    %59 = arith.addf %58, %57 : vector<16x128xf32>
    %60 = arith.divf %58, %59 : vector<16x128xf32>
    %61 = vector.extract_strided_slice %49 {offsets = [0, 128], sizes = [16, 128], strides = [1, 1]} : vector<16x384xf32> to vector<16x128xf32>
    %62 = vector.extract_strided_slice %52 {offsets = [0, 128], sizes = [16, 128], strides = [1, 1]} : vector<16x384xf32> to vector<16x128xf32>
    %63 = arith.addf %61, %62 : vector<16x128xf32>
    %64 = arith.negf %63 : vector<16x128xf32>
    %65 = math.exp %64 : vector<16x128xf32>
    %cst_20 = arith.constant 1.000000e+00 : f32
    %66 = vector.broadcast %cst_20 : f32 to vector<16x128xf32>
    %67 = arith.addf %66, %65 : vector<16x128xf32>
    %68 = arith.divf %66, %67 : vector<16x128xf32>
    %69 = vector.extract_strided_slice %52 {offsets = [0, 256], sizes = [16, 128], strides = [1, 1]} : vector<16x384xf32> to vector<16x128xf32>
    %70 = vector.extract_strided_slice %49 {offsets = [0, 256], sizes = [16, 128], strides = [1, 1]} : vector<16x384xf32> to vector<16x128xf32>
    %71 = arith.addf %70, %69 : vector<16x128xf32>
    %72 = arith.addf %69, %5 : vector<16x128xf32>
    %73 = arith.mulf %68, %72 : vector<16x128xf32>
    %74 = arith.addf %71, %73 : vector<16x128xf32>
    %75 = math.tanh %74 : vector<16x128xf32>
    %cst_21 = arith.constant 1.000000e+00 : f32
    %76 = vector.broadcast %cst_21 : f32 to vector<16x128xf32>
    %77 = arith.subf %76, %60 : vector<16x128xf32>
    %78 = arith.mulf %77, %75 : vector<16x128xf32>
    %79 = arith.mulf %60, %41 : vector<16x128xf32>
    %80 = arith.addf %78, %79 : vector<16x128xf32>
    %81 = arith.index_cast %c1_i32 : i32 to index
    %c0_22 = arith.constant 0 : index
    %c0_23 = arith.constant 0 : index
    %82 = vector.load %arg6[%81, %c0_22, %c0_23] : memref<8x16x128xf32, #tpu.memory_space<vmem>>, vector<1x16x128xf32>
    %83 = vector.shape_cast %82 : vector<1x16x128xf32> to vector<16x128xf32>
    %84 = vector.shape_cast %80 : vector<16x128xf32> to vector<1x16x128xf32>
    tpu.vector_store %arg6[%81, %c0_22, %c0_23], %84 {strides = array<i32>} : memref<8x16x128xf32, #tpu.memory_space<vmem>>, vector<1x16x128xf32>,
    %c2_i32 = arith.constant 2 : i32
    %85 = arith.index_cast %c2_i32 : i32 to index
    %c0_24 = arith.constant 0 : index
    %c0_25 = arith.constant 0 : index
    %86 = vector.load %arg2[%85, %c0_24, %c0_25] : memref<8x16x384xbf16, #tpu.memory_space<vmem>>, vector<1x16x384xbf16>
    %87 = vector.shape_cast %86 : vector<1x16x384xbf16> to vector<16x384xbf16>
    %88 = arith.extf %87 : vector<16x384xbf16> to vector<16x384xf32>
    %89 = arith.truncf %80 : vector<16x128xf32> to vector<16x128xbf16>
    %c0_26 = arith.constant 0 : index
    %c0_27 = arith.constant 0 : index
    %90 = vector.load %arg4[%c0_26, %c0_27] : memref<128x384xbf16, #tpu.memory_space<vmem>>, vector<128x384xbf16>
    %cst_28 = arith.constant dense<0.000000e+00> : vector<16x384xf32>
    %91 = tpu.matmul %89, %90, %cst_28 {dimension_numbers = #tpu.dot_dimension_numbers<[1], [0], [0], [1], [0, 0, 1, 1], [], []>} : vector<16x128xbf16>, vector<128x384xbf16>, vector<16x384xf32> -> vector<16x384xf32>
    %92 = vector.extract_strided_slice %88 {offsets = [0, 0], sizes = [16, 128], strides = [1, 1]} : vector<16x384xf32> to vector<16x128xf32>
    %93 = vector.extract_strided_slice %91 {offsets = [0, 0], sizes = [16, 128], strides = [1, 1]} : vector<16x384xf32> to vector<16x128xf32>
    %94 = arith.addf %92, %93 : vector<16x128xf32>
    %95 = arith.negf %94 : vector<16x128xf32>
    %96 = math.exp %95 : vector<16x128xf32>
    %cst_29 = arith.constant 1.000000e+00 : f32
    %97 = vector.broadcast %cst_29 : f32 to vector<16x128xf32>
    %98 = arith.addf %97, %96 : vector<16x128xf32>
    %99 = arith.divf %97, %98 : vector<16x128xf32>
    %100 = vector.extract_strided_slice %88 {offsets = [0, 128], sizes = [16, 128], strides = [1, 1]} : vector<16x384xf32> to vector<16x128xf32>
    %101 = vector.extract_strided_slice %91 {offsets = [0, 128], sizes = [16, 128], strides = [1, 1]} : vector<16x384xf32> to vector<16x128xf32>
    %102 = arith.addf %100, %101 : vector<16x128xf32>
    %103 = arith.negf %102 : vector<16x128xf32>
    %104 = math.exp %103 : vector<16x128xf32>
    %cst_30 = arith.constant 1.000000e+00 : f32
    %105 = vector.broadcast %cst_30 : f32 to vector<16x128xf32>
    %106 = arith.addf %105, %104 : vector<16x128xf32>
    %107 = arith.divf %105, %106 : vector<16x128xf32>
    %108 = vector.extract_strided_slice %91 {offsets = [0, 256], sizes = [16, 128], strides = [1, 1]} : vector<16x384xf32> to vector<16x128xf32>
    %109 = vector.extract_strided_slice %88 {offsets = [0, 256], sizes = [16, 128], strides = [1, 1]} : vector<16x384xf32> to vector<16x128xf32>
    %110 = arith.addf %109, %108 : vector<16x128xf32>
    %111 = arith.addf %108, %5 : vector<16x128xf32>
    %112 = arith.mulf %107, %111 : vector<16x128xf32>
    %113 = arith.addf %110, %112 : vector<16x128xf32>
    %114 = math.tanh %113 : vector<16x128xf32>
    %cst_31 = arith.constant 1.000000e+00 : f32
    %115 = vector.broadcast %cst_31 : f32 to vector<16x128xf32>
    %116 = arith.subf %115, %99 : vector<16x128xf32>
    %117 = arith.mulf %116, %114 : vector<16x128xf32>
    %118 = arith.mulf %99, %80 : vector<16x128xf32>
    %119 = arith.addf %117, %118 : vector<16x128xf32>
    %120 = arith.index_cast %c2_i32 : i32 to index
    %c0_32 = arith.constant 0 : index
    %c0_33 = arith.constant 0 : index
    %121 = vector.load %arg6[%120, %c0_32, %c0_33] : memref<8x16x128xf32, #tpu.memory_space<vmem>>, vector<1x16x128xf32>
    %122 = vector.shape_cast %121 : vector<1x16x128xf32> to vector<16x128xf32>
    %123 = vector.shape_cast %119 : vector<16x128xf32> to vector<1x16x128xf32>
    tpu.vector_store %arg6[%120, %c0_32, %c0_33], %123 {strides = array<i32>} : memref<8x16x128xf32, #tpu.memory_space<vmem>>, vector<1x16x128xf32>,
    %c3_i32 = arith.constant 3 : i32
    %124 = arith.index_cast %c3_i32 : i32 to index
    %c0_34 = arith.constant 0 : index
    %c0_35 = arith.constant 0 : index
    %125 = vector.load %arg2[%124, %c0_34, %c0_35] : memref<8x16x384xbf16, #tpu.memory_space<vmem>>, vector<1x16x384xbf16>
    %126 = vector.shape_cast %125 : vector<1x16x384xbf16> to vector<16x384xbf16>
    %127 = arith.extf %126 : vector<16x384xbf16> to vector<16x384xf32>
    %128 = arith.truncf %119 : vector<16x128xf32> to vector<16x128xbf16>
    %c0_36 = arith.constant 0 : index
    %c0_37 = arith.constant 0 : index
    %129 = vector.load %arg4[%c0_36, %c0_37] : memref<128x384xbf16, #tpu.memory_space<vmem>>, vector<128x384xbf16>
    %cst_38 = arith.constant dense<0.000000e+00> : vector<16x384xf32>
    %130 = tpu.matmul %128, %129, %cst_38 {dimension_numbers = #tpu.dot_dimension_numbers<[1], [0], [0], [1], [0, 0, 1, 1], [], []>} : vector<16x128xbf16>, vector<128x384xbf16>, vector<16x384xf32> -> vector<16x384xf32>
    %131 = vector.extract_strided_slice %127 {offsets = [0, 0], sizes = [16, 128], strides = [1, 1]} : vector<16x384xf32> to vector<16x128xf32>
    %132 = vector.extract_strided_slice %130 {offsets = [0, 0], sizes = [16, 128], strides = [1, 1]} : vector<16x384xf32> to vector<16x128xf32>
    %133 = arith.addf %131, %132 : vector<16x128xf32>
    %134 = arith.negf %133 : vector<16x128xf32>
    %135 = math.exp %134 : vector<16x128xf32>
    %cst_39 = arith.constant 1.000000e+00 : f32
    %136 = vector.broadcast %cst_39 : f32 to vector<16x128xf32>
    %137 = arith.addf %136, %135 : vector<16x128xf32>
    %138 = arith.divf %136, %137 : vector<16x128xf32>
    %139 = vector.extract_strided_slice %127 {offsets = [0, 128], sizes = [16, 128], strides = [1, 1]} : vector<16x384xf32> to vector<16x128xf32>
    %140 = vector.extract_strided_slice %130 {offsets = [0, 128], sizes = [16, 128], strides = [1, 1]} : vector<16x384xf32> to vector<16x128xf32>
    %141 = arith.addf %139, %140 : vector<16x128xf32>
    %142 = arith.negf %141 : vector<16x128xf32>
    %143 = math.exp %142 : vector<16x128xf32>
    %cst_40 = arith.constant 1.000000e+00 : f32
    %144 = vector.broadcast %cst_40 : f32 to vector<16x128xf32>
    %145 = arith.addf %144, %143 : vector<16x128xf32>
    %146 = arith.divf %144, %145 : vector<16x128xf32>
    %147 = vector.extract_strided_slice %130 {offsets = [0, 256], sizes = [16, 128], strides = [1, 1]} : vector<16x384xf32> to vector<16x128xf32>
    %148 = vector.extract_strided_slice %127 {offsets = [0, 256], sizes = [16, 128], strides = [1, 1]} : vector<16x384xf32> to vector<16x128xf32>
    %149 = arith.addf %148, %147 : vector<16x128xf32>
    %150 = arith.addf %147, %5 : vector<16x128xf32>
    %151 = arith.mulf %146, %150 : vector<16x128xf32>
    %152 = arith.addf %149, %151 : vector<16x128xf32>
    %153 = math.tanh %152 : vector<16x128xf32>
    %cst_41 = arith.constant 1.000000e+00 : f32
    %154 = vector.broadcast %cst_41 : f32 to vector<16x128xf32>
    %155 = arith.subf %154, %138 : vector<16x128xf32>
    %156 = arith.mulf %155, %153 : vector<16x128xf32>
    %157 = arith.mulf %138, %119 : vector<16x128xf32>
    %158 = arith.addf %156, %157 : vector<16x128xf32>
    %159 = arith.index_cast %c3_i32 : i32 to index
    %c0_42 = arith.constant 0 : index
    %c0_43 = arith.constant 0 : index
    %160 = vector.load %arg6[%159, %c0_42, %c0_43] : memref<8x16x128xf32, #tpu.memory_space<vmem>>, vector<1x16x128xf32>
    %161 = vector.shape_cast %160 : vector<1x16x128xf32> to vector<16x128xf32>
    %162 = vector.shape_cast %158 : vector<16x128xf32> to vector<1x16x128xf32>
    tpu.vector_store %arg6[%159, %c0_42, %c0_43], %162 {strides = array<i32>} : memref<8x16x128xf32, #tpu.memory_space<vmem>>, vector<1x16x128xf32>,
    %c4_i32 = arith.constant 4 : i32
    %163 = arith.index_cast %c4_i32 : i32 to index
    %c0_44 = arith.constant 0 : index
    %c0_45 = arith.constant 0 : index
    %164 = vector.load %arg2[%163, %c0_44, %c0_45] : memref<8x16x384xbf16, #tpu.memory_space<vmem>>, vector<1x16x384xbf16>
    %165 = vector.shape_cast %164 : vector<1x16x384xbf16> to vector<16x384xbf16>
    %166 = arith.extf %165 : vector<16x384xbf16> to vector<16x384xf32>
    %167 = arith.truncf %158 : vector<16x128xf32> to vector<16x128xbf16>
    %c0_46 = arith.constant 0 : index
    %c0_47 = arith.constant 0 : index
    %168 = vector.load %arg4[%c0_46, %c0_47] : memref<128x384xbf16, #tpu.memory_space<vmem>>, vector<128x384xbf16>
    %cst_48 = arith.constant dense<0.000000e+00> : vector<16x384xf32>
    %169 = tpu.matmul %167, %168, %cst_48 {dimension_numbers = #tpu.dot_dimension_numbers<[1], [0], [0], [1], [0, 0, 1, 1], [], []>} : vector<16x128xbf16>, vector<128x384xbf16>, vector<16x384xf32> -> vector<16x384xf32>
    %170 = vector.extract_strided_slice %166 {offsets = [0, 0], sizes = [16, 128], strides = [1, 1]} : vector<16x384xf32> to vector<16x128xf32>
    %171 = vector.extract_strided_slice %169 {offsets = [0, 0], sizes = [16, 128], strides = [1, 1]} : vector<16x384xf32> to vector<16x128xf32>
    %172 = arith.addf %170, %171 : vector<16x128xf32>
    %173 = arith.negf %172 : vector<16x128xf32>
    %174 = math.exp %173 : vector<16x128xf32>
    %cst_49 = arith.constant 1.000000e+00 : f32
    %175 = vector.broadcast %cst_49 : f32 to vector<16x128xf32>
    %176 = arith.addf %175, %174 : vector<16x128xf32>
    %177 = arith.divf %175, %176 : vector<16x128xf32>
    %178 = vector.extract_strided_slice %166 {offsets = [0, 128], sizes = [16, 128], strides = [1, 1]} : vector<16x384xf32> to vector<16x128xf32>
    %179 = vector.extract_strided_slice %169 {offsets = [0, 128], sizes = [16, 128], strides = [1, 1]} : vector<16x384xf32> to vector<16x128xf32>
    %180 = arith.addf %178, %179 : vector<16x128xf32>
    %181 = arith.negf %180 : vector<16x128xf32>
    %182 = math.exp %181 : vector<16x128xf32>
    %cst_50 = arith.constant 1.000000e+00 : f32
    %183 = vector.broadcast %cst_50 : f32 to vector<16x128xf32>
    %184 = arith.addf %183, %182 : vector<16x128xf32>
    %185 = arith.divf %183, %184 : vector<16x128xf32>
    %186 = vector.extract_strided_slice %169 {offsets = [0, 256], sizes = [16, 128], strides = [1, 1]} : vector<16x384xf32> to vector<16x128xf32>
    %187 = vector.extract_strided_slice %166 {offsets = [0, 256], sizes = [16, 128], strides = [1, 1]} : vector<16x384xf32> to vector<16x128xf32>
    %188 = arith.addf %187, %186 : vector<16x128xf32>
    %189 = arith.addf %186, %5 : vector<16x128xf32>
    %190 = arith.mulf %185, %189 : vector<16x128xf32>
    %191 = arith.addf %188, %190 : vector<16x128xf32>
    %192 = math.tanh %191 : vector<16x128xf32>
    %cst_51 = arith.constant 1.000000e+00 : f32
    %193 = vector.broadcast %cst_51 : f32 to vector<16x128xf32>
    %194 = arith.subf %193, %177 : vector<16x128xf32>
    %195 = arith.mulf %194, %192 : vector<16x128xf32>
    %196 = arith.mulf %177, %158 : vector<16x128xf32>
    %197 = arith.addf %195, %196 : vector<16x128xf32>
    %198 = arith.index_cast %c4_i32 : i32 to index
    %c0_52 = arith.constant 0 : index
    %c0_53 = arith.constant 0 : index
    %199 = vector.load %arg6[%198, %c0_52, %c0_53] : memref<8x16x128xf32, #tpu.memory_space<vmem>>, vector<1x16x128xf32>
    %200 = vector.shape_cast %199 : vector<1x16x128xf32> to vector<16x128xf32>
    %201 = vector.shape_cast %197 : vector<16x128xf32> to vector<1x16x128xf32>
    tpu.vector_store %arg6[%198, %c0_52, %c0_53], %201 {strides = array<i32>} : memref<8x16x128xf32, #tpu.memory_space<vmem>>, vector<1x16x128xf32>,
    %c5_i32 = arith.constant 5 : i32
    %202 = arith.index_cast %c5_i32 : i32 to index
    %c0_54 = arith.constant 0 : index
    %c0_55 = arith.constant 0 : index
    %203 = vector.load %arg2[%202, %c0_54, %c0_55] : memref<8x16x384xbf16, #tpu.memory_space<vmem>>, vector<1x16x384xbf16>
    %204 = vector.shape_cast %203 : vector<1x16x384xbf16> to vector<16x384xbf16>
    %205 = arith.extf %204 : vector<16x384xbf16> to vector<16x384xf32>
    %206 = arith.truncf %197 : vector<16x128xf32> to vector<16x128xbf16>
    %c0_56 = arith.constant 0 : index
    %c0_57 = arith.constant 0 : index
    %207 = vector.load %arg4[%c0_56, %c0_57] : memref<128x384xbf16, #tpu.memory_space<vmem>>, vector<128x384xbf16>
    %cst_58 = arith.constant dense<0.000000e+00> : vector<16x384xf32>
    %208 = tpu.matmul %206, %207, %cst_58 {dimension_numbers = #tpu.dot_dimension_numbers<[1], [0], [0], [1], [0, 0, 1, 1], [], []>} : vector<16x128xbf16>, vector<128x384xbf16>, vector<16x384xf32> -> vector<16x384xf32>
    %209 = vector.extract_strided_slice %205 {offsets = [0, 0], sizes = [16, 128], strides = [1, 1]} : vector<16x384xf32> to vector<16x128xf32>
    %210 = vector.extract_strided_slice %208 {offsets = [0, 0], sizes = [16, 128], strides = [1, 1]} : vector<16x384xf32> to vector<16x128xf32>
    %211 = arith.addf %209, %210 : vector<16x128xf32>
    %212 = arith.negf %211 : vector<16x128xf32>
    %213 = math.exp %212 : vector<16x128xf32>
    %cst_59 = arith.constant 1.000000e+00 : f32
    %214 = vector.broadcast %cst_59 : f32 to vector<16x128xf32>
    %215 = arith.addf %214, %213 : vector<16x128xf32>
    %216 = arith.divf %214, %215 : vector<16x128xf32>
    %217 = vector.extract_strided_slice %205 {offsets = [0, 128], sizes = [16, 128], strides = [1, 1]} : vector<16x384xf32> to vector<16x128xf32>
    %218 = vector.extract_strided_slice %208 {offsets = [0, 128], sizes = [16, 128], strides = [1, 1]} : vector<16x384xf32> to vector<16x128xf32>
    %219 = arith.addf %217, %218 : vector<16x128xf32>
    %220 = arith.negf %219 : vector<16x128xf32>
    %221 = math.exp %220 : vector<16x128xf32>
    %cst_60 = arith.constant 1.000000e+00 : f32
    %222 = vector.broadcast %cst_60 : f32 to vector<16x128xf32>
    %223 = arith.addf %222, %221 : vector<16x128xf32>
    %224 = arith.divf %222, %223 : vector<16x128xf32>
    %225 = vector.extract_strided_slice %208 {offsets = [0, 256], sizes = [16, 128], strides = [1, 1]} : vector<16x384xf32> to vector<16x128xf32>
    %226 = vector.extract_strided_slice %205 {offsets = [0, 256], sizes = [16, 128], strides = [1, 1]} : vector<16x384xf32> to vector<16x128xf32>
    %227 = arith.addf %226, %225 : vector<16x128xf32>
    %228 = arith.addf %225, %5 : vector<16x128xf32>
    %229 = arith.mulf %224, %228 : vector<16x128xf32>
    %230 = arith.addf %227, %229 : vector<16x128xf32>
    %231 = math.tanh %230 : vector<16x128xf32>
    %cst_61 = arith.constant 1.000000e+00 : f32
    %232 = vector.broadcast %cst_61 : f32 to vector<16x128xf32>
    %233 = arith.subf %232, %216 : vector<16x128xf32>
    %234 = arith.mulf %233, %231 : vector<16x128xf32>
    %235 = arith.mulf %216, %197 : vector<16x128xf32>
    %236 = arith.addf %234, %235 : vector<16x128xf32>
    %237 = arith.index_cast %c5_i32 : i32 to index
    %c0_62 = arith.constant 0 : index
    %c0_63 = arith.constant 0 : index
    %238 = vector.load %arg6[%237, %c0_62, %c0_63] : memref<8x16x128xf32, #tpu.memory_space<vmem>>, vector<1x16x128xf32>
    %239 = vector.shape_cast %238 : vector<1x16x128xf32> to vector<16x128xf32>
    %240 = vector.shape_cast %236 : vector<16x128xf32> to vector<1x16x128xf32>
    tpu.vector_store %arg6[%237, %c0_62, %c0_63], %240 {strides = array<i32>} : memref<8x16x128xf32, #tpu.memory_space<vmem>>, vector<1x16x128xf32>,
    %c6_i32 = arith.constant 6 : i32
    %241 = arith.index_cast %c6_i32 : i32 to index
    %c0_64 = arith.constant 0 : index
    %c0_65 = arith.constant 0 : index
    %242 = vector.load %arg2[%241, %c0_64, %c0_65] : memref<8x16x384xbf16, #tpu.memory_space<vmem>>, vector<1x16x384xbf16>
    %243 = vector.shape_cast %242 : vector<1x16x384xbf16> to vector<16x384xbf16>
    %244 = arith.extf %243 : vector<16x384xbf16> to vector<16x384xf32>
    %245 = arith.truncf %236 : vector<16x128xf32> to vector<16x128xbf16>
    %c0_66 = arith.constant 0 : index
    %c0_67 = arith.constant 0 : index
    %246 = vector.load %arg4[%c0_66, %c0_67] : memref<128x384xbf16, #tpu.memory_space<vmem>>, vector<128x384xbf16>
    %cst_68 = arith.constant dense<0.000000e+00> : vector<16x384xf32>
    %247 = tpu.matmul %245, %246, %cst_68 {dimension_numbers = #tpu.dot_dimension_numbers<[1], [0], [0], [1], [0, 0, 1, 1], [], []>} : vector<16x128xbf16>, vector<128x384xbf16>, vector<16x384xf32> -> vector<16x384xf32>
    %248 = vector.extract_strided_slice %244 {offsets = [0, 0], sizes = [16, 128], strides = [1, 1]} : vector<16x384xf32> to vector<16x128xf32>
    %249 = vector.extract_strided_slice %247 {offsets = [0, 0], sizes = [16, 128], strides = [1, 1]} : vector<16x384xf32> to vector<16x128xf32>
    %250 = arith.addf %248, %249 : vector<16x128xf32>
    %251 = arith.negf %250 : vector<16x128xf32>
    %252 = math.exp %251 : vector<16x128xf32>
    %cst_69 = arith.constant 1.000000e+00 : f32
    %253 = vector.broadcast %cst_69 : f32 to vector<16x128xf32>
    %254 = arith.addf %253, %252 : vector<16x128xf32>
    %255 = arith.divf %253, %254 : vector<16x128xf32>
    %256 = vector.extract_strided_slice %244 {offsets = [0, 128], sizes = [16, 128], strides = [1, 1]} : vector<16x384xf32> to vector<16x128xf32>
    %257 = vector.extract_strided_slice %247 {offsets = [0, 128], sizes = [16, 128], strides = [1, 1]} : vector<16x384xf32> to vector<16x128xf32>
    %258 = arith.addf %256, %257 : vector<16x128xf32>
    %259 = arith.negf %258 : vector<16x128xf32>
    %260 = math.exp %259 : vector<16x128xf32>
    %cst_70 = arith.constant 1.000000e+00 : f32
    %261 = vector.broadcast %cst_70 : f32 to vector<16x128xf32>
    %262 = arith.addf %261, %260 : vector<16x128xf32>
    %263 = arith.divf %261, %262 : vector<16x128xf32>
    %264 = vector.extract_strided_slice %247 {offsets = [0, 256], sizes = [16, 128], strides = [1, 1]} : vector<16x384xf32> to vector<16x128xf32>
    %265 = vector.extract_strided_slice %244 {offsets = [0, 256], sizes = [16, 128], strides = [1, 1]} : vector<16x384xf32> to vector<16x128xf32>
    %266 = arith.addf %265, %264 : vector<16x128xf32>
    %267 = arith.addf %264, %5 : vector<16x128xf32>
    %268 = arith.mulf %263, %267 : vector<16x128xf32>
    %269 = arith.addf %266, %268 : vector<16x128xf32>
    %270 = math.tanh %269 : vector<16x128xf32>
    %cst_71 = arith.constant 1.000000e+00 : f32
    %271 = vector.broadcast %cst_71 : f32 to vector<16x128xf32>
    %272 = arith.subf %271, %255 : vector<16x128xf32>
    %273 = arith.mulf %272, %270 : vector<16x128xf32>
    %274 = arith.mulf %255, %236 : vector<16x128xf32>
    %275 = arith.addf %273, %274 : vector<16x128xf32>
    %276 = arith.index_cast %c6_i32 : i32 to index
    %c0_72 = arith.constant 0 : index
    %c0_73 = arith.constant 0 : index
    %277 = vector.load %arg6[%276, %c0_72, %c0_73] : memref<8x16x128xf32, #tpu.memory_space<vmem>>, vector<1x16x128xf32>
    %278 = vector.shape_cast %277 : vector<1x16x128xf32> to vector<16x128xf32>
    %279 = vector.shape_cast %275 : vector<16x128xf32> to vector<1x16x128xf32>
    tpu.vector_store %arg6[%276, %c0_72, %c0_73], %279 {strides = array<i32>} : memref<8x16x128xf32, #tpu.memory_space<vmem>>, vector<1x16x128xf32>,
    %c7_i32 = arith.constant 7 : i32
    %280 = arith.index_cast %c7_i32 : i32 to index
    %c0_74 = arith.constant 0 : index
    %c0_75 = arith.constant 0 : index
    %281 = vector.load %arg2[%280, %c0_74, %c0_75] : memref<8x16x384xbf16, #tpu.memory_space<vmem>>, vector<1x16x384xbf16>
    %282 = vector.shape_cast %281 : vector<1x16x384xbf16> to vector<16x384xbf16>
    %283 = arith.extf %282 : vector<16x384xbf16> to vector<16x384xf32>
    %284 = arith.truncf %275 : vector<16x128xf32> to vector<16x128xbf16>
    %c0_76 = arith.constant 0 : index
    %c0_77 = arith.constant 0 : index
    %285 = vector.load %arg4[%c0_76, %c0_77] : memref<128x384xbf16, #tpu.memory_space<vmem>>, vector<128x384xbf16>
    %cst_78 = arith.constant dense<0.000000e+00> : vector<16x384xf32>
    %286 = tpu.matmul %284, %285, %cst_78 {dimension_numbers = #tpu.dot_dimension_numbers<[1], [0], [0], [1], [0, 0, 1, 1], [], []>} : vector<16x128xbf16>, vector<128x384xbf16>, vector<16x384xf32> -> vector<16x384xf32>
    %287 = vector.extract_strided_slice %283 {offsets = [0, 0], sizes = [16, 128], strides = [1, 1]} : vector<16x384xf32> to vector<16x128xf32>
    %288 = vector.extract_strided_slice %286 {offsets = [0, 0], sizes = [16, 128], strides = [1, 1]} : vector<16x384xf32> to vector<16x128xf32>
    %289 = arith.addf %287, %288 : vector<16x128xf32>
    %290 = arith.negf %289 : vector<16x128xf32>
    %291 = math.exp %290 : vector<16x128xf32>
    %cst_79 = arith.constant 1.000000e+00 : f32
    %292 = vector.broadcast %cst_79 : f32 to vector<16x128xf32>
    %293 = arith.addf %292, %291 : vector<16x128xf32>
    %294 = arith.divf %292, %293 : vector<16x128xf32>
    %295 = vector.extract_strided_slice %283 {offsets = [0, 128], sizes = [16, 128], strides = [1, 1]} : vector<16x384xf32> to vector<16x128xf32>
    %296 = vector.extract_strided_slice %286 {offsets = [0, 128], sizes = [16, 128], strides = [1, 1]} : vector<16x384xf32> to vector<16x128xf32>
    %297 = arith.addf %295, %296 : vector<16x128xf32>
    %298 = arith.negf %297 : vector<16x128xf32>
    %299 = math.exp %298 : vector<16x128xf32>
    %cst_80 = arith.constant 1.000000e+00 : f32
    %300 = vector.broadcast %cst_80 : f32 to vector<16x128xf32>
    %301 = arith.addf %300, %299 : vector<16x128xf32>
    %302 = arith.divf %300, %301 : vector<16x128xf32>
    %303 = vector.extract_strided_slice %286 {offsets = [0, 256], sizes = [16, 128], strides = [1, 1]} : vector<16x384xf32> to vector<16x128xf32>
    %304 = vector.extract_strided_slice %283 {offsets = [0, 256], sizes = [16, 128], strides = [1, 1]} : vector<16x384xf32> to vector<16x128xf32>
    %305 = arith.addf %304, %303 : vector<16x128xf32>
    %306 = arith.addf %303, %5 : vector<16x128xf32>
    %307 = arith.mulf %302, %306 : vector<16x128xf32>
    %308 = arith.addf %305, %307 : vector<16x128xf32>
    %309 = math.tanh %308 : vector<16x128xf32>
    %cst_81 = arith.constant 1.000000e+00 : f32
    %310 = vector.broadcast %cst_81 : f32 to vector<16x128xf32>
    %311 = arith.subf %310, %294 : vector<16x128xf32>
    %312 = arith.mulf %311, %309 : vector<16x128xf32>
    %313 = arith.mulf %294, %275 : vector<16x128xf32>
    %314 = arith.addf %312, %313 : vector<16x128xf32>
    %315 = arith.index_cast %c7_i32 : i32 to index
    %c0_82 = arith.constant 0 : index
    %c0_83 = arith.constant 0 : index
    %316 = vector.load %arg6[%315, %c0_82, %c0_83] : memref<8x16x128xf32, #tpu.memory_space<vmem>>, vector<1x16x128xf32>
    %317 = vector.shape_cast %316 : vector<1x16x128xf32> to vector<16x128xf32>
    %318 = vector.shape_cast %314 : vector<16x128xf32> to vector<1x16x128xf32>
    tpu.vector_store %arg6[%315, %c0_82, %c0_83], %318 {strides = array<i32>} : memref<8x16x128xf32, #tpu.memory_space<vmem>>, vector<1x16x128xf32>,
    %c8_i32 = arith.constant 8 : i32
    %c0_84 = arith.constant 0 : index
    %c0_85 = arith.constant 0 : index
    %319 = vector.load %arg7[%c0_84, %c0_85] : memref<16x128xf32, #tpu.memory_space<vmem>>, vector<16x128xf32>
    tpu.vector_store %arg7[%c0_84, %c0_85], %314 {strides = array<i32>} : memref<16x128xf32, #tpu.memory_space<vmem>>, vector<16x128xf32>,
    return
  }
  func.func @transform_0(%arg0: i32, %arg1: i32) -> (i32, i32, i32) {
    %c0_i32 = arith.constant 0 : i32
    %c0_i32_0 = arith.constant 0 : i32
    return %arg1, %arg0, %c0_i32 : i32, i32, i32
  }
  func.func @transform_1(%arg0: i32, %arg1: i32) -> (i32, i32) {
    %c0_i32 = arith.constant 0 : i32
    %c0_i32_0 = arith.constant 0 : i32
    return %arg0, %c0_i32 : i32, i32
  }
  func.func @transform_2(%arg0: i32, %arg1: i32) -> (i32, i32) {
    %c0_i32 = arith.constant 0 : i32
    %c0_i32_0 = arith.constant 0 : i32
    %c0_i32_1 = arith.constant 0 : i32
    return %c0_i32, %c0_i32_0 : i32, i32
  }
  func.func @transform_3(%arg0: i32, %arg1: i32) -> (i32, i32) {
    %c0_i32 = arith.constant 0 : i32
    %c0_i32_0 = arith.constant 0 : i32
    %c0_i32_1 = arith.constant 0 : i32
    return %c0_i32, %c0_i32_0 : i32, i32
  }
  func.func @transform_4(%arg0: i32, %arg1: i32) -> (i32, i32, i32) {
    %c0_i32 = arith.constant 0 : i32
    %c0_i32_0 = arith.constant 0 : i32
    return %arg1, %arg0, %c0_i32 : i32, i32, i32
  }
}

</mosaic_0001>

<llo_original>
// kernel: gru_forward.2
$region0: #{gru_forward.2}
  #allocation0 [shape = 'u32[]', space=smem, size = 0x4, offset = 0x4, fixed_abs, tag = 'smem constant byte address 0x4 - core index']
  #allocation1 [shape = 'u32[144,128]{1,0:T(1,128)}', space=vmem, size = 0x12000, scoped, tag = 'internal scratch']
  %s0 = inlined_call_operand.hbm [shape: bf16[128,128], index: 0, kind: input, shape index: {}]
  %s1 = inlined_call_operand.hbm [shape: bf16[128,384], index: 1, kind: input, shape index: {}]
  %s2 = inlined_call_operand.hbm [shape: f32[1,384], index: 2, kind: input, shape index: {}]
  %s3 = inlined_call_operand.hbm [shape: bf16[128,384], index: 3, kind: output, shape index: {}]
  %s4 = sld [smem:[#allocation0]]
  $region34: #{gru_forward.2} parent=0
    _
  %s6 = ssub.s32 1, %s4
  %s7 = scalar_select 0, %s6, %s4
  $region1: #{gru_forward.2} parent=0
    #allocation2 [shape = 'u8[32768]{0}', space=vmem, size = 0x8000, scoped, tag = 'input window, operand 0, single buffered']
    #allocation3 [shape = 's32[1]{0}', space=sflag, size = 0x4, scoped, tag = 'scoped memory for gru_forward.2']
    #allocation4 [shape = 's32[1]{0}', space=sflag, size = 0x4, scoped, tag = 'scoped memory for gru_forward.2']
    #allocation5 [shape = 'u8[98304]{0}', space=vmem, size = 0x18000, scoped, tag = 'input window, operand 1, single buffered']
    #allocation6 [shape = 's32[1]{0}', space=sflag, size = 0x4, scoped, tag = 'scoped memory for gru_forward.2']
    #allocation7 [shape = 'u8[1536]{0}', space=vmem, size = 0x800, scoped, tag = 'input window, operand 2, single buffered']
    #allocation8 [shape = 'u8[98304]{0}', space=vmem, size = 0x18000, scoped, tag = 'output window, operand 0, single buffered']
    %8 = vsyncpa [#allocation3], 0
    %9 = vsyncpa [#allocation6], 0
    %10 = vsyncpa [#allocation4], 0
    // Predicated region
    $region2: #{gru_forward.2} parent=1 // pred_check
      _
    $region3: #{gru_forward.2} parent=1 // pred_check_branch
      %12 = sbr.rel (0) target = $region5
    $region4: #{gru_forward.2} parent=1 // pred_region
      %s14 = ssub.s32 1024, 1024
      %15 = vsyncadd [#allocation3], %s14
      %s16 = sshll.u32 [#allocation2], 4
      %s17 = int_to_ptr.vmem [resolvable:$true] %s16
      %22 = dma.hbm_to_vmem [thread:$0]  %s0, 1024, %s17, [#allocation3], 64, 64, 4
    $region5: #{gru_forward.2} parent=1 // pred_fallthru
      _
    // Predicated region
    $region6: #{gru_forward.2} parent=1 // pred_check
      _
    $region7: #{gru_forward.2} parent=1 // pred_check_branch
      %24 = sbr.rel (0) target = $region9
    $region8: #{gru_forward.2} parent=1 // pred_region
      %s26 = ssub.s32 3072, 3072
      %27 = vsyncadd [#allocation6], %s26
      %s28 = sshll.u32 [#allocation5], 4
      %s29 = int_to_ptr.vmem [resolvable:$true] %s28
      %34 = dma.hbm_to_vmem [thread:$0]  %s1, 3072, %s29, [#allocation6], 192, 192, 12
    $region9: #{gru_forward.2} parent=1 // pred_fallthru
      _
    // Predicated region
    $region10: #{gru_forward.2} parent=1 // pred_check
      _
    $region11: #{gru_forward.2} parent=1 // pred_check_branch
      %36 = sbr.rel (0) target = $region13
    $region12: #{gru_forward.2} parent=1 // pred_region
      %s38 = ssub.s32 48, 48
      %39 = vsyncadd [#allocation6], %s38
      %s41 = sshll.u32 [#allocation7], 4
      %s42 = int_to_ptr.vmem [resolvable:$true] %s41
      %44 = dma.hbm_to_vmem [thread:$0]  %s2, 48, %s42, [#allocation6]
    $region13: #{gru_forward.2} parent=1 // pred_fallthru
      _
    // Predicated region
    $region14: #{gru_forward.2} parent=1 // pred_check
      _
    $region15: #{gru_forward.2} parent=1 // pred_check_branch
      %46 = sbr.rel (0) target = $region17
    $region16: #{gru_forward.2} parent=1 // pred_region
      %47 = dma.done [#allocation3], 1024
    $region17: #{gru_forward.2} parent=1 // pred_fallthru
      _
    // Predicated region
    $region18: #{gru_forward.2} parent=1 // pred_check
      _
    $region19: #{gru_forward.2} parent=1 // pred_check_branch
      %49 = sbr.rel (0) target = $region21
    $region20: #{gru_forward.2} parent=1 // pred_region
      %50 = dma.done [#allocation6], 3072
    $region21: #{gru_forward.2} parent=1 // pred_fallthru
      _
    // Predicated region
    $region22: #{gru_forward.2} parent=1 // pred_check
      _
    $region23: #{gru_forward.2} parent=1 // pred_check_branch
      %52 = sbr.rel (0) target = $region25
    $region24: #{gru_forward.2} parent=1 // pred_region
      %53 = dma.done [#allocation6], 48
    $region25: #{gru_forward.2} parent=1 // pred_fallthru
      _
    %v55 = vld [vmem:[#allocation2] sm:$0xf]
    %v56 = vld [vmem:[#allocation2 + $0x4] sm:$0xf]
    %v57 = vld [vmem:[#allocation2 + $0x8] sm:$0xf]
    %v58 = vld [vmem:[#allocation2 + $0xc] sm:$0xf]
    %v59 = vld [vmem:[#allocation2 + $0x10] sm:$0xf]
    %v60 = vld [vmem:[#allocation2 + $0x14] sm:$0xf]
    %v61 = vld [vmem:[#allocation2 + $0x18] sm:$0xf]
    %v62 = vld [vmem:[#allocation2 + $0x1c] sm:$0xf]
    %v63 = vld [vmem:[#allocation2 + $0x20] sm:$0xf]
    %v64 = vld [vmem:[#allocation2 + $0x24] sm:$0xf]
    %v65 = vld [vmem:[#allocation2 + $0x28] sm:$0xf]
    %v66 = vld [vmem:[#allocation2 + $0x2c] sm:$0xf]
    %v67 = vld [vmem:[#allocation2 + $0x30] sm:$0xf]
    %v68 = vld [vmem:[#allocation2 + $0x34] sm:$0xf]
    %v69 = vld [vmem:[#allocation2 + $0x38] sm:$0xf]
    %v70 = vld [vmem:[#allocation2 + $0x3c] sm:$0xf]
    %v71 = vld [vmem:[#allocation5] sm:$0xff]
    %v72 = vld [vmem:[#allocation5 + $0x8] sm:$0xf]
    %v73 = vld [vmem:[#allocation5 + $0xc] sm:$0xff]
    %v74 = vld [vmem:[#allocation5 + $0x14] sm:$0xf]
    %v75 = vld [vmem:[#allocation5 + $0x18] sm:$0xff]
    %v76 = vld [vmem:[#allocation5 + $0x20] sm:$0xf]
    %v77 = vld [vmem:[#allocation5 + $0x24] sm:$0xff]
    %v78 = vld [vmem:[#allocation5 + $0x2c] sm:$0xf]
    %v79 = vld [vmem:[#allocation5 + $0x30] sm:$0xff]
    %v80 = vld [vmem:[#allocation5 + $0x38] sm:$0xf]
    %v81 = vld [vmem:[#allocation5 + $0x3c] sm:$0xff]
    %v82 = vld [vmem:[#allocation5 + $0x44] sm:$0xf]
    %v83 = vld [vmem:[#allocation5 + $0x48] sm:$0xff]
    %v84 = vld [vmem:[#allocation5 + $0x50] sm:$0xf]
    %v85 = vld [vmem:[#allocation5 + $0x54] sm:$0xff]
    %v86 = vld [vmem:[#allocation5 + $0x5c] sm:$0xf]
    %v87 = vld [vmem:[#allocation5 + $0x60] sm:$0xff]
    %v88 = vld [vmem:[#allocation5 + $0x68] sm:$0xf]
    %v89 = vld [vmem:[#allocation5 + $0x6c] sm:$0xff]
    %v90 = vld [vmem:[#allocation5 + $0x74] sm:$0xf]
    %v91 = vld [vmem:[#allocation5 + $0x78] sm:$0xff]
    %v92 = vld [vmem:[#allocation5 + $0x80] sm:$0xf]
    %v93 = vld [vmem:[#allocation5 + $0x84] sm:$0xff]
    %v94 = vld [vmem:[#allocation5 + $0x8c] sm:$0xf]
    %v95 = vld [vmem:[#allocation5 + $0x90] sm:$0xff]
    %v96 = vld [vmem:[#allocation5 + $0x98] sm:$0xf]
    %v97 = vld [vmem:[#allocation5 + $0x9c] sm:$0xff]
    %v98 = vld [vmem:[#allocation5 + $0xa4] sm:$0xf]
    %v99 = vld [vmem:[#allocation5 + $0xa8] sm:$0xff]
    %v100 = vld [vmem:[#allocation5 + $0xb0] sm:$0xf]
    %v101 = vld [vmem:[#allocation5 + $0xb4] sm:$0xff]
    %v102 = vld [vmem:[#allocation5 + $0xbc] sm:$0xf]
    %v103 = vld [vmem:[#allocation7] sm:$0x7]
    %v105 = vlaneseq
    %v106 = vshrl.u32 %v105, 7
    %v107 = vsub.s32 0, %v106
    %v108 = vrot.slane %v103, %v107
    %v109 = vlaneseq
    %v110 = vshrl.u32 %v109, 7
    %v111 = vsub.s32 1, %v110
    %v112 = vrot.slane %v103, %v111
    %v113 = vlaneseq
    %v114 = vshrl.u32 %v113, 7
    %v115 = vsub.s32 2, %v114
    %v116 = vrot.slane %v103, %v115
    %v136 = vunpack.c.l.b16 %v55
    %v137 = vunpack.c.l.b16 %v56
    %v138 = vunpack.c.l.b16 %v57
    %v139 = vunpack.c.l.b16 %v58
    %v140 = vunpack.c.l.b16 %v59
    %v141 = vunpack.c.l.b16 %v60
    %v142 = vunpack.c.l.b16 %v61
    %v143 = vunpack.c.l.b16 %v62
    %v144 = vunpack.c.l.b16 %v63
    %v145 = vunpack.c.l.b16 %v64
    %v146 = vunpack.c.l.b16 %v65
    %v147 = vunpack.c.l.b16 %v66
    %v148 = vunpack.c.l.b16 %v67
    %v149 = vunpack.c.l.b16 %v68
    %v150 = vunpack.c.l.b16 %v69
    %v151 = vunpack.c.l.b16 %v70
    %v152 = vpack.c.b16 %v137, %v136
    %v153 = vpack.c.b16 %v139, %v138
    %v154 = vpack.c.b16 %v141, %v140
    %v155 = vpack.c.b16 %v143, %v142
    %v156 = vpack.c.b16 %v145, %v144
    %v157 = vpack.c.b16 %v147, %v146
    %v158 = vpack.c.b16 %v149, %v148
    %v159 = vpack.c.b16 %v151, %v150
    %v200 = vunpack.c.l.b16 %v71
    %v201 = vunpack.c.h.b16 %v71
    %v202 = vunpack.c.l.b16 %v72
    %v203 = vunpack.c.l.b16 %v73
    %v204 = vunpack.c.h.b16 %v73
    %v205 = vunpack.c.l.b16 %v74
    %v206 = vunpack.c.l.b16 %v75
    %v207 = vunpack.c.h.b16 %v75
    %v208 = vunpack.c.l.b16 %v76
    %v209 = vunpack.c.l.b16 %v77
    %v210 = vunpack.c.h.b16 %v77
    %v211 = vunpack.c.l.b16 %v78
    %v212 = vunpack.c.l.b16 %v79
    %v213 = vunpack.c.h.b16 %v79
    %v214 = vunpack.c.l.b16 %v80
    %v215 = vunpack.c.l.b16 %v81
    %v216 = vunpack.c.h.b16 %v81
    %v217 = vunpack.c.l.b16 %v82
    %v218 = vunpack.c.l.b16 %v83
    %v219 = vunpack.c.h.b16 %v83
    %v220 = vunpack.c.l.b16 %v84
    %v221 = vunpack.c.l.b16 %v85
    %v222 = vunpack.c.h.b16 %v85
    %v223 = vunpack.c.l.b16 %v86
    %v224 = vunpack.c.l.b16 %v87
    %v225 = vunpack.c.h.b16 %v87
    %v226 = vunpack.c.l.b16 %v88
    %v227 = vunpack.c.l.b16 %v89
    %v228 = vunpack.c.h.b16 %v89
    %v229 = vunpack.c.l.b16 %v90
    %v230 = vunpack.c.l.b16 %v91
    %v231 = vunpack.c.h.b16 %v91
    %v232 = vunpack.c.l.b16 %v92
    %v233 = vunpack.c.l.b16 %v93
    %v234 = vunpack.c.h.b16 %v93
    %v235 = vunpack.c.l.b16 %v94
    %v236 = vunpack.c.l.b16 %v95
    %v237 = vunpack.c.h.b16 %v95
    %v238 = vunpack.c.l.b16 %v96
    %v239 = vunpack.c.l.b16 %v97
    %v240 = vunpack.c.h.b16 %v97
    %v241 = vunpack.c.l.b16 %v98
    %v242 = vunpack.c.l.b16 %v99
    %v243 = vunpack.c.h.b16 %v99
    %v244 = vunpack.c.l.b16 %v100
    %v245 = vunpack.c.l.b16 %v101
    %v246 = vunpack.c.h.b16 %v101
    %v247 = vunpack.c.l.b16 %v102
    %v248 = vpack.c.b16 %v203, %v200
    %v249 = vpack.c.b16 %v204, %v201
    %v250 = vpack.c.b16 %v205, %v202
    %v251 = vpack.c.b16 %v209, %v206
    %v252 = vpack.c.b16 %v210, %v207
    %v253 = vpack.c.b16 %v211, %v208
    %v254 = vpack.c.b16 %v215, %v212
    %v255 = vpack.c.b16 %v216, %v213
    %v256 = vpack.c.b16 %v217, %v214
    %v257 = vpack.c.b16 %v221, %v218
    %v258 = vpack.c.b16 %v222, %v219
    %v259 = vpack.c.b16 %v223, %v220
    %v260 = vpack.c.b16 %v227, %v224
    %v261 = vpack.c.b16 %v228, %v225
    %v262 = vpack.c.b16 %v229, %v226
    %v263 = vpack.c.b16 %v233, %v230
    %v264 = vpack.c.b16 %v234, %v231
    %v265 = vpack.c.b16 %v235, %v232
    %v266 = vpack.c.b16 %v239, %v236
    %v267 = vpack.c.b16 %v240, %v237
    %v268 = vpack.c.b16 %v241, %v238
    %v269 = vpack.c.b16 %v245, %v242
    %v270 = vpack.c.b16 %v246, %v243
    %v271 = vpack.c.b16 %v247, %v244
    %296 = vmatprep.subr.bf16.mxu0 %v249
    %297 = vmatpush1.bf16.msra.mxu0 %v248
    %298 = vmatprep.subr.bf16.mxu0 %v252
    %299 = vmatpush1.bf16.msra.mxu0 %v251
    %300 = vmatprep.subr.bf16.mxu0 %v255
    %301 = vmatpush1.bf16.msra.mxu0 %v254
    %302 = vmatprep.subr.bf16.mxu0 %v258
    %303 = vmatpush1.bf16.msra.mxu0 %v257
    %304 = vmatprep.subr.bf16.mxu0 %v261
    %305 = vmatpush1.bf16.msra.mxu0 %v260
    %306 = vmatprep.subr.bf16.mxu0 %v264
    %307 = vmatpush1.bf16.msra.mxu0 %v263
    %308 = vmatprep.subr.bf16.mxu0 %v267
    %309 = vmatpush1.bf16.msra.mxu0 %v266
    %310 = vmatprep.subr.bf16.mxu0 %v270
    %311 = vmatpush1.bf16.msra.mxu0 %v269
    %312 = vmatprep.subr.bf16.mxu0 0
    %313 = vmatpush1.bf16.msra.mxu0 0
    %314 = vmatprep.subr.bf16.mxu0 0
    %315 = vmatpush1.bf16.msra.mxu0 0
    %316 = vmatprep.subr.bf16.mxu0 0
    %317 = vmatpush1.bf16.msra.mxu0 0
    %318 = vmatprep.subr.bf16.mxu0 0
    %319 = vmatpush1.bf16.msra.mxu0 0
    %320 = vmatprep.subr.bf16.mxu0 0
    %321 = vmatpush1.bf16.msra.mxu0 0
    %322 = vmatprep.subr.bf16.mxu0 0
    %323 = vmatpush1.bf16.msra.mxu0 0
    %324 = vmatprep.subr.bf16.mxu0 0
    %325 = vmatpush1.bf16.msra.mxu0 0
    %326 = vmatprep.subr.bf16.mxu0 0
    %327 = vmatpush1.bf16.msra.mxu0 0
    %328 = vmatprep.mubr.bf16.mxu0 0
    %329 = vmatmul.mubr.bf16.gmra.mrb[0].mxu0 %v152
    %v330 = vpop.f32.mrb[0].mxu0
    %v331 = vadd.f32 %v108, %v330
    %v332 = vpop.f32.mrb[0].mxu0
    %v333 = vadd.f32 %v112, %v332
    %v334 = vpop.f32.mrb[0].mxu0
    %v335 = vadd.f32 %v108, %v334
    %v336 = vpop.f32.mrb[0].mxu0
    %v337 = vadd.f32 %v112, %v336
    %338 = vmatprep.mubr.bf16.mxu0 0
    %339 = vmatmul.mubr.bf16.gmra.mrb[0].mxu0 %v153
    %v340 = vpop.f32.mrb[0].mxu0
    %v341 = vadd.f32 %v108, %v340
    %v342 = vpop.f32.mrb[0].mxu0
    %v343 = vadd.f32 %v112, %v342
    %v344 = vpop.f32.mrb[0].mxu0
    %v345 = vadd.f32 %v108, %v344
    %v346 = vpop.f32.mrb[0].mxu0
    %v347 = vadd.f32 %v112, %v346
    %348 = vmatprep.mubr.bf16.mxu0 0
    %349 = vmatmul.mubr.bf16.gmra.mrb[0].mxu0 %v154
    %v350 = vpop.f32.mrb[0].mxu0
    %v351 = vadd.f32 %v108, %v350
    %v352 = vpop.f32.mrb[0].mxu0
    %v353 = vadd.f32 %v112, %v352
    %v354 = vpop.f32.mrb[0].mxu0
    %v355 = vadd.f32 %v108, %v354
    %v356 = vpop.f32.mrb[0].mxu0
    %v357 = vadd.f32 %v112, %v356
    %358 = vmatprep.mubr.bf16.mxu0 0
    %359 = vmatmul.mubr.bf16.gmra.mrb[0].mxu0 %v155
    %v360 = vpop.f32.mrb[0].mxu0
    %v361 = vadd.f32 %v108, %v360
    %v362 = vpop.f32.mrb[0].mxu0
    %v363 = vadd.f32 %v112, %v362
    %v364 = vpop.f32.mrb[0].mxu0
    %v365 = vadd.f32 %v108, %v364
    %v366 = vpop.f32.mrb[0].mxu0
    %v367 = vadd.f32 %v112, %v366
    %368 = vmatprep.mubr.bf16.mxu0 0
    %369 = vmatmul.mubr.bf16.gmra.mrb[0].mxu0 %v156
    %v370 = vpop.f32.mrb[0].mxu0
    %v371 = vadd.f32 %v108, %v370
    %v372 = vpop.f32.mrb[0].mxu0
    %v373 = vadd.f32 %v112, %v372
    %v374 = vpop.f32.mrb[0].mxu0
    %v375 = vadd.f32 %v108, %v374
    %v376 = vpop.f32.mrb[0].mxu0
    %v377 = vadd.f32 %v112, %v376
    %378 = vmatprep.mubr.bf16.mxu0 0
    %379 = vmatmul.mubr.bf16.gmra.mrb[0].mxu0 %v157
    %v380 = vpop.f32.mrb[0].mxu0
    %v381 = vadd.f32 %v108, %v380
    %v382 = vpop.f32.mrb[0].mxu0
    %v383 = vadd.f32 %v112, %v382
    %v384 = vpop.f32.mrb[0].mxu0
    %v385 = vadd.f32 %v108, %v384
    %v386 = vpop.f32.mrb[0].mxu0
    %v387 = vadd.f32 %v112, %v386
    %388 = vmatprep.mubr.bf16.mxu0 0
    %389 = vmatmul.mubr.bf16.gmra.mrb[0].mxu0 %v158
    %v390 = vpop.f32.mrb[0].mxu0
    %v391 = vadd.f32 %v108, %v390
    %v392 = vpop.f32.mrb[0].mxu0
    %v393 = vadd.f32 %v112, %v392
    %v394 = vpop.f32.mrb[0].mxu0
    %v395 = vadd.f32 %v108, %v394
    %v396 = vpop.f32.mrb[0].mxu0
    %v397 = vadd.f32 %v112, %v396
    %398 = vmatprep.mubr.bf16.mxu0 0
    %399 = vmatmul.mubr.bf16.gmra.mrb[0].mxu0 %v159
    %v400 = vpop.f32.mrb[0].mxu0
    %v401 = vadd.f32 %v108, %v400
    %v402 = vpop.f32.mrb[0].mxu0
    %v403 = vadd.f32 %v112, %v402
    %v404 = vpop.f32.mrb[0].mxu0
    %v405 = vadd.f32 %v108, %v404
    %v406 = vpop.f32.mrb[0].mxu0
    %v407 = vadd.f32 %v112, %v406
    %408 = vdwg.mxu0
    %409 = vmatprep.subr.bf16.mxu0 0
    %410 = vmatpush1.bf16.msra.mxu0 %v250
    %411 = vmatprep.subr.bf16.mxu0 0
    %412 = vmatpush1.bf16.msra.mxu0 %v253
    %413 = vmatprep.subr.bf16.mxu0 0
    %414 = vmatpush1.bf16.msra.mxu0 %v256
    %415 = vmatprep.subr.bf16.mxu0 0
    %416 = vmatpush1.bf16.msra.mxu0 %v259
    %417 = vmatprep.subr.bf16.mxu0 0
    %418 = vmatpush1.bf16.msra.mxu0 %v262
    %419 = vmatprep.subr.bf16.mxu0 0
    %420 = vmatpush1.bf16.msra.mxu0 %v265
    %421 = vmatprep.subr.bf16.mxu0 0
    %422 = vmatpush1.bf16.msra.mxu0 %v268
    %423 = vmatprep.subr.bf16.mxu0 0
    %424 = vmatpush1.bf16.msra.mxu0 %v271
    %425 = vmatprep.subr.bf16.mxu0 0
    %426 = vmatpush1.bf16.msra.mxu0 0
    %427 = vmatprep.subr.bf16.mxu0 0
    %428 = vmatpush1.bf16.msra.mxu0 0
    %429 = vmatprep.subr.bf16.mxu0 0
    %430 = vmatpush1.bf16.msra.mxu0 0
    %431 = vmatprep.subr.bf16.mxu0 0
    %432 = vmatpush1.bf16.msra.mxu0 0
    %433 = vmatprep.subr.bf16.mxu0 0
    %434 = vmatpush1.bf16.msra.mxu0 0
    %435 = vmatprep.subr.bf16.mxu0 0
    %436 = vmatpush1.bf16.msra.mxu0 0
    %437 = vmatprep.subr.bf16.mxu0 0
    %438 = vmatpush1.bf16.msra.mxu0 0
    %439 = vmatprep.subr.bf16.mxu0 0
    %440 = vmatpush1.bf16.msra.mxu0 0
    %441 = vmatprep.mubr.bf16.mxu0 0
    %442 = vmatmul.mubr.bf16.gmra.mrb[0].mxu0 %v152
    %v443 = vpop.f32.mrb[0].mxu0
    %v444 = vadd.f32 %v116, %v443
    %v445 = vpop.f32.mrb[0].mxu0
    %v446 = vpop.f32.mrb[0].mxu0
    %v447 = vadd.f32 %v116, %v446
    %v448 = vpop.f32.mrb[0].mxu0
    %449 = vmatprep.mubr.bf16.mxu0 0
    %450 = vmatmul.mubr.bf16.gmra.mrb[0].mxu0 %v153
    %v451 = vpop.f32.mrb[0].mxu0
    %v452 = vadd.f32 %v116, %v451
    %v453 = vpop.f32.mrb[0].mxu0
    %v454 = vpop.f32.mrb[0].mxu0
    %v455 = vadd.f32 %v116, %v454
    %v456 = vpop.f32.mrb[0].mxu0
    %457 = vmatprep.mubr.bf16.mxu0 0
    %458 = vmatmul.mubr.bf16.gmra.mrb[0].mxu0 %v154
    %v459 = vpop.f32.mrb[0].mxu0
    %v460 = vadd.f32 %v116, %v459
    %v461 = vpop.f32.mrb[0].mxu0
    %v462 = vpop.f32.mrb[0].mxu0
    %v463 = vadd.f32 %v116, %v462
    %v464 = vpop.f32.mrb[0].mxu0
    %465 = vmatprep.mubr.bf16.mxu0 0
    %466 = vmatmul.mubr.bf16.gmra.mrb[0].mxu0 %v155
    %v467 = vpop.f32.mrb[0].mxu0
    %v468 = vadd.f32 %v116, %v467
    %v469 = vpop.f32.mrb[0].mxu0
    %v470 = vpop.f32.mrb[0].mxu0
    %v471 = vadd.f32 %v116, %v470
    %v472 = vpop.f32.mrb[0].mxu0
    %473 = vmatprep.mubr.bf16.mxu0 0
    %474 = vmatmul.mubr.bf16.gmra.mrb[0].mxu0 %v156
    %v475 = vpop.f32.mrb[0].mxu0
    %v476 = vadd.f32 %v116, %v475
    %v477 = vpop.f32.mrb[0].mxu0
    %v478 = vpop.f32.mrb[0].mxu0
    %v479 = vadd.f32 %v116, %v478
    %v480 = vpop.f32.mrb[0].mxu0
    %481 = vmatprep.mubr.bf16.mxu0 0
    %482 = vmatmul.mubr.bf16.gmra.mrb[0].mxu0 %v157
    %v483 = vpop.f32.mrb[0].mxu0
    %v484 = vadd.f32 %v116, %v483
    %v485 = vpop.f32.mrb[0].mxu0
    %v486 = vpop.f32.mrb[0].mxu0
    %v487 = vadd.f32 %v116, %v486
    %v488 = vpop.f32.mrb[0].mxu0
    %489 = vmatprep.mubr.bf16.mxu0 0
    %490 = vmatmul.mubr.bf16.gmra.mrb[0].mxu0 %v158
    %v491 = vpop.f32.mrb[0].mxu0
    %v492 = vadd.f32 %v116, %v491
    %v493 = vpop.f32.mrb[0].mxu0
    %v494 = vpop.f32.mrb[0].mxu0
    %v495 = vadd.f32 %v116, %v494
    %v496 = vpop.f32.mrb[0].mxu0
    %497 = vmatprep.mubr.bf16.mxu0 0
    %498 = vmatmul.mubr.bf16.gmra.mrb[0].mxu0 %v159
    %v499 = vpop.f32.mrb[0].mxu0
    %v500 = vadd.f32 %v116, %v499
    %v501 = vpop.f32.mrb[0].mxu0
    %v502 = vpop.f32.mrb[0].mxu0
    %v503 = vadd.f32 %v116, %v502
    %v504 = vpop.f32.mrb[0].mxu0
    %505 = vdwg.mxu0
    %v506 = vpack.c.bf16 %v335, %v331
    %v507 = vpack.c.bf16 %v337, %v333
    %v508 = vpack.c.bf16 %v447, %v444
    %v509 = vpack.c.bf16 %v345, %v341
    %v510 = vpack.c.bf16 %v347, %v343
    %v511 = vpack.c.bf16 %v455, %v452
    %v512 = vpack.c.bf16 %v355, %v351
    %v513 = vpack.c.bf16 %v357, %v353
    %v514 = vpack.c.bf16 %v463, %v460
    %v515 = vpack.c.bf16 %v365, %v361
    %v516 = vpack.c.bf16 %v367, %v363
    %v517 = vpack.c.bf16 %v471, %v468
    %v518 = vpack.c.bf16 %v375, %v371
    %v519 = vpack.c.bf16 %v377, %v373
    %v520 = vpack.c.bf16 %v479, %v476
    %v521 = vpack.c.bf16 %v385, %v381
    %v522 = vpack.c.bf16 %v387, %v383
    %v523 = vpack.c.bf16 %v487, %v484
    %v524 = vpack.c.bf16 %v395, %v391
    %v525 = vpack.c.bf16 %v397, %v393
    %v526 = vpack.c.bf16 %v495, %v492
    %v527 = vpack.c.bf16 %v405, %v401
    %v528 = vpack.c.bf16 %v407, %v403
    %v529 = vpack.c.bf16 %v503, %v500
    %v554 = vunpack.c.l.b16 %v506
    %v555 = vunpack.c.l.b16 %v507
    %v556 = vunpack.c.l.b16 %v508
    %v557 = vunpack.c.h.b16 %v506
    %v558 = vunpack.c.h.b16 %v507
    %v559 = vunpack.c.h.b16 %v508
    %v560 = vunpack.c.l.b16 %v509
    %v561 = vunpack.c.l.b16 %v510
    %v562 = vunpack.c.l.b16 %v511
    %v563 = vunpack.c.h.b16 %v509
    %v564 = vunpack.c.h.b16 %v510
    %v565 = vunpack.c.h.b16 %v511
    %v566 = vunpack.c.l.b16 %v512
    %v567 = vunpack.c.l.b16 %v513
    %v568 = vunpack.c.l.b16 %v514
    %v569 = vunpack.c.h.b16 %v512
    %v570 = vunpack.c.h.b16 %v513
    %v571 = vunpack.c.h.b16 %v514
    %v572 = vunpack.c.l.b16 %v515
    %v573 = vunpack.c.l.b16 %v516
    %v574 = vunpack.c.l.b16 %v517
    %v575 = vunpack.c.h.b16 %v515
    %v576 = vunpack.c.h.b16 %v516
    %v577 = vunpack.c.h.b16 %v517
    %v578 = vunpack.c.l.b16 %v518
    %v579 = vunpack.c.l.b16 %v519
    %v580 = vunpack.c.l.b16 %v520
    %v581 = vunpack.c.h.b16 %v518
    %v582 = vunpack.c.h.b16 %v519
    %v583 = vunpack.c.h.b16 %v520
    %v584 = vunpack.c.l.b16 %v521
    %v585 = vunpack.c.l.b16 %v522
    %v586 = vunpack.c.l.b16 %v523
    %v587 = vunpack.c.h.b16 %v521
    %v588 = vunpack.c.h.b16 %v522
    %v589 = vunpack.c.h.b16 %v523
    %v590 = vunpack.c.l.b16 %v524
    %v591 = vunpack.c.l.b16 %v525
    %v592 = vunpack.c.l.b16 %v526
    %v593 = vunpack.c.h.b16 %v524
    %v594 = vunpack.c.h.b16 %v525
    %v595 = vunpack.c.h.b16 %v526
    %v596 = vunpack.c.l.b16 %v527
    %v597 = vunpack.c.l.b16 %v528
    %v598 = vunpack.c.l.b16 %v529
    %v599 = vunpack.c.h.b16 %v527
    %v600 = vunpack.c.h.b16 %v528
    %v601 = vunpack.c.h.b16 %v529
    %v602 = vpack.c.b16 %v555, %v554
    %v603 = vpack.c.b16 %v556, %v556
    %v604 = vpack.c.b16 %v558, %v557
    %v605 = vpack.c.b16 %v559, %v559
    %v606 = vpack.c.b16 %v561, %v560
    %v607 = vpack.c.b16 %v562, %v562
    %v608 = vpack.c.b16 %v564, %v563
    %v609 = vpack.c.b16 %v565, %v565
    %v610 = vpack.c.b16 %v567, %v566
    %v611 = vpack.c.b16 %v568, %v568
    %v612 = vpack.c.b16 %v570, %v569
    %v613 = vpack.c.b16 %v571, %v571
    %v614 = vpack.c.b16 %v573, %v572
    %v615 = vpack.c.b16 %v574, %v574
    %v616 = vpack.c.b16 %v576, %v575
    %v617 = vpack.c.b16 %v577, %v577
    %v618 = vpack.c.b16 %v579, %v578
    %v619 = vpack.c.b16 %v580, %v580
    %v620 = vpack.c.b16 %v582, %v581
    %v621 = vpack.c.b16 %v583, %v583
    %v622 = vpack.c.b16 %v585, %v584
    %v623 = vpack.c.b16 %v586, %v586
    %v624 = vpack.c.b16 %v588, %v587
    %v625 = vpack.c.b16 %v589, %v589
    %v626 = vpack.c.b16 %v591, %v590
    %v627 = vpack.c.b16 %v592, %v592
    %v628 = vpack.c.b16 %v594, %v593
    %v629 = vpack.c.b16 %v595, %v595
    %v630 = vpack.c.b16 %v597, %v596
    %v631 = vpack.c.b16 %v598, %v598
    %v632 = vpack.c.b16 %v600, %v599
    %v633 = vpack.c.b16 %v601, %v601
    %666 = vst [vmem:[#allocation8] sm:$0xff] %v602
    %667 = vst [vmem:[#allocation8 + $0x8] sm:$0xf] %v603
    %668 = vst [vmem:[#allocation8 + $0xc] sm:$0xff] %v604
    %669 = vst [vmem:[#allocation8 + $0x14] sm:$0xf] %v605
    %670 = vst [vmem:[#allocation8 + $0x18] sm:$0xff] %v606
    %671 = vst [vmem:[#allocation8 + $0x20] sm:$0xf] %v607
    %672 = vst [vmem:[#allocation8 + $0x24] sm:$0xff] %v608
    %673 = vst [vmem:[#allocation8 + $0x2c] sm:$0xf] %v609
    %674 = vst [vmem:[#allocation8 + $0x30] sm:$0xff] %v610
    %675 = vst [vmem:[#allocation8 + $0x38] sm:$0xf] %v611
    %676 = vst [vmem:[#allocation8 + $0x3c] sm:$0xff] %v612
    %677 = vst [vmem:[#allocation8 + $0x44] sm:$0xf] %v613
    %678 = vst [vmem:[#allocation8 + $0x48] sm:$0xff] %v614
    %679 = vst [vmem:[#allocation8 + $0x50] sm:$0xf] %v615
    %680 = vst [vmem:[#allocation8 + $0x54] sm:$0xff] %v616
    %681 = vst [vmem:[#allocation8 + $0x5c] sm:$0xf] %v617
    %682 = vst [vmem:[#allocation8 + $0x60] sm:$0xff] %v618
    %683 = vst [vmem:[#allocation8 + $0x68] sm:$0xf] %v619
    %684 = vst [vmem:[#allocation8 + $0x6c] sm:$0xff] %v620
    %685 = vst [vmem:[#allocation8 + $0x74] sm:$0xf] %v621
    %686 = vst [vmem:[#allocation8 + $0x78] sm:$0xff] %v622
    %687 = vst [vmem:[#allocation8 + $0x80] sm:$0xf] %v623
    %688 = vst [vmem:[#allocation8 + $0x84] sm:$0xff] %v624
    %689 = vst [vmem:[#allocation8 + $0x8c] sm:$0xf] %v625
    %690 = vst [vmem:[#allocation8 + $0x90] sm:$0xff] %v626
    %691 = vst [vmem:[#allocation8 + $0x98] sm:$0xf] %v627
    %692 = vst [vmem:[#allocation8 + $0x9c] sm:$0xff] %v628
    %693 = vst [vmem:[#allocation8 + $0xa4] sm:$0xf] %v629
    %694 = vst [vmem:[#allocation8 + $0xa8] sm:$0xff] %v630
    %695 = vst [vmem:[#allocation8 + $0xb0] sm:$0xf] %v631
    %696 = vst [vmem:[#allocation8 + $0xb4] sm:$0xff] %v632
    %697 = vst [vmem:[#allocation8 + $0xbc] sm:$0xf] %v633
    // Predicated region
    $region26: #{gru_forward.2} parent=1 // pred_check
      _
    $region27: #{gru_forward.2} parent=1 // pred_check_branch
      %699 = sbr.rel (0) target = $region29
    $region28: #{gru_forward.2} parent=1 // pred_region
      %s701 = ssub.s32 3072, 3072
      %702 = vsyncadd [#allocation4], %s701
      %s703 = sshll.u32 [#allocation8], 4
      %s704 = int_to_ptr.vmem [resolvable:$true] %s703
      %709 = dma.vmem_to_hbm [thread:$0]  %s704, 3072, %s3, [#allocation4], 192, 192, 12
    $region29: #{gru_forward.2} parent=1 // pred_fallthru
      _
    // Predicated region
    $region30: #{gru_forward.2} parent=1 // pred_check
      _
    $region31: #{gru_forward.2} parent=1 // pred_check_branch
      %711 = sbr.rel (0) target = $region33
    $region32: #{gru_forward.2} parent=1 // pred_region
      %712 = dma.done [#allocation4], 3072
    $region33: #{gru_forward.2} parent=1 // pred_fallthru
      _
    %713 = vsyncpa [#allocation3], 1
    %714 = vsyncpa [#allocation6], 1
    %715 = vsyncpa [#allocation4], 1

// kernel: gru_forward.3
$region0: #{gru_forward.3}
  #allocation0 [shape = 'u32[]', space=smem, size = 0x4, offset = 0x4, fixed_abs, tag = 'smem constant byte address 0x4 - core index']
  #allocation1 [shape = 'u32[144,128]{1,0:T(1,128)}', space=vmem, size = 0x12000, scoped, tag = 'internal scratch']
  #allocation2 [shape = 'f32[16,128]{1,0:T(8,128)}', space=vmem, size = 0x2000, scoped, tag = 'scratch operand']
  %s0 = inlined_call_operand.hbm [shape: bf16[8,16,384], index: 0, kind: input, shape index: {}]
  %s1 = inlined_call_operand.hbm [shape: f32[16,128], index: 1, kind: input, shape index: {}]
  %s2 = inlined_call_operand.hbm [shape: bf16[128,384], index: 2, kind: input, shape index: {}]
  %s3 = inlined_call_operand.hbm [shape: f32[1,128], index: 3, kind: input, shape index: {}]
  %s4 = inlined_call_operand.hbm [shape: f32[8,16,128], index: 4, kind: output, shape index: {}]
  %s5 = sld [smem:[#allocation0]]
  $region46: #{gru_forward.3} parent=0
    _
  %s7 = ssub.s32 1, %s5
  %s8 = scalar_select 0, %s7, %s5
  $region1: #{gru_forward.3} parent=0
    #allocation3 [shape = 'u8[98304]{0}', space=vmem, size = 0x18000, scoped, tag = 'input window, operand 0, single buffered']
    #allocation4 [shape = 's32[1]{0}', space=sflag, size = 0x4, scoped, tag = 'scoped memory for gru_forward.3']
    #allocation5 [shape = 's32[1]{0}', space=sflag, size = 0x4, scoped, tag = 'scoped memory for gru_forward.3']
    #allocation6 [shape = 'u8[8192]{0}', space=vmem, size = 0x2000, scoped, tag = 'input window, operand 1, single buffered']
    #allocation7 [shape = 's32[1]{0}', space=sflag, size = 0x4, scoped, tag = 'scoped memory for gru_forward.3']
    #allocation8 [shape = 'u8[98304]{0}', space=vmem, size = 0x18000, scoped, tag = 'input window, operand 2, single buffered']
    #allocation9 [shape = 'u8[512]{0}', space=vmem, size = 0x400, scoped, tag = 'input window, operand 3, single buffered']
    #allocation10 [shape = 's32[1]{0}', space=sflag, size = 0x4, scoped, tag = 'scoped memory for gru_forward.3']
    #allocation11 [shape = 'u8[65536]{0}', space=vmem, size = 0x10000, scoped, tag = 'output window, operand 0, single buffered']
    %9 = vsyncpa [#allocation4], 0
    %10 = vsyncpa [#allocation7], 0
    %11 = vsyncpa [#allocation10], 0
    %12 = vsyncpa [#allocation5], 0
    // Predicated region
    $region2: #{gru_forward.3} parent=1 // pred_check
      _
    $region3: #{gru_forward.3} parent=1 // pred_check_branch
      %14 = sbr.rel (0) target = $region5
    $region4: #{gru_forward.3} parent=1 // pred_region
      %s16 = ssub.s32 3072, 3072
      %17 = vsyncadd [#allocation4], %s16
      %s18 = sshll.u32 [#allocation3], 4
      %s19 = int_to_ptr.vmem [resolvable:$true] %s18
      %24 = dma.hbm_to_vmem [thread:$0]  %s0, 3072, %s19, [#allocation4], 192, 192, 12
    $region5: #{gru_forward.3} parent=1 // pred_fallthru
      _
    // Predicated region
    $region6: #{gru_forward.3} parent=1 // pred_check
      _
    $region7: #{gru_forward.3} parent=1 // pred_check_branch
      %26 = sbr.rel (0) target = $region9
    $region8: #{gru_forward.3} parent=1 // pred_region
      %s28 = ssub.s32 256, 256
      %29 = vsyncadd [#allocation7], %s28
      %s30 = sshll.u32 [#allocation6], 4
      %s31 = int_to_ptr.vmem [resolvable:$true] %s30
      %36 = dma.hbm_to_vmem [thread:$0]  %s1, 256, %s31, [#allocation7], 128, 128, 8
    $region9: #{gru_forward.3} parent=1 // pred_fallthru
      _
    // Predicated region
    $region10: #{gru_forward.3} parent=1 // pred_check
      _
    $region11: #{gru_forward.3} parent=1 // pred_check_branch
      %38 = sbr.rel (0) target = $region13
    $region12: #{gru_forward.3} parent=1 // pred_region
      %s40 = ssub.s32 3072, 3072
      %41 = vsyncadd [#allocation7], %s40
      %s42 = sshll.u32 [#allocation8], 4
      %s43 = int_to_ptr.vmem [resolvable:$true] %s42
      %48 = dma.hbm_to_vmem [thread:$0]  %s2, 3072, %s43, [#allocation7], 192, 192, 12
    $region13: #{gru_forward.3} parent=1 // pred_fallthru
      _
    // Predicated region
    $region14: #{gru_forward.3} parent=1 // pred_check
      _
    $region15: #{gru_forward.3} parent=1 // pred_check_branch
      %50 = sbr.rel (0) target = $region17
    $region16: #{gru_forward.3} parent=1 // pred_region
      %s52 = ssub.s32 16, 16
      %53 = vsyncadd [#allocation10], %s52
      %s55 = sshll.u32 [#allocation9], 4
      %s56 = int_to_ptr.vmem [resolvable:$true] %s55
      %58 = dma.hbm_to_vmem [thread:$0]  %s3, 16, %s56, [#allocation10]
    $region17: #{gru_forward.3} parent=1 // pred_fallthru
      _
    // Predicated region
    $region18: #{gru_forward.3} parent=1 // pred_check
      _
    $region19: #{gru_forward.3} parent=1 // pred_check_branch
      %60 = sbr.rel (0) target = $region21
    $region20: #{gru_forward.3} parent=1 // pred_region
      %61 = dma.done [#allocation4], 3072
    $region21: #{gru_forward.3} parent=1 // pred_fallthru
      _
    // Predicated region
    $region22: #{gru_forward.3} parent=1 // pred_check
      _
    $region23: #{gru_forward.3} parent=1 // pred_check_branch
      %63 = sbr.rel (0) target = $region25
    $region24: #{gru_forward.3} parent=1 // pred_region
      %64 = dma.done [#allocation7], 256
    $region25: #{gru_forward.3} parent=1 // pred_fallthru
      _
    // Predicated region
    $region26: #{gru_forward.3} parent=1 // pred_check
      _
    $region27: #{gru_forward.3} parent=1 // pred_check_branch
      %66 = sbr.rel (0) target = $region29
    $region28: #{gru_forward.3} parent=1 // pred_region
      %67 = dma.done [#allocation7], 3072
    $region29: #{gru_forward.3} parent=1 // pred_fallthru
      _
    // Predicated region
    $region30: #{gru_forward.3} parent=1 // pred_check
      _
    $region31: #{gru_forward.3} parent=1 // pred_check_branch
      %69 = sbr.rel (0) target = $region33
    $region32: #{gru_forward.3} parent=1 // pred_region
      %70 = dma.done [#allocation10], 16
    $region33: #{gru_forward.3} parent=1 // pred_fallthru
      _
    %p72 = scmp.eq.s32.totalorder 0, 0
    // Predicated region
    $region34: #{gru_forward.3} parent=1 // pred_check
      %p73 = pneg %p72
    $region35: #{gru_forward.3} parent=1 // pred_check_branch
      %75 = sbr.rel (%p73) target = $region37
    $region36: #{gru_forward.3} parent=1 // pred_region
      %v76 = vld [vmem:[#allocation6] sm:$0xff]
      %v77 = vld [vmem:[#allocation6 + $0x8] sm:$0xff]
      %78 = vst [vmem:[#allocation2] sm:$0xff] %v76
      %79 = vst [vmem:[#allocation2 + $0x8] sm:$0xff] %v77
    $region37: #{gru_forward.3} parent=1 // pred_fallthru
      _
    %v80 = vld [vmem:[#allocation9] sm:$0x1]
    %v82 = vlaneseq
    %v83 = vshrl.u32 %v82, 7
    %v84 = vsub.s32 0, %v83
    %v85 = vrot.slane %v80, %v84
    %v87 = vld [vmem:[#allocation2] sm:$0xff]
    %v88 = vld [vmem:[#allocation2 + $0x8] sm:$0xff]
    %v89 = vld [vmem:[#allocation3] sm:$0xff]
    %v90 = vld [vmem:[#allocation3 + $0x8] sm:$0xf]
    %v91 = vld [vmem:[#allocation3 + $0xc] sm:$0xff]
    %v92 = vld [vmem:[#allocation3 + $0x14] sm:$0xf]
    %v93 = vunpack.c.l.bf16 %v89
    %v94 = vunpack.c.h.bf16 %v89
    %v95 = vunpack.c.l.bf16 %v90
    %v96 = vunpack.c.l.bf16 %v91
    %v97 = vunpack.c.h.bf16 %v91
    %v98 = vunpack.c.l.bf16 %v92
    %v99 = vpack.c.bf16 %v88, %v87
    %v100 = vld [vmem:[#allocation8] sm:$0xff]
    %v101 = vld [vmem:[#allocation8 + $0x8] sm:$0xf]
    %v102 = vld [vmem:[#allocation8 + $0xc] sm:$0xff]
    %v103 = vld [vmem:[#allocation8 + $0x14] sm:$0xf]
    %v104 = vld [vmem:[#allocation8 + $0x18] sm:$0xff]
    %v105 = vld [vmem:[#allocation8 + $0x20] sm:$0xf]
    %v106 = vld [vmem:[#allocation8 + $0x24] sm:$0xff]
    %v107 = vld [vmem:[#allocation8 + $0x2c] sm:$0xf]
    %v108 = vld [vmem:[#allocation8 + $0x30] sm:$0xff]
    %v109 = vld [vmem:[#allocation8 + $0x38] sm:$0xf]
    %v110 = vld [vmem:[#allocation8 + $0x3c] sm:$0xff]
    %v111 = vld [vmem:[#allocation8 + $0x44] sm:$0xf]
    %v112 = vld [vmem:[#allocation8 + $0x48] sm:$0xff]
    %v113 = vld [vmem:[#allocation8 + $0x50] sm:$0xf]
    %v114 = vld [vmem:[#allocation8 + $0x54] sm:$0xff]
    %v115 = vld [vmem:[#allocation8 + $0x5c] sm:$0xf]
    %v116 = vld [vmem:[#allocation8 + $0x60] sm:$0xff]
    %v117 = vld [vmem:[#allocation8 + $0x68] sm:$0xf]
    %v118 = vld [vmem:[#allocation8 + $0x6c] sm:$0xff]
    %v119 = vld [vmem:[#allocation8 + $0x74] sm:$0xf]
    %v120 = vld [vmem:[#allocation8 + $0x78] sm:$0xff]
    %v121 = vld [vmem:[#allocation8 + $0x80] sm:$0xf]
    %v122 = vld [vmem:[#allocation8 + $0x84] sm:$0xff]
    %v123 = vld [vmem:[#allocation8 + $0x8c] sm:$0xf]
    %v124 = vld [vmem:[#allocation8 + $0x90] sm:$0xff]
    %v125 = vld [vmem:[#allocation8 + $0x98] sm:$0xf]
    %v126 = vld [vmem:[#allocation8 + $0x9c] sm:$0xff]
    %v127 = vld [vmem:[#allocation8 + $0xa4] sm:$0xf]
    %v128 = vld [vmem:[#allocation8 + $0xa8] sm:$0xff]
    %v129 = vld [vmem:[#allocation8 + $0xb0] sm:$0xf]
    %v130 = vld [vmem:[#allocation8 + $0xb4] sm:$0xff]
    %v131 = vld [vmem:[#allocation8 + $0xbc] sm:$0xf]
    %v164 = vunpack.c.l.b16 %v100
    %v165 = vunpack.c.h.b16 %v100
    %v166 = vunpack.c.l.b16 %v101
    %v167 = vunpack.c.l.b16 %v102
    %v168 = vunpack.c.h.b16 %v102
    %v169 = vunpack.c.l.b16 %v103
    %v170 = vunpack.c.l.b16 %v104
    %v171 = vunpack.c.h.b16 %v104
    %v172 = vunpack.c.l.b16 %v105
    %v173 = vunpack.c.l.b16 %v106
    %v174 = vunpack.c.h.b16 %v106
    %v175 = vunpack.c.l.b16 %v107
    %v176 = vunpack.c.l.b16 %v108
    %v177 = vunpack.c.h.b16 %v108
    %v178 = vunpack.c.l.b16 %v109
    %v179 = vunpack.c.l.b16 %v110
    %v180 = vunpack.c.h.b16 %v110
    %v181 = vunpack.c.l.b16 %v111
    %v182 = vunpack.c.l.b16 %v112
    %v183 = vunpack.c.h.b16 %v112
    %v184 = vunpack.c.l.b16 %v113
    %v185 = vunpack.c.l.b16 %v114
    %v186 = vunpack.c.h.b16 %v114
    %v187 = vunpack.c.l.b16 %v115
    %v188 = vunpack.c.l.b16 %v116
    %v189 = vunpack.c.h.b16 %v116
    %v190 = vunpack.c.l.b16 %v117
    %v191 = vunpack.c.l.b16 %v118
    %v192 = vunpack.c.h.b16 %v118
    %v193 = vunpack.c.l.b16 %v119
    %v194 = vunpack.c.l.b16 %v120
    %v195 = vunpack.c.h.b16 %v120
    %v196 = vunpack.c.l.b16 %v121
    %v197 = vunpack.c.l.b16 %v122
    %v198 = vunpack.c.h.b16 %v122
    %v199 = vunpack.c.l.b16 %v123
    %v200 = vunpack.c.l.b16 %v124
    %v201 = vunpack.c.h.b16 %v124
    %v202 = vunpack.c.l.b16 %v125
    %v203 = vunpack.c.l.b16 %v126
    %v204 = vunpack.c.h.b16 %v126
    %v205 = vunpack.c.l.b16 %v127
    %v206 = vunpack.c.l.b16 %v128
    %v207 = vunpack.c.h.b16 %v128
    %v208 = vunpack.c.l.b16 %v129
    %v209 = vunpack.c.l.b16 %v130
    %v210 = vunpack.c.h.b16 %v130
    %v211 = vunpack.c.l.b16 %v131
    %v212 = vpack.c.b16 %v167, %v164
    %v213 = vpack.c.b16 %v168, %v165
    %v214 = vpack.c.b16 %v169, %v166
    %v215 = vpack.c.b16 %v173, %v170
    %v216 = vpack.c.b16 %v174, %v171
    %v217 = vpack.c.b16 %v175, %v172
    %v218 = vpack.c.b16 %v179, %v176
    %v219 = vpack.c.b16 %v180, %v177
    %v220 = vpack.c.b16 %v181, %v178
    %v221 = vpack.c.b16 %v185, %v182
    %v222 = vpack.c.b16 %v186, %v183
    %v223 = vpack.c.b16 %v187, %v184
    %v224 = vpack.c.b16 %v191, %v188
    %v225 = vpack.c.b16 %v192, %v189
    %v226 = vpack.c.b16 %v193, %v190
    %v227 = vpack.c.b16 %v197, %v194
    %v228 = vpack.c.b16 %v198, %v195
    %v229 = vpack.c.b16 %v199, %v196
    %v230 = vpack.c.b16 %v203, %v200
    %v231 = vpack.c.b16 %v204, %v201
    %v232 = vpack.c.b16 %v205, %v202
    %v233 = vpack.c.b16 %v209, %v206
    %v234 = vpack.c.b16 %v210, %v207
    %v235 = vpack.c.b16 %v211, %v208
    %260 = vmatprep.subr.bf16.mxu0 %v213
    %261 = vmatpush1.bf16.msra.mxu0 %v212
    %262 = vmatprep.subr.bf16.mxu0 %v216
    %263 = vmatpush1.bf16.msra.mxu0 %v215
    %264 = vmatprep.subr.bf16.mxu0 %v219
    %265 = vmatpush1.bf16.msra.mxu0 %v218
    %266 = vmatprep.subr.bf16.mxu0 %v222
    %267 = vmatpush1.bf16.msra.mxu0 %v221
    %268 = vmatprep.subr.bf16.mxu0 %v225
    %269 = vmatpush1.bf16.msra.mxu0 %v224
    %270 = vmatprep.subr.bf16.mxu0 %v228
    %271 = vmatpush1.bf16.msra.mxu0 %v227
    %272 = vmatprep.subr.bf16.mxu0 %v231
    %273 = vmatpush1.bf16.msra.mxu0 %v230
    %274 = vmatprep.subr.bf16.mxu0 %v234
    %275 = vmatpush1.bf16.msra.mxu0 %v233
    %276 = vmatprep.subr.bf16.mxu0 0
    %277 = vmatpush1.bf16.msra.mxu0 0
    %278 = vmatprep.subr.bf16.mxu0 0
    %279 = vmatpush1.bf16.msra.mxu0 0
    %280 = vmatprep.subr.bf16.mxu0 0
    %281 = vmatpush1.bf16.msra.mxu0 0
    %282 = vmatprep.subr.bf16.mxu0 0
    %283 = vmatpush1.bf16.msra.mxu0 0
    %284 = vmatprep.subr.bf16.mxu0 0
    %285 = vmatpush1.bf16.msra.mxu0 0
    %286 = vmatprep.subr.bf16.mxu0 0
    %287 = vmatpush1.bf16.msra.mxu0 0
    %288 = vmatprep.subr.bf16.mxu0 0
    %289 = vmatpush1.bf16.msra.mxu0 0
    %290 = vmatprep.subr.bf16.mxu0 0
    %291 = vmatpush1.bf16.msra.mxu0 0
    %292 = vmatprep.mubr.bf16.mxu0 0
    %293 = vmatmul.mubr.bf16.gmra.mrb[0].mxu0 %v99
    %v294 = vpop.f32.mrb[0].mxu0
    %v295 = vadd.f32 0.0, %v294
    %v296 = vpop.f32.mrb[0].mxu0
    %v297 = vadd.f32 0.0, %v296
    %v298 = vpop.f32.mrb[0].mxu0
    %v299 = vadd.f32 0.0, %v298
    %v300 = vpop.f32.mrb[0].mxu0
    %v301 = vadd.f32 0.0, %v300
    %302 = vdwg.mxu0
    %303 = vmatprep.subr.bf16.mxu0 0
    %304 = vmatpush1.bf16.msra.mxu0 %v214
    %305 = vmatprep.subr.bf16.mxu0 0
    %306 = vmatpush1.bf16.msra.mxu0 %v217
    %307 = vmatprep.subr.bf16.mxu0 0
    %308 = vmatpush1.bf16.msra.mxu0 %v220
    %309 = vmatprep.subr.bf16.mxu0 0
    %310 = vmatpush1.bf16.msra.mxu0 %v223
    %311 = vmatprep.subr.bf16.mxu0 0
    %312 = vmatpush1.bf16.msra.mxu0 %v226
    %313 = vmatprep.subr.bf16.mxu0 0
    %314 = vmatpush1.bf16.msra.mxu0 %v229
    %315 = vmatprep.subr.bf16.mxu0 0
    %316 = vmatpush1.bf16.msra.mxu0 %v232
    %317 = vmatprep.subr.bf16.mxu0 0
    %318 = vmatpush1.bf16.msra.mxu0 %v235
    %319 = vmatprep.subr.bf16.mxu0 0
    %320 = vmatpush1.bf16.msra.mxu0 0
    %321 = vmatprep.subr.bf16.mxu0 0
    %322 = vmatpush1.bf16.msra.mxu0 0
    %323 = vmatprep.subr.bf16.mxu0 0
    %324 = vmatpush1.bf16.msra.mxu0 0
    %325 = vmatprep.subr.bf16.mxu0 0
    %326 = vmatpush1.bf16.msra.mxu0 0
    %327 = vmatprep.subr.bf16.mxu0 0
    %328 = vmatpush1.bf16.msra.mxu0 0
    %329 = vmatprep.subr.bf16.mxu0 0
    %330 = vmatpush1.bf16.msra.mxu0 0
    %331 = vmatprep.subr.bf16.mxu0 0
    %332 = vmatpush1.bf16.msra.mxu0 0
    %333 = vmatprep.subr.bf16.mxu0 0
    %334 = vmatpush1.bf16.msra.mxu0 0
    %335 = vmatprep.mubr.bf16.mxu0 0
    %336 = vmatmul.mubr.bf16.gmra.mrb[0].mxu0 %v99
    %v337 = vpop.f32.mrb[0].mxu0
    %v338 = vadd.f32 0.0, %v337
    %v339 = vpop.f32.mrb[0].mxu0
    %v340 = vpop.f32.mrb[0].mxu0
    %v341 = vadd.f32 0.0, %v340
    %v342 = vpop.f32.mrb[0].mxu0
    %343 = vdwg.mxu0
    %v344 = vadd.f32 %v93, %v295
    %v345 = vadd.f32 %v96, %v299
    %v346 = vxor.u32 %v344, 2147483648
    %v347 = vxor.u32 %v345, 2147483648
    %v348 = vmul.f32 %v346, 1.442695
    %v349 = vpow.pop %v348
    %v350 = vmul.f32 %v347, 1.442695
    %v351 = vpow.pop %v350
    %v352 = vadd.f32 %v349, 1.0
    %v353 = vadd.f32 %v351, 1.0
    %v354 = vrcp.pop %v352
    %v355 = vmul.f32 1.0, %v354
    %v356 = vrcp.pop %v353
    %v357 = vmul.f32 1.0, %v356
    %v358 = vadd.f32 %v94, %v297
    %v359 = vadd.f32 %v97, %v301
    %v360 = vxor.u32 %v358, 2147483648
    %v361 = vxor.u32 %v359, 2147483648
    %v362 = vmul.f32 %v360, 1.442695
    %v363 = vpow.pop %v362
    %v364 = vmul.f32 %v361, 1.442695
    %v365 = vpow.pop %v364
    %v366 = vadd.f32 %v363, 1.0
    %v367 = vadd.f32 %v365, 1.0
    %v368 = vrcp.pop %v366
    %v369 = vmul.f32 1.0, %v368
    %v370 = vrcp.pop %v367
    %v371 = vmul.f32 1.0, %v370
    %v372 = vadd.f32 %v95, %v338
    %v373 = vadd.f32 %v98, %v341
    %v374 = vadd.f32 %v338, %v85
    %v375 = vadd.f32 %v341, %v85
    %v376 = vmul.f32 %v369, %v374
    %v377 = vmul.f32 %v371, %v375
    %v378 = vadd.f32 %v372, %v376
    %v379 = vadd.f32 %v373, %v377
    %v380 = vtanh.pop %v378
    %v381 = vtanh.pop %v379
    %v382 = vsub.f32 1.0, %v355
    %v383 = vsub.f32 1.0, %v357
    %v384 = vmul.f32 %v382, %v380
    %v385 = vmul.f32 %v383, %v381
    %v386 = vmul.f32 %v355, %v87
    %v387 = vmul.f32 %v357, %v88
    %v388 = vadd.f32 %v384, %v386
    %v389 = vadd.f32 %v385, %v387
    %390 = vst [vmem:[#allocation11] sm:$0xff] %v388
    %391 = vst [vmem:[#allocation11 + $0x8] sm:$0xff] %v389
    %s392 = scalar_lea.vmem [#allocation3], 24
    %v393 = vld [vmem:[%s392] sm:$0xff]
    %v394 = vld [vmem:[%s392 + $0x8] sm:$0xf]
    %v395 = vld [vmem:[%s392 + $0xc] sm:$0xff]
    %v396 = vld [vmem:[%s392 + $0x14] sm:$0xf]
    %v397 = vunpack.c.l.bf16 %v393
    %v398 = vunpack.c.h.bf16 %v393
    %v399 = vunpack.c.l.bf16 %v394
    %v400 = vunpack.c.l.bf16 %v395
    %v401 = vunpack.c.h.bf16 %v395
    %v402 = vunpack.c.l.bf16 %v396
    %v403 = vpack.c.bf16 %v389, %v388
    %v404 = vld [vmem:[#allocation8] sm:$0xff]
    %v405 = vld [vmem:[#allocation8 + $0x8] sm:$0xf]
    %v406 = vld [vmem:[#allocation8 + $0xc] sm:$0xff]
    %v407 = vld [vmem:[#allocation8 + $0x14] sm:$0xf]
    %v408 = vld [vmem:[#allocation8 + $0x18] sm:$0xff]
    %v409 = vld [vmem:[#allocation8 + $0x20] sm:$0xf]
    %v410 = vld [vmem:[#allocation8 + $0x24] sm:$0xff]
    %v411 = vld [vmem:[#allocation8 + $0x2c] sm:$0xf]
    %v412 = vld [vmem:[#allocation8 + $0x30] sm:$0xff]
    %v413 = vld [vmem:[#allocation8 + $0x38] sm:$0xf]
    %v414 = vld [vmem:[#allocation8 + $0x3c] sm:$0xff]
    %v415 = vld [vmem:[#allocation8 + $0x44] sm:$0xf]
    %v416 = vld [vmem:[#allocation8 + $0x48] sm:$0xff]
    %v417 = vld [vmem:[#allocation8 + $0x50] sm:$0xf]
    %v418 = vld [vmem:[#allocation8 + $0x54] sm:$0xff]
    %v419 = vld [vmem:[#allocation8 + $0x5c] sm:$0xf]
    %v420 = vld [vmem:[#allocation8 + $0x60] sm:$0xff]
    %v421 = vld [vmem:[#allocation8 + $0x68] sm:$0xf]
    %v422 = vld [vmem:[#allocation8 + $0x6c] sm:$0xff]
    %v423 = vld [vmem:[#allocation8 + $0x74] sm:$0xf]
    %v424 = vld [vmem:[#allocation8 + $0x78] sm:$0xff]
    %v425 = vld [vmem:[#allocation8 + $0x80] sm:$0xf]
    %v426 = vld [vmem:[#allocation8 + $0x84] sm:$0xff]
    %v427 = vld [vmem:[#allocation8 + $0x8c] sm:$0xf]
    %v428 = vld [vmem:[#allocation8 + $0x90] sm:$0xff]
    %v429 = vld [vmem:[#allocation8 + $0x98] sm:$0xf]
    %v430 = vld [vmem:[#allocation8 + $0x9c] sm:$0xff]
    %v431 = vld [vmem:[#allocation8 + $0xa4] sm:$0xf]
    %v432 = vld [vmem:[#allocation8 + $0xa8] sm:$0xff]
    %v433 = vld [vmem:[#allocation8 + $0xb0] sm:$0xf]
    %v434 = vld [vmem:[#allocation8 + $0xb4] sm:$0xff]
    %v435 = vld [vmem:[#allocation8 + $0xbc] sm:$0xf]
    %v468 = vunpack.c.l.b16 %v404
    %v469 = vunpack.c.h.b16 %v404
    %v470 = vunpack.c.l.b16 %v405
    %v471 = vunpack.c.l.b16 %v406
    %v472 = vunpack.c.h.b16 %v406
    %v473 = vunpack.c.l.b16 %v407
    %v474 = vunpack.c.l.b16 %v408
    %v475 = vunpack.c.h.b16 %v408
    %v476 = vunpack.c.l.b16 %v409
    %v477 = vunpack.c.l.b16 %v410
    %v478 = vunpack.c.h.b16 %v410
    %v479 = vunpack.c.l.b16 %v411
    %v480 = vunpack.c.l.b16 %v412
    %v481 = vunpack.c.h.b16 %v412
    %v482 = vunpack.c.l.b16 %v413
    %v483 = vunpack.c.l.b16 %v414
    %v484 = vunpack.c.h.b16 %v414
    %v485 = vunpack.c.l.b16 %v415
    %v486 = vunpack.c.l.b16 %v416
    %v487 = vunpack.c.h.b16 %v416
    %v488 = vunpack.c.l.b16 %v417
    %v489 = vunpack.c.l.b16 %v418
    %v490 = vunpack.c.h.b16 %v418
    %v491 = vunpack.c.l.b16 %v419
    %v492 = vunpack.c.l.b16 %v420
    %v493 = vunpack.c.h.b16 %v420
    %v494 = vunpack.c.l.b16 %v421
    %v495 = vunpack.c.l.b16 %v422
    %v496 = vunpack.c.h.b16 %v422
    %v497 = vunpack.c.l.b16 %v423
    %v498 = vunpack.c.l.b16 %v424
    %v499 = vunpack.c.h.b16 %v424
    %v500 = vunpack.c.l.b16 %v425
    %v501 = vunpack.c.l.b16 %v426
    %v502 = vunpack.c.h.b16 %v426
    %v503 = vunpack.c.l.b16 %v427
    %v504 = vunpack.c.l.b16 %v428
    %v505 = vunpack.c.h.b16 %v428
    %v506 = vunpack.c.l.b16 %v429
    %v507 = vunpack.c.l.b16 %v430
    %v508 = vunpack.c.h.b16 %v430
    %v509 = vunpack.c.l.b16 %v431
    %v510 = vunpack.c.l.b16 %v432
    %v511 = vunpack.c.h.b16 %v432
    %v512 = vunpack.c.l.b16 %v433
    %v513 = vunpack.c.l.b16 %v434
    %v514 = vunpack.c.h.b16 %v434
    %v515 = vunpack.c.l.b16 %v435
    %v516 = vpack.c.b16 %v471, %v468
    %v517 = vpack.c.b16 %v472, %v469
    %v518 = vpack.c.b16 %v473, %v470
    %v519 = vpack.c.b16 %v477, %v474
    %v520 = vpack.c.b16 %v478, %v475
    %v521 = vpack.c.b16 %v479, %v476
    %v522 = vpack.c.b16 %v483, %v480
    %v523 = vpack.c.b16 %v484, %v481
    %v524 = vpack.c.b16 %v485, %v482
    %v525 = vpack.c.b16 %v489, %v486
    %v526 = vpack.c.b16 %v490, %v487
    %v527 = vpack.c.b16 %v491, %v488
    %v528 = vpack.c.b16 %v495, %v492
    %v529 = vpack.c.b16 %v496, %v493
    %v530 = vpack.c.b16 %v497, %v494
    %v531 = vpack.c.b16 %v501, %v498
    %v532 = vpack.c.b16 %v502, %v499
    %v533 = vpack.c.b16 %v503, %v500
    %v534 = vpack.c.b16 %v507, %v504
    %v535 = vpack.c.b16 %v508, %v505
    %v536 = vpack.c.b16 %v509, %v506
    %v537 = vpack.c.b16 %v513, %v510
    %v538 = vpack.c.b16 %v514, %v511
    %v539 = vpack.c.b16 %v515, %v512
    %564 = vmatprep.subr.bf16.mxu0 %v517
    %565 = vmatpush1.bf16.msra.mxu0 %v516
    %566 = vmatprep.subr.bf16.mxu0 %v520
    %567 = vmatpush1.bf16.msra.mxu0 %v519
    %568 = vmatprep.subr.bf16.mxu0 %v523
    %569 = vmatpush1.bf16.msra.mxu0 %v522
    %570 = vmatprep.subr.bf16.mxu0 %v526
    %571 = vmatpush1.bf16.msra.mxu0 %v525
    %572 = vmatprep.subr.bf16.mxu0 %v529
    %573 = vmatpush1.bf16.msra.mxu0 %v528
    %574 = vmatprep.subr.bf16.mxu0 %v532
    %575 = vmatpush1.bf16.msra.mxu0 %v531
    %576 = vmatprep.subr.bf16.mxu0 %v535
    %577 = vmatpush1.bf16.msra.mxu0 %v534
    %578 = vmatprep.subr.bf16.mxu0 %v538
    %579 = vmatpush1.bf16.msra.mxu0 %v537
    %580 = vmatprep.subr.bf16.mxu0 0
    %581 = vmatpush1.bf16.msra.mxu0 0
    %582 = vmatprep.subr.bf16.mxu0 0
    %583 = vmatpush1.bf16.msra.mxu0 0
    %584 = vmatprep.subr.bf16.mxu0 0
    %585 = vmatpush1.bf16.msra.mxu0 0
    %586 = vmatprep.subr.bf16.mxu0 0
    %587 = vmatpush1.bf16.msra.mxu0 0
    %588 = vmatprep.subr.bf16.mxu0 0
    %589 = vmatpush1.bf16.msra.mxu0 0
    %590 = vmatprep.subr.bf16.mxu0 0
    %591 = vmatpush1.bf16.msra.mxu0 0
    %592 = vmatprep.subr.bf16.mxu0 0
    %593 = vmatpush1.bf16.msra.mxu0 0
    %594 = vmatprep.subr.bf16.mxu0 0
    %595 = vmatpush1.bf16.msra.mxu0 0
    %596 = vmatprep.mubr.bf16.mxu0 0
    %597 = vmatmul.mubr.bf16.gmra.mrb[0].mxu0 %v403
    %v598 = vpop.f32.mrb[0].mxu0
    %v599 = vadd.f32 0.0, %v598
    %v600 = vpop.f32.mrb[0].mxu0
    %v601 = vadd.f32 0.0, %v600
    %v602 = vpop.f32.mrb[0].mxu0
    %v603 = vadd.f32 0.0, %v602
    %v604 = vpop.f32.mrb[0].mxu0
    %v605 = vadd.f32 0.0, %v604
    %606 = vdwg.mxu0
    %607 = vmatprep.subr.bf16.mxu0 0
    %608 = vmatpush1.bf16.msra.mxu0 %v518
    %609 = vmatprep.subr.bf16.mxu0 0
    %610 = vmatpush1.bf16.msra.mxu0 %v521
    %611 = vmatprep.subr.bf16.mxu0 0
    %612 = vmatpush1.bf16.msra.mxu0 %v524
    %613 = vmatprep.subr.bf16.mxu0 0
    %614 = vmatpush1.bf16.msra.mxu0 %v527
    %615 = vmatprep.subr.bf16.mxu0 0
    %616 = vmatpush1.bf16.msra.mxu0 %v530
    %617 = vmatprep.subr.bf16.mxu0 0
    %618 = vmatpush1.bf16.msra.mxu0 %v533
    %619 = vmatprep.subr.bf16.mxu0 0
    %620 = vmatpush1.bf16.msra.mxu0 %v536
    %621 = vmatprep.subr.bf16.mxu0 0
    %622 = vmatpush1.bf16.msra.mxu0 %v539
    %623 = vmatprep.subr.bf16.mxu0 0
    %624 = vmatpush1.bf16.msra.mxu0 0
    %625 = vmatprep.subr.bf16.mxu0 0
    %626 = vmatpush1.bf16.msra.mxu0 0
    %627 = vmatprep.subr.bf16.mxu0 0
    %628 = vmatpush1.bf16.msra.mxu0 0
    %629 = vmatprep.subr.bf16.mxu0 0
    %630 = vmatpush1.bf16.msra.mxu0 0
    %631 = vmatprep.subr.bf16.mxu0 0
    %632 = vmatpush1.bf16.msra.mxu0 0
    %633 = vmatprep.subr.bf16.mxu0 0
    %634 = vmatpush1.bf16.msra.mxu0 0
    %635 = vmatprep.subr.bf16.mxu0 0
    %636 = vmatpush1.bf16.msra.mxu0 0
    %637 = vmatprep.subr.bf16.mxu0 0
    %638 = vmatpush1.bf16.msra.mxu0 0
    %639 = vmatprep.mubr.bf16.mxu0 0
    %640 = vmatmul.mubr.bf16.gmra.mrb[0].mxu0 %v403
    %v641 = vpop.f32.mrb[0].mxu0
    %v642 = vadd.f32 0.0, %v641
    %v643 = vpop.f32.mrb[0].mxu0
    %v644 = vpop.f32.mrb[0].mxu0
    %v645 = vadd.f32 0.0, %v644
    %v646 = vpop.f32.mrb[0].mxu0
    %647 = vdwg.mxu0
    %v648 = vadd.f32 %v397, %v599
    %v649 = vadd.f32 %v400, %v603
    %v650 = vxor.u32 %v648, 2147483648
    %v651 = vxor.u32 %v649, 2147483648
    %v652 = vmul.f32 %v650, 1.442695
    %v653 = vpow.pop %v652
    %v654 = vmul.f32 %v651, 1.442695
    %v655 = vpow.pop %v654
    %v656 = vadd.f32 %v653, 1.0
    %v657 = vadd.f32 %v655, 1.0
    %v658 = vrcp.pop %v656
    %v659 = vmul.f32 1.0, %v658
    %v660 = vrcp.pop %v657
    %v661 = vmul.f32 1.0, %v660
    %v662 = vadd.f32 %v398, %v601
    %v663 = vadd.f32 %v401, %v605
    %v664 = vxor.u32 %v662, 2147483648
    %v665 = vxor.u32 %v663, 2147483648
    %v666 = vmul.f32 %v664, 1.442695
    %v667 = vpow.pop %v666
    %v668 = vmul.f32 %v665, 1.442695
    %v669 = vpow.pop %v668
    %v670 = vadd.f32 %v667, 1.0
    %v671 = vadd.f32 %v669, 1.0
    %v672 = vrcp.pop %v670
    %v673 = vmul.f32 1.0, %v672
    %v674 = vrcp.pop %v671
    %v675 = vmul.f32 1.0, %v674
    %v676 = vadd.f32 %v399, %v642
    %v677 = vadd.f32 %v402, %v645
    %v678 = vadd.f32 %v642, %v85
    %v679 = vadd.f32 %v645, %v85
    %v680 = vmul.f32 %v673, %v678
    %v681 = vmul.f32 %v675, %v679
    %v682 = vadd.f32 %v676, %v680
    %v683 = vadd.f32 %v677, %v681
    %v684 = vtanh.pop %v682
    %v685 = vtanh.pop %v683
    %v686 = vsub.f32 1.0, %v659
    %v687 = vsub.f32 1.0, %v661
    %v688 = vmul.f32 %v686, %v684
    %v689 = vmul.f32 %v687, %v685
    %v690 = vmul.f32 %v659, %v388
    %v691 = vmul.f32 %v661, %v389
    %v692 = vadd.f32 %v688, %v690
    %v693 = vadd.f32 %v689, %v691
    %s694 = scalar_lea.vmem [#allocation11], 16
    %695 = vst [vmem:[%s694] sm:$0xff] %v692
    %696 = vst [vmem:[%s694 + $0x8] sm:$0xff] %v693
    %s697 = scalar_lea.vmem [#allocation3], 48
    %v698 = vld [vmem:[%s697] sm:$0xff]
    %v699 = vld [vmem:[%s697 + $0x8] sm:$0xf]
    %v700 = vld [vmem:[%s697 + $0xc] sm:$0xff]
    %v701 = vld [vmem:[%s697 + $0x14] sm:$0xf]
    %v702 = vunpack.c.l.bf16 %v698
    %v703 = vunpack.c.h.bf16 %v698
    %v704 = vunpack.c.l.bf16 %v699
    %v705 = vunpack.c.l.bf16 %v700
    %v706 = vunpack.c.h.bf16 %v700
    %v707 = vunpack.c.l.bf16 %v701
    %v708 = vpack.c.bf16 %v693, %v692
    %v709 = vld [vmem:[#allocation8] sm:$0xff]
    %v710 = vld [vmem:[#allocation8 + $0x8] sm:$0xf]
    %v711 = vld [vmem:[#allocation8 + $0xc] sm:$0xff]
    %v712 = vld [vmem:[#allocation8 + $0x14] sm:$0xf]
    %v713 = vld [vmem:[#allocation8 + $0x18] sm:$0xff]
    %v714 = vld [vmem:[#allocation8 + $0x20] sm:$0xf]
    %v715 = vld [vmem:[#allocation8 + $0x24] sm:$0xff]
    %v716 = vld [vmem:[#allocation8 + $0x2c] sm:$0xf]
    %v717 = vld [vmem:[#allocation8 + $0x30] sm:$0xff]
    %v718 = vld [vmem:[#allocation8 + $0x38] sm:$0xf]
    %v719 = vld [vmem:[#allocation8 + $0x3c] sm:$0xff]
    %v720 = vld [vmem:[#allocation8 + $0x44] sm:$0xf]
    %v721 = vld [vmem:[#allocation8 + $0x48] sm:$0xff]
    %v722 = vld [vmem:[#allocation8 + $0x50] sm:$0xf]
    %v723 = vld [vmem:[#allocation8 + $0x54] sm:$0xff]
    %v724 = vld [vmem:[#allocation8 + $0x5c] sm:$0xf]
    %v725 = vld [vmem:[#allocation8 + $0x60] sm:$0xff]
    %v726 = vld [vmem:[#allocation8 + $0x68] sm:$0xf]
    %v727 = vld [vmem:[#allocation8 + $0x6c] sm:$0xff]
    %v728 = vld [vmem:[#allocation8 + $0x74] sm:$0xf]
    %v729 = vld [vmem:[#allocation8 + $0x78] sm:$0xff]
    %v730 = vld [vmem:[#allocation8 + $0x80] sm:$0xf]
    %v731 = vld [vmem:[#allocation8 + $0x84] sm:$0xff]
    %v732 = vld [vmem:[#allocation8 + $0x8c] sm:$0xf]
    %v733 = vld [vmem:[#allocation8 + $0x90] sm:$0xff]
    %v734 = vld [vmem:[#allocation8 + $0x98] sm:$0xf]
    %v735 = vld [vmem:[#allocation8 + $0x9c] sm:$0xff]
    %v736 = vld [vmem:[#allocation8 + $0xa4] sm:$0xf]
    %v737 = vld [vmem:[#allocation8 + $0xa8] sm:$0xff]
    %v738 = vld [vmem:[#allocation8 + $0xb0] sm:$0xf]
    %v739 = vld [vmem:[#allocation8 + $0xb4] sm:$0xff]
    %v740 = vld [vmem:[#allocation8 + $0xbc] sm:$0xf]
    %v773 = vunpack.c.l.b16 %v709
    %v774 = vunpack.c.h.b16 %v709
    %v775 = vunpack.c.l.b16 %v710
    %v776 = vunpack.c.l.b16 %v711
    %v777 = vunpack.c.h.b16 %v711
    %v778 = vunpack.c.l.b16 %v712
    %v779 = vunpack.c.l.b16 %v713
    %v780 = vunpack.c.h.b16 %v713
    %v781 = vunpack.c.l.b16 %v714
    %v782 = vunpack.c.l.b16 %v715
    %v783 = vunpack.c.h.b16 %v715
    %v784 = vunpack.c.l.b16 %v716
    %v785 = vunpack.c.l.b16 %v717
    %v786 = vunpack.c.h.b16 %v717
    %v787 = vunpack.c.l.b16 %v718
    %v788 = vunpack.c.l.b16 %v719
    %v789 = vunpack.c.h.b16 %v719
    %v790 = vunpack.c.l.b16 %v720
    %v791 = vunpack.c.l.b16 %v721
    %v792 = vunpack.c.h.b16 %v721
    %v793 = vunpack.c.l.b16 %v722
    %v794 = vunpack.c.l.b16 %v723
    %v795 = vunpack.c.h.b16 %v723
    %v796 = vunpack.c.l.b16 %v724
    %v797 = vunpack.c.l.b16 %v725
    %v798 = vunpack.c.h.b16 %v725
    %v799 = vunpack.c.l.b16 %v726
    %v800 = vunpack.c.l.b16 %v727
    %v801 = vunpack.c.h.b16 %v727
    %v802 = vunpack.c.l.b16 %v728
    %v803 = vunpack.c.l.b16 %v729
    %v804 = vunpack.c.h.b16 %v729
    %v805 = vunpack.c.l.b16 %v730
    %v806 = vunpack.c.l.b16 %v731
    %v807 = vunpack.c.h.b16 %v731
    %v808 = vunpack.c.l.b16 %v732
    %v809 = vunpack.c.l.b16 %v733
    %v810 = vunpack.c.h.b16 %v733
    %v811 = vunpack.c.l.b16 %v734
    %v812 = vunpack.c.l.b16 %v735
    %v813 = vunpack.c.h.b16 %v735
    %v814 = vunpack.c.l.b16 %v736
    %v815 = vunpack.c.l.b16 %v737
    %v816 = vunpack.c.h.b16 %v737
    %v817 = vunpack.c.l.b16 %v738
    %v818 = vunpack.c.l.b16 %v739
    %v819 = vunpack.c.h.b16 %v739
    %v820 = vunpack.c.l.b16 %v740
    %v821 = vpack.c.b16 %v776, %v773
    %v822 = vpack.c.b16 %v777, %v774
    %v823 = vpack.c.b16 %v778, %v775
    %v824 = vpack.c.b16 %v782, %v779
    %v825 = vpack.c.b16 %v783, %v780
    %v826 = vpack.c.b16 %v784, %v781
    %v827 = vpack.c.b16 %v788, %v785
    %v828 = vpack.c.b16 %v789, %v786
    %v829 = vpack.c.b16 %v790, %v787
    %v830 = vpack.c.b16 %v794, %v791
    %v831 = vpack.c.b16 %v795, %v792
    %v832 = vpack.c.b16 %v796, %v793
    %v833 = vpack.c.b16 %v800, %v797
    %v834 = vpack.c.b16 %v801, %v798
    %v835 = vpack.c.b16 %v802, %v799
    %v836 = vpack.c.b16 %v806, %v803
    %v837 = vpack.c.b16 %v807, %v804
    %v838 = vpack.c.b16 %v808, %v805
    %v839 = vpack.c.b16 %v812, %v809
    %v840 = vpack.c.b16 %v813, %v810
    %v841 = vpack.c.b16 %v814, %v811
    %v842 = vpack.c.b16 %v818, %v815
    %v843 = vpack.c.b16 %v819, %v816
    %v844 = vpack.c.b16 %v820, %v817
    %869 = vmatprep.subr.bf16.mxu0 %v822
    %870 = vmatpush1.bf16.msra.mxu0 %v821
    %871 = vmatprep.subr.bf16.mxu0 %v825
    %872 = vmatpush1.bf16.msra.mxu0 %v824
    %873 = vmatprep.subr.bf16.mxu0 %v828
    %874 = vmatpush1.bf16.msra.mxu0 %v827
    %875 = vmatprep.subr.bf16.mxu0 %v831
    %876 = vmatpush1.bf16.msra.mxu0 %v830
    %877 = vmatprep.subr.bf16.mxu0 %v834
    %878 = vmatpush1.bf16.msra.mxu0 %v833
    %879 = vmatprep.subr.bf16.mxu0 %v837
    %880 = vmatpush1.bf16.msra.mxu0 %v836
    %881 = vmatprep.subr.bf16.mxu0 %v840
    %882 = vmatpush1.bf16.msra.mxu0 %v839
    %883 = vmatprep.subr.bf16.mxu0 %v843
    %884 = vmatpush1.bf16.msra.mxu0 %v842
    %885 = vmatprep.subr.bf16.mxu0 0
    %886 = vmatpush1.bf16.msra.mxu0 0
    %887 = vmatprep.subr.bf16.mxu0 0
    %888 = vmatpush1.bf16.msra.mxu0 0
    %889 = vmatprep.subr.bf16.mxu0 0
    %890 = vmatpush1.bf16.msra.mxu0 0
    %891 = vmatprep.subr.bf16.mxu0 0
    %892 = vmatpush1.bf16.msra.mxu0 0
    %893 = vmatprep.subr.bf16.mxu0 0
    %894 = vmatpush1.bf16.msra.mxu0 0
    %895 = vmatprep.subr.bf16.mxu0 0
    %896 = vmatpush1.bf16.msra.mxu0 0
    %897 = vmatprep.subr.bf16.mxu0 0
    %898 = vmatpush1.bf16.msra.mxu0 0
    %899 = vmatprep.subr.bf16.mxu0 0
    %900 = vmatpush1.bf16.msra.mxu0 0
    %901 = vmatprep.mubr.bf16.mxu0 0
    %902 = vmatmul.mubr.bf16.gmra.mrb[0].mxu0 %v708
    %v903 = vpop.f32.mrb[0].mxu0
    %v904 = vadd.f32 0.0, %v903
    %v905 = vpop.f32.mrb[0].mxu0
    %v906 = vadd.f32 0.0, %v905
    %v907 = vpop.f32.mrb[0].mxu0
    %v908 = vadd.f32 0.0, %v907
    %v909 = vpop.f32.mrb[0].mxu0
    %v910 = vadd.f32 0.0, %v909
    %911 = vdwg.mxu0
    %912 = vmatprep.subr.bf16.mxu0 0
    %913 = vmatpush1.bf16.msra.mxu0 %v823
    %914 = vmatprep.subr.bf16.mxu0 0
    %915 = vmatpush1.bf16.msra.mxu0 %v826
    %916 = vmatprep.subr.bf16.mxu0 0
    %917 = vmatpush1.bf16.msra.mxu0 %v829
    %918 = vmatprep.subr.bf16.mxu0 0
    %919 = vmatpush1.bf16.msra.mxu0 %v832
    %920 = vmatprep.subr.bf16.mxu0 0
    %921 = vmatpush1.bf16.msra.mxu0 %v835
    %922 = vmatprep.subr.bf16.mxu0 0
    %923 = vmatpush1.bf16.msra.mxu0 %v838
    %924 = vmatprep.subr.bf16.mxu0 0
    %925 = vmatpush1.bf16.msra.mxu0 %v841
    %926 = vmatprep.subr.bf16.mxu0 0
    %927 = vmatpush1.bf16.msra.mxu0 %v844
    %928 = vmatprep.subr.bf16.mxu0 0
    %929 = vmatpush1.bf16.msra.mxu0 0
    %930 = vmatprep.subr.bf16.mxu0 0
    %931 = vmatpush1.bf16.msra.mxu0 0
    %932 = vmatprep.subr.bf16.mxu0 0
    %933 = vmatpush1.bf16.msra.mxu0 0
    %934 = vmatprep.subr.bf16.mxu0 0
    %935 = vmatpush1.bf16.msra.mxu0 0
    %936 = vmatprep.subr.bf16.mxu0 0
    %937 = vmatpush1.bf16.msra.mxu0 0
    %938 = vmatprep.subr.bf16.mxu0 0
    %939 = vmatpush1.bf16.msra.mxu0 0
    %940 = vmatprep.subr.bf16.mxu0 0
    %941 = vmatpush1.bf16.msra.mxu0 0
    %942 = vmatprep.subr.bf16.mxu0 0
    %943 = vmatpush1.bf16.msra.mxu0 0
    %944 = vmatprep.mubr.bf16.mxu0 0
    %945 = vmatmul.mubr.bf16.gmra.mrb[0].mxu0 %v708
    %v946 = vpop.f32.mrb[0].mxu0
    %v947 = vadd.f32 0.0, %v946
    %v948 = vpop.f32.mrb[0].mxu0
    %v949 = vpop.f32.mrb[0].mxu0
    %v950 = vadd.f32 0.0, %v949
    %v951 = vpop.f32.mrb[0].mxu0
    %952 = vdwg.mxu0
    %v953 = vadd.f32 %v702, %v904
    %v954 = vadd.f32 %v705, %v908
    %v955 = vxor.u32 %v953, 2147483648
    %v956 = vxor.u32 %v954, 2147483648
    %v957 = vmul.f32 %v955, 1.442695
    %v958 = vpow.pop %v957
    %v959 = vmul.f32 %v956, 1.442695
    %v960 = vpow.pop %v959
    %v961 = vadd.f32 %v958, 1.0
    %v962 = vadd.f32 %v960, 1.0
    %v963 = vrcp.pop %v961
    %v964 = vmul.f32 1.0, %v963
    %v965 = vrcp.pop %v962
    %v966 = vmul.f32 1.0, %v965
    %v967 = vadd.f32 %v703, %v906
    %v968 = vadd.f32 %v706, %v910
    %v969 = vxor.u32 %v967, 2147483648
    %v970 = vxor.u32 %v968, 2147483648
    %v971 = vmul.f32 %v969, 1.442695
    %v972 = vpow.pop %v971
    %v973 = vmul.f32 %v970, 1.442695
    %v974 = vpow.pop %v973
    %v975 = vadd.f32 %v972, 1.0
    %v976 = vadd.f32 %v974, 1.0
    %v977 = vrcp.pop %v975
    %v978 = vmul.f32 1.0, %v977
    %v979 = vrcp.pop %v976
    %v980 = vmul.f32 1.0, %v979
    %v981 = vadd.f32 %v704, %v947
    %v982 = vadd.f32 %v707, %v950
    %v983 = vadd.f32 %v947, %v85
    %v984 = vadd.f32 %v950, %v85
    %v985 = vmul.f32 %v978, %v983
    %v986 = vmul.f32 %v980, %v984
    %v987 = vadd.f32 %v981, %v985
    %v988 = vadd.f32 %v982, %v986
    %v989 = vtanh.pop %v987
    %v990 = vtanh.pop %v988
    %v991 = vsub.f32 1.0, %v964
    %v992 = vsub.f32 1.0, %v966
    %v993 = vmul.f32 %v991, %v989
    %v994 = vmul.f32 %v992, %v990
    %v995 = vmul.f32 %v964, %v692
    %v996 = vmul.f32 %v966, %v693
    %v997 = vadd.f32 %v993, %v995
    %v998 = vadd.f32 %v994, %v996
    %s999 = scalar_lea.vmem [#allocation11], 32
    %1000 = vst [vmem:[%s999] sm:$0xff] %v997
    %1001 = vst [vmem:[%s999 + $0x8] sm:$0xff] %v998
    %s1002 = scalar_lea.vmem [#allocation3], 72
    %v1003 = vld [vmem:[%s1002] sm:$0xff]
    %v1004 = vld [vmem:[%s1002 + $0x8] sm:$0xf]
    %v1005 = vld [vmem:[%s1002 + $0xc] sm:$0xff]
    %v1006 = vld [vmem:[%s1002 + $0x14] sm:$0xf]
    %v1007 = vunpack.c.l.bf16 %v1003
    %v1008 = vunpack.c.h.bf16 %v1003
    %v1009 = vunpack.c.l.bf16 %v1004
    %v1010 = vunpack.c.l.bf16 %v1005
    %v1011 = vunpack.c.h.bf16 %v1005
    %v1012 = vunpack.c.l.bf16 %v1006
    %v1013 = vpack.c.bf16 %v998, %v997
    %v1014 = vld [vmem:[#allocation8] sm:$0xff]
    %v1015 = vld [vmem:[#allocation8 + $0x8] sm:$0xf]
    %v1016 = vld [vmem:[#allocation8 + $0xc] sm:$0xff]
    %v1017 = vld [vmem:[#allocation8 + $0x14] sm:$0xf]
    %v1018 = vld [vmem:[#allocation8 + $0x18] sm:$0xff]
    %v1019 = vld [vmem:[#allocation8 + $0x20] sm:$0xf]
    %v1020 = vld [vmem:[#allocation8 + $0x24] sm:$0xff]
    %v1021 = vld [vmem:[#allocation8 + $0x2c] sm:$0xf]
    %v1022 = vld [vmem:[#allocation8 + $0x30] sm:$0xff]
    %v1023 = vld [vmem:[#allocation8 + $0x38] sm:$0xf]
    %v1024 = vld [vmem:[#allocation8 + $0x3c] sm:$0xff]
    %v1025 = vld [vmem:[#allocation8 + $0x44] sm:$0xf]
    %v1026 = vld [vmem:[#allocation8 + $0x48] sm:$0xff]
    %v1027 = vld [vmem:[#allocation8 + $0x50] sm:$0xf]
    %v1028 = vld [vmem:[#allocation8 + $0x54] sm:$0xff]
    %v1029 = vld [vmem:[#allocation8 + $0x5c] sm:$0xf]
    %v1030 = vld [vmem:[#allocation8 + $0x60] sm:$0xff]
    %v1031 = vld [vmem:[#allocation8 + $0x68] sm:$0xf]
    %v1032 = vld [vmem:[#allocation8 + $0x6c] sm:$0xff]
    %v1033 = vld [vmem:[#allocation8 + $0x74] sm:$0xf]
    %v1034 = vld [vmem:[#allocation8 + $0x78] sm:$0xff]
    %v1035 = vld [vmem:[#allocation8 + $0x80] sm:$0xf]
    %v1036 = vld [vmem:[#allocation8 + $0x84] sm:$0xff]
    %v1037 = vld [vmem:[#allocation8 + $0x8c] sm:$0xf]
    %v1038 = vld [vmem:[#allocation8 + $0x90] sm:$0xff]
    %v1039 = vld [vmem:[#allocation8 + $0x98] sm:$0xf]
    %v1040 = vld [vmem:[#allocation8 + $0x9c] sm:$0xff]
    %v1041 = vld [vmem:[#allocation8 + $0xa4] sm:$0xf]
    %v1042 = vld [vmem:[#allocation8 + $0xa8] sm:$0xff]
    %v1043 = vld [vmem:[#allocation8 + $0xb0] sm:$0xf]
    %v1044 = vld [vmem:[#allocation8 + $0xb4] sm:$0xff]
    %v1045 = vld [vmem:[#allocation8 + $0xbc] sm:$0xf]
    %v1078 = vunpack.c.l.b16 %v1014
    %v1079 = vunpack.c.h.b16 %v1014
    %v1080 = vunpack.c.l.b16 %v1015
    %v1081 = vunpack.c.l.b16 %v1016
    %v1082 = vunpack.c.h.b16 %v1016
    %v1083 = vunpack.c.l.b16 %v1017
    %v1084 = vunpack.c.l.b16 %v1018
    %v1085 = vunpack.c.h.b16 %v1018
    %v1086 = vunpack.c.l.b16 %v1019
    %v1087 = vunpack.c.l.b16 %v1020
    %v1088 = vunpack.c.h.b16 %v1020
    %v1089 = vunpack.c.l.b16 %v1021
    %v1090 = vunpack.c.l.b16 %v1022
    %v1091 = vunpack.c.h.b16 %v1022
    %v1092 = vunpack.c.l.b16 %v1023
    %v1093 = vunpack.c.l.b16 %v1024
    %v1094 = vunpack.c.h.b16 %v1024
    %v1095 = vunpack.c.l.b16 %v1025
    %v1096 = vunpack.c.l.b16 %v1026
    %v1097 = vunpack.c.h.b16 %v1026
    %v1098 = vunpack.c.l.b16 %v1027
    %v1099 = vunpack.c.l.b16 %v1028
    %v1100 = vunpack.c.h.b16 %v1028
    %v1101 = vunpack.c.l.b16 %v1029
    %v1102 = vunpack.c.l.b16 %v1030
    %v1103 = vunpack.c.h.b16 %v1030
    %v1104 = vunpack.c.l.b16 %v1031
    %v1105 = vunpack.c.l.b16 %v1032
    %v1106 = vunpack.c.h.b16 %v1032
    %v1107 = vunpack.c.l.b16 %v1033
    %v1108 = vunpack.c.l.b16 %v1034
    %v1109 = vunpack.c.h.b16 %v1034
    %v1110 = vunpack.c.l.b16 %v1035
    %v1111 = vunpack.c.l.b16 %v1036
    %v1112 = vunpack.c.h.b16 %v1036
    %v1113 = vunpack.c.l.b16 %v1037
    %v1114 = vunpack.c.l.b16 %v1038
    %v1115 = vunpack.c.h.b16 %v1038
    %v1116 = vunpack.c.l.b16 %v1039
    %v1117 = vunpack.c.l.b16 %v1040
    %v1118 = vunpack.c.h.b16 %v1040
    %v1119 = vunpack.c.l.b16 %v1041
    %v1120 = vunpack.c.l.b16 %v1042
    %v1121 = vunpack.c.h.b16 %v1042
    %v1122 = vunpack.c.l.b16 %v1043
    %v1123 = vunpack.c.l.b16 %v1044
    %v1124 = vunpack.c.h.b16 %v1044
    %v1125 = vunpack.c.l.b16 %v1045
    %v1126 = vpack.c.b16 %v1081, %v1078
    %v1127 = vpack.c.b16 %v1082, %v1079
    %v1128 = vpack.c.b16 %v1083, %v1080
    %v1129 = vpack.c.b16 %v1087, %v1084
    %v1130 = vpack.c.b16 %v1088, %v1085
    %v1131 = vpack.c.b16 %v1089, %v1086
    %v1132 = vpack.c.b16 %v1093, %v1090
    %v1133 = vpack.c.b16 %v1094, %v1091
    %v1134 = vpack.c.b16 %v1095, %v1092
    %v1135 = vpack.c.b16 %v1099, %v1096
    %v1136 = vpack.c.b16 %v1100, %v1097
    %v1137 = vpack.c.b16 %v1101, %v1098
    %v1138 = vpack.c.b16 %v1105, %v1102
    %v1139 = vpack.c.b16 %v1106, %v1103
    %v1140 = vpack.c.b16 %v1107, %v1104
    %v1141 = vpack.c.b16 %v1111, %v1108
    %v1142 = vpack.c.b16 %v1112, %v1109
    %v1143 = vpack.c.b16 %v1113, %v1110
    %v1144 = vpack.c.b16 %v1117, %v1114
    %v1145 = vpack.c.b16 %v1118, %v1115
    %v1146 = vpack.c.b16 %v1119, %v1116
    %v1147 = vpack.c.b16 %v1123, %v1120
    %v1148 = vpack.c.b16 %v1124, %v1121
    %v1149 = vpack.c.b16 %v1125, %v1122
    %1174 = vmatprep.subr.bf16.mxu0 %v1127
    %1175 = vmatpush1.bf16.msra.mxu0 %v1126
    %1176 = vmatprep.subr.bf16.mxu0 %v1130
    %1177 = vmatpush1.bf16.msra.mxu0 %v1129
    %1178 = vmatprep.subr.bf16.mxu0 %v1133
    %1179 = vmatpush1.bf16.msra.mxu0 %v1132
    %1180 = vmatprep.subr.bf16.mxu0 %v1136
    %1181 = vmatpush1.bf16.msra.mxu0 %v1135
    %1182 = vmatprep.subr.bf16.mxu0 %v1139
    %1183 = vmatpush1.bf16.msra.mxu0 %v1138
    %1184 = vmatprep.subr.bf16.mxu0 %v1142
    %1185 = vmatpush1.bf16.msra.mxu0 %v1141
    %1186 = vmatprep.subr.bf16.mxu0 %v1145
    %1187 = vmatpush1.bf16.msra.mxu0 %v1144
    %1188 = vmatprep.subr.bf16.mxu0 %v1148
    %1189 = vmatpush1.bf16.msra.mxu0 %v1147
    %1190 = vmatprep.subr.bf16.mxu0 0
    %1191 = vmatpush1.bf16.msra.mxu0 0
    %1192 = vmatprep.subr.bf16.mxu0 0
    %1193 = vmatpush1.bf16.msra.mxu0 0
    %1194 = vmatprep.subr.bf16.mxu0 0
    %1195 = vmatpush1.bf16.msra.mxu0 0
    %1196 = vmatprep.subr.bf16.mxu0 0
    %1197 = vmatpush1.bf16.msra.mxu0 0
    %1198 = vmatprep.subr.bf16.mxu0 0
    %1199 = vmatpush1.bf16.msra.mxu0 0
    %1200 = vmatprep.subr.bf16.mxu0 0
    %1201 = vmatpush1.bf16.msra.mxu0 0
    %1202 = vmatprep.subr.bf16.mxu0 0
    %1203 = vmatpush1.bf16.msra.mxu0 0
    %1204 = vmatprep.subr.bf16.mxu0 0
    %1205 = vmatpush1.bf16.msra.mxu0 0
    %1206 = vmatprep.mubr.bf16.mxu0 0
    %1207 = vmatmul.mubr.bf16.gmra.mrb[0].mxu0 %v1013
    %v1208 = vpop.f32.mrb[0].mxu0
    %v1209 = vadd.f32 0.0, %v1208
    %v1210 = vpop.f32.mrb[0].mxu0
    %v1211 = vadd.f32 0.0, %v1210
    %v1212 = vpop.f32.mrb[0].mxu0
    %v1213 = vadd.f32 0.0, %v1212
    %v1214 = vpop.f32.mrb[0].mxu0
    %v1215 = vadd.f32 0.0, %v1214
    %1216 = vdwg.mxu0
    %1217 = vmatprep.subr.bf16.mxu0 0
    %1218 = vmatpush1.bf16.msra.mxu0 %v1128
    %1219 = vmatprep.subr.bf16.mxu0 0
    %1220 = vmatpush1.bf16.msra.mxu0 %v1131
    %1221 = vmatprep.subr.bf16.mxu0 0
    %1222 = vmatpush1.bf16.msra.mxu0 %v1134
    %1223 = vmatprep.subr.bf16.mxu0 0
    %1224 = vmatpush1.bf16.msra.mxu0 %v1137
    %1225 = vmatprep.subr.bf16.mxu0 0
    %1226 = vmatpush1.bf16.msra.mxu0 %v1140
    %1227 = vmatprep.subr.bf16.mxu0 0
    %1228 = vmatpush1.bf16.msra.mxu0 %v1143
    %1229 = vmatprep.subr.bf16.mxu0 0
    %1230 = vmatpush1.bf16.msra.mxu0 %v1146
    %1231 = vmatprep.subr.bf16.mxu0 0
    %1232 = vmatpush1.bf16.msra.mxu0 %v1149
    %1233 = vmatprep.subr.bf16.mxu0 0
    %1234 = vmatpush1.bf16.msra.mxu0 0
    %1235 = vmatprep.subr.bf16.mxu0 0
    %1236 = vmatpush1.bf16.msra.mxu0 0
    %1237 = vmatprep.subr.bf16.mxu0 0
    %1238 = vmatpush1.bf16.msra.mxu0 0
    %1239 = vmatprep.subr.bf16.mxu0 0
    %1240 = vmatpush1.bf16.msra.mxu0 0
    %1241 = vmatprep.subr.bf16.mxu0 0
    %1242 = vmatpush1.bf16.msra.mxu0 0
    %1243 = vmatprep.subr.bf16.mxu0 0
    %1244 = vmatpush1.bf16.msra.mxu0 0
    %1245 = vmatprep.subr.bf16.mxu0 0
    %1246 = vmatpush1.bf16.msra.mxu0 0
    %1247 = vmatprep.subr.bf16.mxu0 0
    %1248 = vmatpush1.bf16.msra.mxu0 0
    %1249 = vmatprep.mubr.bf16.mxu0 0
    %1250 = vmatmul.mubr.bf16.gmra.mrb[0].mxu0 %v1013
    %v1251 = vpop.f32.mrb[0].mxu0
    %v1252 = vadd.f32 0.0, %v1251
    %v1253 = vpop.f32.mrb[0].mxu0
    %v1254 = vpop.f32.mrb[0].mxu0
    %v1255 = vadd.f32 0.0, %v1254
    %v1256 = vpop.f32.mrb[0].mxu0
    %1257 = vdwg.mxu0
    %v1258 = vadd.f32 %v1007, %v1209
    %v1259 = vadd.f32 %v1010, %v1213
    %v1260 = vxor.u32 %v1258, 2147483648
    %v1261 = vxor.u32 %v1259, 2147483648
    %v1262 = vmul.f32 %v1260, 1.442695
    %v1263 = vpow.pop %v1262
    %v1264 = vmul.f32 %v1261, 1.442695
    %v1265 = vpow.pop %v1264
    %v1266 = vadd.f32 %v1263, 1.0
    %v1267 = vadd.f32 %v1265, 1.0
    %v1268 = vrcp.pop %v1266
    %v1269 = vmul.f32 1.0, %v1268
    %v1270 = vrcp.pop %v1267
    %v1271 = vmul.f32 1.0, %v1270
    %v1272 = vadd.f32 %v1008, %v1211
    %v1273 = vadd.f32 %v1011, %v1215
    %v1274 = vxor.u32 %v1272, 2147483648
    %v1275 = vxor.u32 %v1273, 2147483648
    %v1276 = vmul.f32 %v1274, 1.442695
    %v1277 = vpow.pop %v1276
    %v1278 = vmul.f32 %v1275, 1.442695
    %v1279 = vpow.pop %v1278
    %v1280 = vadd.f32 %v1277, 1.0
    %v1281 = vadd.f32 %v1279, 1.0
    %v1282 = vrcp.pop %v1280
    %v1283 = vmul.f32 1.0, %v1282
    %v1284 = vrcp.pop %v1281
    %v1285 = vmul.f32 1.0, %v1284
    %v1286 = vadd.f32 %v1009, %v1252
    %v1287 = vadd.f32 %v1012, %v1255
    %v1288 = vadd.f32 %v1252, %v85
    %v1289 = vadd.f32 %v1255, %v85
    %v1290 = vmul.f32 %v1283, %v1288
    %v1291 = vmul.f32 %v1285, %v1289
    %v1292 = vadd.f32 %v1286, %v1290
    %v1293 = vadd.f32 %v1287, %v1291
    %v1294 = vtanh.pop %v1292
    %v1295 = vtanh.pop %v1293
    %v1296 = vsub.f32 1.0, %v1269
    %v1297 = vsub.f32 1.0, %v1271
    %v1298 = vmul.f32 %v1296, %v1294
    %v1299 = vmul.f32 %v1297, %v1295
    %v1300 = vmul.f32 %v1269, %v997
    %v1301 = vmul.f32 %v1271, %v998
    %v1302 = vadd.f32 %v1298, %v1300
    %v1303 = vadd.f32 %v1299, %v1301
    %s1304 = scalar_lea.vmem [#allocation11], 48
    %1305 = vst [vmem:[%s1304] sm:$0xff] %v1302
    %1306 = vst [vmem:[%s1304 + $0x8] sm:$0xff] %v1303
    %s1307 = scalar_lea.vmem [#allocation3], 96
    %v1308 = vld [vmem:[%s1307] sm:$0xff]
    %v1309 = vld [vmem:[%s1307 + $0x8] sm:$0xf]
    %v1310 = vld [vmem:[%s1307 + $0xc] sm:$0xff]
    %v1311 = vld [vmem:[%s1307 + $0x14] sm:$0xf]
    %v1312 = vunpack.c.l.bf16 %v1308
    %v1313 = vunpack.c.h.bf16 %v1308
    %v1314 = vunpack.c.l.bf16 %v1309
    %v1315 = vunpack.c.l.bf16 %v1310
    %v1316 = vunpack.c.h.bf16 %v1310
    %v1317 = vunpack.c.l.bf16 %v1311
    %v1318 = vpack.c.bf16 %v1303, %v1302
    %v1319 = vld [vmem:[#allocation8] sm:$0xff]
    %v1320 = vld [vmem:[#allocation8 + $0x8] sm:$0xf]
    %v1321 = vld [vmem:[#allocation8 + $0xc] sm:$0xff]
    %v1322 = vld [vmem:[#allocation8 + $0x14] sm:$0xf]
    %v1323 = vld [vmem:[#allocation8 + $0x18] sm:$0xff]
    %v1324 = vld [vmem:[#allocation8 + $0x20] sm:$0xf]
    %v1325 = vld [vmem:[#allocation8 + $0x24] sm:$0xff]
    %v1326 = vld [vmem:[#allocation8 + $0x2c] sm:$0xf]
    %v1327 = vld [vmem:[#allocation8 + $0x30] sm:$0xff]
    %v1328 = vld [vmem:[#allocation8 + $0x38] sm:$0xf]
    %v1329 = vld [vmem:[#allocation8 + $0x3c] sm:$0xff]
    %v1330 = vld [vmem:[#allocation8 + $0x44] sm:$0xf]
    %v1331 = vld [vmem:[#allocation8 + $0x48] sm:$0xff]
    %v1332 = vld [vmem:[#allocation8 + $0x50] sm:$0xf]
    %v1333 = vld [vmem:[#allocation8 + $0x54] sm:$0xff]
    %v1334 = vld [vmem:[#allocation8 + $0x5c] sm:$0xf]
    %v1335 = vld [vmem:[#allocation8 + $0x60] sm:$0xff]
    %v1336 = vld [vmem:[#allocation8 + $0x68] sm:$0xf]
    %v1337 = vld [vmem:[#allocation8 + $0x6c] sm:$0xff]
    %v1338 = vld [vmem:[#allocation8 + $0x74] sm:$0xf]
    %v1339 = vld [vmem:[#allocation8 + $0x78] sm:$0xff]
    %v1340 = vld [vmem:[#allocation8 + $0x80] sm:$0xf]
    %v1341 = vld [vmem:[#allocation8 + $0x84] sm:$0xff]
    %v1342 = vld [vmem:[#allocation8 + $0x8c] sm:$0xf]
    %v1343 = vld [vmem:[#allocation8 + $0x90] sm:$0xff]
    %v1344 = vld [vmem:[#allocation8 + $0x98] sm:$0xf]
    %v1345 = vld [vmem:[#allocation8 + $0x9c] sm:$0xff]
    %v1346 = vld [vmem:[#allocation8 + $0xa4] sm:$0xf]
    %v1347 = vld [vmem:[#allocation8 + $0xa8] sm:$0xff]
    %v1348 = vld [vmem:[#allocation8 + $0xb0] sm:$0xf]
    %v1349 = vld [vmem:[#allocation8 + $0xb4] sm:$0xff]
    %v1350 = vld [vmem:[#allocation8 + $0xbc] sm:$0xf]
    %v1383 = vunpack.c.l.b16 %v1319
    %v1384 = vunpack.c.h.b16 %v1319
    %v1385 = vunpack.c.l.b16 %v1320
    %v1386 = vunpack.c.l.b16 %v1321
    %v1387 = vunpack.c.h.b16 %v1321
    %v1388 = vunpack.c.l.b16 %v1322
    %v1389 = vunpack.c.l.b16 %v1323
    %v1390 = vunpack.c.h.b16 %v1323
    %v1391 = vunpack.c.l.b16 %v1324
    %v1392 = vunpack.c.l.b16 %v1325
    %v1393 = vunpack.c.h.b16 %v1325
    %v1394 = vunpack.c.l.b16 %v1326
    %v1395 = vunpack.c.l.b16 %v1327
    %v1396 = vunpack.c.h.b16 %v1327
    %v1397 = vunpack.c.l.b16 %v1328
    %v1398 = vunpack.c.l.b16 %v1329
    %v1399 = vunpack.c.h.b16 %v1329
    %v1400 = vunpack.c.l.b16 %v1330
    %v1401 = vunpack.c.l.b16 %v1331
    %v1402 = vunpack.c.h.b16 %v1331
    %v1403 = vunpack.c.l.b16 %v1332
    %v1404 = vunpack.c.l.b16 %v1333
    %v1405 = vunpack.c.h.b16 %v1333
    %v1406 = vunpack.c.l.b16 %v1334
    %v1407 = vunpack.c.l.b16 %v1335
    %v1408 = vunpack.c.h.b16 %v1335
    %v1409 = vunpack.c.l.b16 %v1336
    %v1410 = vunpack.c.l.b16 %v1337
    %v1411 = vunpack.c.h.b16 %v1337
    %v1412 = vunpack.c.l.b16 %v1338
    %v1413 = vunpack.c.l.b16 %v1339
    %v1414 = vunpack.c.h.b16 %v1339
    %v1415 = vunpack.c.l.b16 %v1340
    %v1416 = vunpack.c.l.b16 %v1341
    %v1417 = vunpack.c.h.b16 %v1341
    %v1418 = vunpack.c.l.b16 %v1342
    %v1419 = vunpack.c.l.b16 %v1343
    %v1420 = vunpack.c.h.b16 %v1343
    %v1421 = vunpack.c.l.b16 %v1344
    %v1422 = vunpack.c.l.b16 %v1345
    %v1423 = vunpack.c.h.b16 %v1345
    %v1424 = vunpack.c.l.b16 %v1346
    %v1425 = vunpack.c.l.b16 %v1347
    %v1426 = vunpack.c.h.b16 %v1347
    %v1427 = vunpack.c.l.b16 %v1348
    %v1428 = vunpack.c.l.b16 %v1349
    %v1429 = vunpack.c.h.b16 %v1349
    %v1430 = vunpack.c.l.b16 %v1350
    %v1431 = vpack.c.b16 %v1386, %v1383
    %v1432 = vpack.c.b16 %v1387, %v1384
    %v1433 = vpack.c.b16 %v1388, %v1385
    %v1434 = vpack.c.b16 %v1392, %v1389
    %v1435 = vpack.c.b16 %v1393, %v1390
    %v1436 = vpack.c.b16 %v1394, %v1391
    %v1437 = vpack.c.b16 %v1398, %v1395
    %v1438 = vpack.c.b16 %v1399, %v1396
    %v1439 = vpack.c.b16 %v1400, %v1397
    %v1440 = vpack.c.b16 %v1404, %v1401
    %v1441 = vpack.c.b16 %v1405, %v1402
    %v1442 = vpack.c.b16 %v1406, %v1403
    %v1443 = vpack.c.b16 %v1410, %v1407
    %v1444 = vpack.c.b16 %v1411, %v1408
    %v1445 = vpack.c.b16 %v1412, %v1409
    %v1446 = vpack.c.b16 %v1416, %v1413
    %v1447 = vpack.c.b16 %v1417, %v1414
    %v1448 = vpack.c.b16 %v1418, %v1415
    %v1449 = vpack.c.b16 %v1422, %v1419
    %v1450 = vpack.c.b16 %v1423, %v1420
    %v1451 = vpack.c.b16 %v1424, %v1421
    %v1452 = vpack.c.b16 %v1428, %v1425
    %v1453 = vpack.c.b16 %v1429, %v1426
    %v1454 = vpack.c.b16 %v1430, %v1427
    %1479 = vmatprep.subr.bf16.mxu0 %v1432
    %1480 = vmatpush1.bf16.msra.mxu0 %v1431
    %1481 = vmatprep.subr.bf16.mxu0 %v1435
    %1482 = vmatpush1.bf16.msra.mxu0 %v1434
    %1483 = vmatprep.subr.bf16.mxu0 %v1438
    %1484 = vmatpush1.bf16.msra.mxu0 %v1437
    %1485 = vmatprep.subr.bf16.mxu0 %v1441
    %1486 = vmatpush1.bf16.msra.mxu0 %v1440
    %1487 = vmatprep.subr.bf16.mxu0 %v1444
    %1488 = vmatpush1.bf16.msra.mxu0 %v1443
    %1489 = vmatprep.subr.bf16.mxu0 %v1447
    %1490 = vmatpush1.bf16.msra.mxu0 %v1446
    %1491 = vmatprep.subr.bf16.mxu0 %v1450
    %1492 = vmatpush1.bf16.msra.mxu0 %v1449
    %1493 = vmatprep.subr.bf16.mxu0 %v1453
    %1494 = vmatpush1.bf16.msra.mxu0 %v1452
    %1495 = vmatprep.subr.bf16.mxu0 0
    %1496 = vmatpush1.bf16.msra.mxu0 0
    %1497 = vmatprep.subr.bf16.mxu0 0
    %1498 = vmatpush1.bf16.msra.mxu0 0
    %1499 = vmatprep.subr.bf16.mxu0 0
    %1500 = vmatpush1.bf16.msra.mxu0 0
    %1501 = vmatprep.subr.bf16.mxu0 0
    %1502 = vmatpush1.bf16.msra.mxu0 0
    %1503 = vmatprep.subr.bf16.mxu0 0
    %1504 = vmatpush1.bf16.msra.mxu0 0
    %1505 = vmatprep.subr.bf16.mxu0 0
    %1506 = vmatpush1.bf16.msra.mxu0 0
    %1507 = vmatprep.subr.bf16.mxu0 0
    %1508 = vmatpush1.bf16.msra.mxu0 0
    %1509 = vmatprep.subr.bf16.mxu0 0
    %1510 = vmatpush1.bf16.msra.mxu0 0
    %1511 = vmatprep.mubr.bf16.mxu0 0
    %1512 = vmatmul.mubr.bf16.gmra.mrb[0].mxu0 %v1318
    %v1513 = vpop.f32.mrb[0].mxu0
    %v1514 = vadd.f32 0.0, %v1513
    %v1515 = vpop.f32.mrb[0].mxu0
    %v1516 = vadd.f32 0.0, %v1515
    %v1517 = vpop.f32.mrb[0].mxu0
    %v1518 = vadd.f32 0.0, %v1517
    %v1519 = vpop.f32.mrb[0].mxu0
    %v1520 = vadd.f32 0.0, %v1519
    %1521 = vdwg.mxu0
    %1522 = vmatprep.subr.bf16.mxu0 0
    %1523 = vmatpush1.bf16.msra.mxu0 %v1433
    %1524 = vmatprep.subr.bf16.mxu0 0
    %1525 = vmatpush1.bf16.msra.mxu0 %v1436
    %1526 = vmatprep.subr.bf16.mxu0 0
    %1527 = vmatpush1.bf16.msra.mxu0 %v1439
    %1528 = vmatprep.subr.bf16.mxu0 0
    %1529 = vmatpush1.bf16.msra.mxu0 %v1442
    %1530 = vmatprep.subr.bf16.mxu0 0
    %1531 = vmatpush1.bf16.msra.mxu0 %v1445
    %1532 = vmatprep.subr.bf16.mxu0 0
    %1533 = vmatpush1.bf16.msra.mxu0 %v1448
    %1534 = vmatprep.subr.bf16.mxu0 0
    %1535 = vmatpush1.bf16.msra.mxu0 %v1451
    %1536 = vmatprep.subr.bf16.mxu0 0
    %1537 = vmatpush1.bf16.msra.mxu0 %v1454
    %1538 = vmatprep.subr.bf16.mxu0 0
    %1539 = vmatpush1.bf16.msra.mxu0 0
    %1540 = vmatprep.subr.bf16.mxu0 0
    %1541 = vmatpush1.bf16.msra.mxu0 0
    %1542 = vmatprep.subr.bf16.mxu0 0
    %1543 = vmatpush1.bf16.msra.mxu0 0
    %1544 = vmatprep.subr.bf16.mxu0 0
    %1545 = vmatpush1.bf16.msra.mxu0 0
    %1546 = vmatprep.subr.bf16.mxu0 0
    %1547 = vmatpush1.bf16.msra.mxu0 0
    %1548 = vmatprep.subr.bf16.mxu0 0
    %1549 = vmatpush1.bf16.msra.mxu0 0
    %1550 = vmatprep.subr.bf16.mxu0 0
    %1551 = vmatpush1.bf16.msra.mxu0 0
    %1552 = vmatprep.subr.bf16.mxu0 0
    %1553 = vmatpush1.bf16.msra.mxu0 0
    %1554 = vmatprep.mubr.bf16.mxu0 0
    %1555 = vmatmul.mubr.bf16.gmra.mrb[0].mxu0 %v1318
    %v1556 = vpop.f32.mrb[0].mxu0
    %v1557 = vadd.f32 0.0, %v1556
    %v1558 = vpop.f32.mrb[0].mxu0
    %v1559 = vpop.f32.mrb[0].mxu0
    %v1560 = vadd.f32 0.0, %v1559
    %v1561 = vpop.f32.mrb[0].mxu0
    %1562 = vdwg.mxu0
    %v1563 = vadd.f32 %v1312, %v1514
    %v1564 = vadd.f32 %v1315, %v1518
    %v1565 = vxor.u32 %v1563, 2147483648
    %v1566 = vxor.u32 %v1564, 2147483648
    %v1567 = vmul.f32 %v1565, 1.442695
    %v1568 = vpow.pop %v1567
    %v1569 = vmul.f32 %v1566, 1.442695
    %v1570 = vpow.pop %v1569
    %v1571 = vadd.f32 %v1568, 1.0
    %v1572 = vadd.f32 %v1570, 1.0
    %v1573 = vrcp.pop %v1571
    %v1574 = vmul.f32 1.0, %v1573
    %v1575 = vrcp.pop %v1572
    %v1576 = vmul.f32 1.0, %v1575
    %v1577 = vadd.f32 %v1313, %v1516
    %v1578 = vadd.f32 %v1316, %v1520
    %v1579 = vxor.u32 %v1577, 2147483648
    %v1580 = vxor.u32 %v1578, 2147483648
    %v1581 = vmul.f32 %v1579, 1.442695
    %v1582 = vpow.pop %v1581
    %v1583 = vmul.f32 %v1580, 1.442695
    %v1584 = vpow.pop %v1583
    %v1585 = vadd.f32 %v1582, 1.0
    %v1586 = vadd.f32 %v1584, 1.0
    %v1587 = vrcp.pop %v1585
    %v1588 = vmul.f32 1.0, %v1587
    %v1589 = vrcp.pop %v1586
    %v1590 = vmul.f32 1.0, %v1589
    %v1591 = vadd.f32 %v1314, %v1557
    %v1592 = vadd.f32 %v1317, %v1560
    %v1593 = vadd.f32 %v1557, %v85
    %v1594 = vadd.f32 %v1560, %v85
    %v1595 = vmul.f32 %v1588, %v1593
    %v1596 = vmul.f32 %v1590, %v1594
    %v1597 = vadd.f32 %v1591, %v1595
    %v1598 = vadd.f32 %v1592, %v1596
    %v1599 = vtanh.pop %v1597
    %v1600 = vtanh.pop %v1598
    %v1601 = vsub.f32 1.0, %v1574
    %v1602 = vsub.f32 1.0, %v1576
    %v1603 = vmul.f32 %v1601, %v1599
    %v1604 = vmul.f32 %v1602, %v1600
    %v1605 = vmul.f32 %v1574, %v1302
    %v1606 = vmul.f32 %v1576, %v1303
    %v1607 = vadd.f32 %v1603, %v1605
    %v1608 = vadd.f32 %v1604, %v1606
    %s1609 = scalar_lea.vmem [#allocation11], 64
    %1610 = vst [vmem:[%s1609] sm:$0xff] %v1607
    %1611 = vst [vmem:[%s1609 + $0x8] sm:$0xff] %v1608
    %s1612 = scalar_lea.vmem [#allocation3], 120
    %v1613 = vld [vmem:[%s1612] sm:$0xff]
    %v1614 = vld [vmem:[%s1612 + $0x8] sm:$0xf]
    %v1615 = vld [vmem:[%s1612 + $0xc] sm:$0xff]
    %v1616 = vld [vmem:[%s1612 + $0x14] sm:$0xf]
    %v1617 = vunpack.c.l.bf16 %v1613
    %v1618 = vunpack.c.h.bf16 %v1613
    %v1619 = vunpack.c.l.bf16 %v1614
    %v1620 = vunpack.c.l.bf16 %v1615
    %v1621 = vunpack.c.h.bf16 %v1615
    %v1622 = vunpack.c.l.bf16 %v1616
    %v1623 = vpack.c.bf16 %v1608, %v1607
    %v1624 = vld [vmem:[#allocation8] sm:$0xff]
    %v1625 = vld [vmem:[#allocation8 + $0x8] sm:$0xf]
    %v1626 = vld [vmem:[#allocation8 + $0xc] sm:$0xff]
    %v1627 = vld [vmem:[#allocation8 + $0x14] sm:$0xf]
    %v1628 = vld [vmem:[#allocation8 + $0x18] sm:$0xff]
    %v1629 = vld [vmem:[#allocation8 + $0x20] sm:$0xf]
    %v1630 = vld [vmem:[#allocation8 + $0x24] sm:$0xff]
    %v1631 = vld [vmem:[#allocation8 + $0x2c] sm:$0xf]
    %v1632 = vld [vmem:[#allocation8 + $0x30] sm:$0xff]
    %v1633 = vld [vmem:[#allocation8 + $0x38] sm:$0xf]
    %v1634 = vld [vmem:[#allocation8 + $0x3c] sm:$0xff]
    %v1635 = vld [vmem:[#allocation8 + $0x44] sm:$0xf]
    %v1636 = vld [vmem:[#allocation8 + $0x48] sm:$0xff]
    %v1637 = vld [vmem:[#allocation8 + $0x50] sm:$0xf]
    %v1638 = vld [vmem:[#allocation8 + $0x54] sm:$0xff]
    %v1639 = vld [vmem:[#allocation8 + $0x5c] sm:$0xf]
    %v1640 = vld [vmem:[#allocation8 + $0x60] sm:$0xff]
    %v1641 = vld [vmem:[#allocation8 + $0x68] sm:$0xf]
    %v1642 = vld [vmem:[#allocation8 + $0x6c] sm:$0xff]
    %v1643 = vld [vmem:[#allocation8 + $0x74] sm:$0xf]
    %v1644 = vld [vmem:[#allocation8 + $0x78] sm:$0xff]
    %v1645 = vld [vmem:[#allocation8 + $0x80] sm:$0xf]
    %v1646 = vld [vmem:[#allocation8 + $0x84] sm:$0xff]
    %v1647 = vld [vmem:[#allocation8 + $0x8c] sm:$0xf]
    %v1648 = vld [vmem:[#allocation8 + $0x90] sm:$0xff]
    %v1649 = vld [vmem:[#allocation8 + $0x98] sm:$0xf]
    %v1650 = vld [vmem:[#allocation8 + $0x9c] sm:$0xff]
    %v1651 = vld [vmem:[#allocation8 + $0xa4] sm:$0xf]
    %v1652 = vld [vmem:[#allocation8 + $0xa8] sm:$0xff]
    %v1653 = vld [vmem:[#allocation8 + $0xb0] sm:$0xf]
    %v1654 = vld [vmem:[#allocation8 + $0xb4] sm:$0xff]
    %v1655 = vld [vmem:[#allocation8 + $0xbc] sm:$0xf]
    %v1688 = vunpack.c.l.b16 %v1624
    %v1689 = vunpack.c.h.b16 %v1624
    %v1690 = vunpack.c.l.b16 %v1625
    %v1691 = vunpack.c.l.b16 %v1626
    %v1692 = vunpack.c.h.b16 %v1626
    %v1693 = vunpack.c.l.b16 %v1627
    %v1694 = vunpack.c.l.b16 %v1628
    %v1695 = vunpack.c.h.b16 %v1628
    %v1696 = vunpack.c.l.b16 %v1629
    %v1697 = vunpack.c.l.b16 %v1630
    %v1698 = vunpack.c.h.b16 %v1630
    %v1699 = vunpack.c.l.b16 %v1631
    %v1700 = vunpack.c.l.b16 %v1632
    %v1701 = vunpack.c.h.b16 %v1632
    %v1702 = vunpack.c.l.b16 %v1633
    %v1703 = vunpack.c.l.b16 %v1634
    %v1704 = vunpack.c.h.b16 %v1634
    %v1705 = vunpack.c.l.b16 %v1635
    %v1706 = vunpack.c.l.b16 %v1636
    %v1707 = vunpack.c.h.b16 %v1636
    %v1708 = vunpack.c.l.b16 %v1637
    %v1709 = vunpack.c.l.b16 %v1638
    %v1710 = vunpack.c.h.b16 %v1638
    %v1711 = vunpack.c.l.b16 %v1639
    %v1712 = vunpack.c.l.b16 %v1640
    %v1713 = vunpack.c.h.b16 %v1640
    %v1714 = vunpack.c.l.b16 %v1641
    %v1715 = vunpack.c.l.b16 %v1642
    %v1716 = vunpack.c.h.b16 %v1642
    %v1717 = vunpack.c.l.b16 %v1643
    %v1718 = vunpack.c.l.b16 %v1644
    %v1719 = vunpack.c.h.b16 %v1644
    %v1720 = vunpack.c.l.b16 %v1645
    %v1721 = vunpack.c.l.b16 %v1646
    %v1722 = vunpack.c.h.b16 %v1646
    %v1723 = vunpack.c.l.b16 %v1647
    %v1724 = vunpack.c.l.b16 %v1648
    %v1725 = vunpack.c.h.b16 %v1648
    %v1726 = vunpack.c.l.b16 %v1649
    %v1727 = vunpack.c.l.b16 %v1650
    %v1728 = vunpack.c.h.b16 %v1650
    %v1729 = vunpack.c.l.b16 %v1651
    %v1730 = vunpack.c.l.b16 %v1652
    %v1731 = vunpack.c.h.b16 %v1652
    %v1732 = vunpack.c.l.b16 %v1653
    %v1733 = vunpack.c.l.b16 %v1654
    %v1734 = vunpack.c.h.b16 %v1654
    %v1735 = vunpack.c.l.b16 %v1655
    %v1736 = vpack.c.b16 %v1691, %v1688
    %v1737 = vpack.c.b16 %v1692, %v1689
    %v1738 = vpack.c.b16 %v1693, %v1690
    %v1739 = vpack.c.b16 %v1697, %v1694
    %v1740 = vpack.c.b16 %v1698, %v1695
    %v1741 = vpack.c.b16 %v1699, %v1696
    %v1742 = vpack.c.b16 %v1703, %v1700
    %v1743 = vpack.c.b16 %v1704, %v1701
    %v1744 = vpack.c.b16 %v1705, %v1702
    %v1745 = vpack.c.b16 %v1709, %v1706
    %v1746 = vpack.c.b16 %v1710, %v1707
    %v1747 = vpack.c.b16 %v1711, %v1708
    %v1748 = vpack.c.b16 %v1715, %v1712
    %v1749 = vpack.c.b16 %v1716, %v1713
    %v1750 = vpack.c.b16 %v1717, %v1714
    %v1751 = vpack.c.b16 %v1721, %v1718
    %v1752 = vpack.c.b16 %v1722, %v1719
    %v1753 = vpack.c.b16 %v1723, %v1720
    %v1754 = vpack.c.b16 %v1727, %v1724
    %v1755 = vpack.c.b16 %v1728, %v1725
    %v1756 = vpack.c.b16 %v1729, %v1726
    %v1757 = vpack.c.b16 %v1733, %v1730
    %v1758 = vpack.c.b16 %v1734, %v1731
    %v1759 = vpack.c.b16 %v1735, %v1732
    %1784 = vmatprep.subr.bf16.mxu0 %v1737
    %1785 = vmatpush1.bf16.msra.mxu0 %v1736
    %1786 = vmatprep.subr.bf16.mxu0 %v1740
    %1787 = vmatpush1.bf16.msra.mxu0 %v1739
    %1788 = vmatprep.subr.bf16.mxu0 %v1743
    %1789 = vmatpush1.bf16.msra.mxu0 %v1742
    %1790 = vmatprep.subr.bf16.mxu0 %v1746
    %1791 = vmatpush1.bf16.msra.mxu0 %v1745
    %1792 = vmatprep.subr.bf16.mxu0 %v1749
    %1793 = vmatpush1.bf16.msra.mxu0 %v1748
    %1794 = vmatprep.subr.bf16.mxu0 %v1752
    %1795 = vmatpush1.bf16.msra.mxu0 %v1751
    %1796 = vmatprep.subr.bf16.mxu0 %v1755
    %1797 = vmatpush1.bf16.msra.mxu0 %v1754
    %1798 = vmatprep.subr.bf16.mxu0 %v1758
    %1799 = vmatpush1.bf16.msra.mxu0 %v1757
    %1800 = vmatprep.subr.bf16.mxu0 0
    %1801 = vmatpush1.bf16.msra.mxu0 0
    %1802 = vmatprep.subr.bf16.mxu0 0
    %1803 = vmatpush1.bf16.msra.mxu0 0
    %1804 = vmatprep.subr.bf16.mxu0 0
    %1805 = vmatpush1.bf16.msra.mxu0 0
    %1806 = vmatprep.subr.bf16.mxu0 0
    %1807 = vmatpush1.bf16.msra.mxu0 0
    %1808 = vmatprep.subr.bf16.mxu0 0
    %1809 = vmatpush1.bf16.msra.mxu0 0
    %1810 = vmatprep.subr.bf16.mxu0 0
    %1811 = vmatpush1.bf16.msra.mxu0 0
    %1812 = vmatprep.subr.bf16.mxu0 0
    %1813 = vmatpush1.bf16.msra.mxu0 0
    %1814 = vmatprep.subr.bf16.mxu0 0
    %1815 = vmatpush1.bf16.msra.mxu0 0
    %1816 = vmatprep.mubr.bf16.mxu0 0
    %1817 = vmatmul.mubr.bf16.gmra.mrb[0].mxu0 %v1623
    %v1818 = vpop.f32.mrb[0].mxu0
    %v1819 = vadd.f32 0.0, %v1818
    %v1820 = vpop.f32.mrb[0].mxu0
    %v1821 = vadd.f32 0.0, %v1820
    %v1822 = vpop.f32.mrb[0].mxu0
    %v1823 = vadd.f32 0.0, %v1822
    %v1824 = vpop.f32.mrb[0].mxu0
    %v1825 = vadd.f32 0.0, %v1824
    %1826 = vdwg.mxu0
    %1827 = vmatprep.subr.bf16.mxu0 0
    %1828 = vmatpush1.bf16.msra.mxu0 %v1738
    %1829 = vmatprep.subr.bf16.mxu0 0
    %1830 = vmatpush1.bf16.msra.mxu0 %v1741
    %1831 = vmatprep.subr.bf16.mxu0 0
    %1832 = vmatpush1.bf16.msra.mxu0 %v1744
    %1833 = vmatprep.subr.bf16.mxu0 0
    %1834 = vmatpush1.bf16.msra.mxu0 %v1747
    %1835 = vmatprep.subr.bf16.mxu0 0
    %1836 = vmatpush1.bf16.msra.mxu0 %v1750
    %1837 = vmatprep.subr.bf16.mxu0 0
    %1838 = vmatpush1.bf16.msra.mxu0 %v1753
    %1839 = vmatprep.subr.bf16.mxu0 0
    %1840 = vmatpush1.bf16.msra.mxu0 %v1756
    %1841 = vmatprep.subr.bf16.mxu0 0
    %1842 = vmatpush1.bf16.msra.mxu0 %v1759
    %1843 = vmatprep.subr.bf16.mxu0 0
    %1844 = vmatpush1.bf16.msra.mxu0 0
    %1845 = vmatprep.subr.bf16.mxu0 0
    %1846 = vmatpush1.bf16.msra.mxu0 0
    %1847 = vmatprep.subr.bf16.mxu0 0
    %1848 = vmatpush1.bf16.msra.mxu0 0
    %1849 = vmatprep.subr.bf16.mxu0 0
    %1850 = vmatpush1.bf16.msra.mxu0 0
    %1851 = vmatprep.subr.bf16.mxu0 0
    %1852 = vmatpush1.bf16.msra.mxu0 0
    %1853 = vmatprep.subr.bf16.mxu0 0
    %1854 = vmatpush1.bf16.msra.mxu0 0
    %1855 = vmatprep.subr.bf16.mxu0 0
    %1856 = vmatpush1.bf16.msra.mxu0 0
    %1857 = vmatprep.subr.bf16.mxu0 0
    %1858 = vmatpush1.bf16.msra.mxu0 0
    %1859 = vmatprep.mubr.bf16.mxu0 0
    %1860 = vmatmul.mubr.bf16.gmra.mrb[0].mxu0 %v1623
    %v1861 = vpop.f32.mrb[0].mxu0
    %v1862 = vadd.f32 0.0, %v1861
    %v1863 = vpop.f32.mrb[0].mxu0
    %v1864 = vpop.f32.mrb[0].mxu0
    %v1865 = vadd.f32 0.0, %v1864
    %v1866 = vpop.f32.mrb[0].mxu0
    %1867 = vdwg.mxu0
    %v1868 = vadd.f32 %v1617, %v1819
    %v1869 = vadd.f32 %v1620, %v1823
    %v1870 = vxor.u32 %v1868, 2147483648
    %v1871 = vxor.u32 %v1869, 2147483648
    %v1872 = vmul.f32 %v1870, 1.442695
    %v1873 = vpow.pop %v1872
    %v1874 = vmul.f32 %v1871, 1.442695
    %v1875 = vpow.pop %v1874
    %v1876 = vadd.f32 %v1873, 1.0
    %v1877 = vadd.f32 %v1875, 1.0
    %v1878 = vrcp.pop %v1876
    %v1879 = vmul.f32 1.0, %v1878
    %v1880 = vrcp.pop %v1877
    %v1881 = vmul.f32 1.0, %v1880
    %v1882 = vadd.f32 %v1618, %v1821
    %v1883 = vadd.f32 %v1621, %v1825
    %v1884 = vxor.u32 %v1882, 2147483648
    %v1885 = vxor.u32 %v1883, 2147483648
    %v1886 = vmul.f32 %v1884, 1.442695
    %v1887 = vpow.pop %v1886
    %v1888 = vmul.f32 %v1885, 1.442695
    %v1889 = vpow.pop %v1888
    %v1890 = vadd.f32 %v1887, 1.0
    %v1891 = vadd.f32 %v1889, 1.0
    %v1892 = vrcp.pop %v1890
    %v1893 = vmul.f32 1.0, %v1892
    %v1894 = vrcp.pop %v1891
    %v1895 = vmul.f32 1.0, %v1894
    %v1896 = vadd.f32 %v1619, %v1862
    %v1897 = vadd.f32 %v1622, %v1865
    %v1898 = vadd.f32 %v1862, %v85
    %v1899 = vadd.f32 %v1865, %v85
    %v1900 = vmul.f32 %v1893, %v1898
    %v1901 = vmul.f32 %v1895, %v1899
    %v1902 = vadd.f32 %v1896, %v1900
    %v1903 = vadd.f32 %v1897, %v1901
    %v1904 = vtanh.pop %v1902
    %v1905 = vtanh.pop %v1903
    %v1906 = vsub.f32 1.0, %v1879
    %v1907 = vsub.f32 1.0, %v1881
    %v1908 = vmul.f32 %v1906, %v1904
    %v1909 = vmul.f32 %v1907, %v1905
    %v1910 = vmul.f32 %v1879, %v1607
    %v1911 = vmul.f32 %v1881, %v1608
    %v1912 = vadd.f32 %v1908, %v1910
    %v1913 = vadd.f32 %v1909, %v1911
    %s1914 = scalar_lea.vmem [#allocation11], 80
    %1915 = vst [vmem:[%s1914] sm:$0xff] %v1912
    %1916 = vst [vmem:[%s1914 + $0x8] sm:$0xff] %v1913
    %s1917 = scalar_lea.vmem [#allocation3], 144
    %v1918 = vld [vmem:[%s1917] sm:$0xff]
    %v1919 = vld [vmem:[%s1917 + $0x8] sm:$0xf]
    %v1920 = vld [vmem:[%s1917 + $0xc] sm:$0xff]
    %v1921 = vld [vmem:[%s1917 + $0x14] sm:$0xf]
    %v1922 = vunpack.c.l.bf16 %v1918
    %v1923 = vunpack.c.h.bf16 %v1918
    %v1924 = vunpack.c.l.bf16 %v1919
    %v1925 = vunpack.c.l.bf16 %v1920
    %v1926 = vunpack.c.h.bf16 %v1920
    %v1927 = vunpack.c.l.bf16 %v1921
    %v1928 = vpack.c.bf16 %v1913, %v1912
    %v1929 = vld [vmem:[#allocation8] sm:$0xff]
    %v1930 = vld [vmem:[#allocation8 + $0x8] sm:$0xf]
    %v1931 = vld [vmem:[#allocation8 + $0xc] sm:$0xff]
    %v1932 = vld [vmem:[#allocation8 + $0x14] sm:$0xf]
    %v1933 = vld [vmem:[#allocation8 + $0x18] sm:$0xff]
    %v1934 = vld [vmem:[#allocation8 + $0x20] sm:$0xf]
    %v1935 = vld [vmem:[#allocation8 + $0x24] sm:$0xff]
    %v1936 = vld [vmem:[#allocation8 + $0x2c] sm:$0xf]
    %v1937 = vld [vmem:[#allocation8 + $0x30] sm:$0xff]
    %v1938 = vld [vmem:[#allocation8 + $0x38] sm:$0xf]
    %v1939 = vld [vmem:[#allocation8 + $0x3c] sm:$0xff]
    %v1940 = vld [vmem:[#allocation8 + $0x44] sm:$0xf]
    %v1941 = vld [vmem:[#allocation8 + $0x48] sm:$0xff]
    %v1942 = vld [vmem:[#allocation8 + $0x50] sm:$0xf]
    %v1943 = vld [vmem:[#allocation8 + $0x54] sm:$0xff]
    %v1944 = vld [vmem:[#allocation8 + $0x5c] sm:$0xf]
    %v1945 = vld [vmem:[#allocation8 + $0x60] sm:$0xff]
    %v1946 = vld [vmem:[#allocation8 + $0x68] sm:$0xf]
    %v1947 = vld [vmem:[#allocation8 + $0x6c] sm:$0xff]
    %v1948 = vld [vmem:[#allocation8 + $0x74] sm:$0xf]
    %v1949 = vld [vmem:[#allocation8 + $0x78] sm:$0xff]
    %v1950 = vld [vmem:[#allocation8 + $0x80] sm:$0xf]
    %v1951 = vld [vmem:[#allocation8 + $0x84] sm:$0xff]
    %v1952 = vld [vmem:[#allocation8 + $0x8c] sm:$0xf]
    %v1953 = vld [vmem:[#allocation8 + $0x90] sm:$0xff]
    %v1954 = vld [vmem:[#allocation8 + $0x98] sm:$0xf]
    %v1955 = vld [vmem:[#allocation8 + $0x9c] sm:$0xff]
    %v1956 = vld [vmem:[#allocation8 + $0xa4] sm:$0xf]
    %v1957 = vld [vmem:[#allocation8 + $0xa8] sm:$0xff]
    %v1958 = vld [vmem:[#allocation8 + $0xb0] sm:$0xf]
    %v1959 = vld [vmem:[#allocation8 + $0xb4] sm:$0xff]
    %v1960 = vld [vmem:[#allocation8 + $0xbc] sm:$0xf]
    %v1993 = vunpack.c.l.b16 %v1929
    %v1994 = vunpack.c.h.b16 %v1929
    %v1995 = vunpack.c.l.b16 %v1930
    %v1996 = vunpack.c.l.b16 %v1931
    %v1997 = vunpack.c.h.b16 %v1931
    %v1998 = vunpack.c.l.b16 %v1932
    %v1999 = vunpack.c.l.b16 %v1933
    %v2000 = vunpack.c.h.b16 %v1933
    %v2001 = vunpack.c.l.b16 %v1934
    %v2002 = vunpack.c.l.b16 %v1935
    %v2003 = vunpack.c.h.b16 %v1935
    %v2004 = vunpack.c.l.b16 %v1936
    %v2005 = vunpack.c.l.b16 %v1937
    %v2006 = vunpack.c.h.b16 %v1937
    %v2007 = vunpack.c.l.b16 %v1938
    %v2008 = vunpack.c.l.b16 %v1939
    %v2009 = vunpack.c.h.b16 %v1939
    %v2010 = vunpack.c.l.b16 %v1940
    %v2011 = vunpack.c.l.b16 %v1941
    %v2012 = vunpack.c.h.b16 %v1941
    %v2013 = vunpack.c.l.b16 %v1942
    %v2014 = vunpack.c.l.b16 %v1943
    %v2015 = vunpack.c.h.b16 %v1943
    %v2016 = vunpack.c.l.b16 %v1944
    %v2017 = vunpack.c.l.b16 %v1945
    %v2018 = vunpack.c.h.b16 %v1945
    %v2019 = vunpack.c.l.b16 %v1946
    %v2020 = vunpack.c.l.b16 %v1947
    %v2021 = vunpack.c.h.b16 %v1947
    %v2022 = vunpack.c.l.b16 %v1948
    %v2023 = vunpack.c.l.b16 %v1949
    %v2024 = vunpack.c.h.b16 %v1949
    %v2025 = vunpack.c.l.b16 %v1950
    %v2026 = vunpack.c.l.b16 %v1951
    %v2027 = vunpack.c.h.b16 %v1951
    %v2028 = vunpack.c.l.b16 %v1952
    %v2029 = vunpack.c.l.b16 %v1953
    %v2030 = vunpack.c.h.b16 %v1953
    %v2031 = vunpack.c.l.b16 %v1954
    %v2032 = vunpack.c.l.b16 %v1955
    %v2033 = vunpack.c.h.b16 %v1955
    %v2034 = vunpack.c.l.b16 %v1956
    %v2035 = vunpack.c.l.b16 %v1957
    %v2036 = vunpack.c.h.b16 %v1957
    %v2037 = vunpack.c.l.b16 %v1958
    %v2038 = vunpack.c.l.b16 %v1959
    %v2039 = vunpack.c.h.b16 %v1959
    %v2040 = vunpack.c.l.b16 %v1960
    %v2041 = vpack.c.b16 %v1996, %v1993
    %v2042 = vpack.c.b16 %v1997, %v1994
    %v2043 = vpack.c.b16 %v1998, %v1995
    %v2044 = vpack.c.b16 %v2002, %v1999
    %v2045 = vpack.c.b16 %v2003, %v2000
    %v2046 = vpack.c.b16 %v2004, %v2001
    %v2047 = vpack.c.b16 %v2008, %v2005
    %v2048 = vpack.c.b16 %v2009, %v2006
    %v2049 = vpack.c.b16 %v2010, %v2007
    %v2050 = vpack.c.b16 %v2014, %v2011
    %v2051 = vpack.c.b16 %v2015, %v2012
    %v2052 = vpack.c.b16 %v2016, %v2013
    %v2053 = vpack.c.b16 %v2020, %v2017
    %v2054 = vpack.c.b16 %v2021, %v2018
    %v2055 = vpack.c.b16 %v2022, %v2019
    %v2056 = vpack.c.b16 %v2026, %v2023
    %v2057 = vpack.c.b16 %v2027, %v2024
    %v2058 = vpack.c.b16 %v2028, %v2025
    %v2059 = vpack.c.b16 %v2032, %v2029
    %v2060 = vpack.c.b16 %v2033, %v2030
    %v2061 = vpack.c.b16 %v2034, %v2031
    %v2062 = vpack.c.b16 %v2038, %v2035
    %v2063 = vpack.c.b16 %v2039, %v2036
    %v2064 = vpack.c.b16 %v2040, %v2037
    %2089 = vmatprep.subr.bf16.mxu0 %v2042
    %2090 = vmatpush1.bf16.msra.mxu0 %v2041
    %2091 = vmatprep.subr.bf16.mxu0 %v2045
    %2092 = vmatpush1.bf16.msra.mxu0 %v2044
    %2093 = vmatprep.subr.bf16.mxu0 %v2048
    %2094 = vmatpush1.bf16.msra.mxu0 %v2047
    %2095 = vmatprep.subr.bf16.mxu0 %v2051
    %2096 = vmatpush1.bf16.msra.mxu0 %v2050
    %2097 = vmatprep.subr.bf16.mxu0 %v2054
    %2098 = vmatpush1.bf16.msra.mxu0 %v2053
    %2099 = vmatprep.subr.bf16.mxu0 %v2057
    %2100 = vmatpush1.bf16.msra.mxu0 %v2056
    %2101 = vmatprep.subr.bf16.mxu0 %v2060
    %2102 = vmatpush1.bf16.msra.mxu0 %v2059
    %2103 = vmatprep.subr.bf16.mxu0 %v2063
    %2104 = vmatpush1.bf16.msra.mxu0 %v2062
    %2105 = vmatprep.subr.bf16.mxu0 0
    %2106 = vmatpush1.bf16.msra.mxu0 0
    %2107 = vmatprep.subr.bf16.mxu0 0
    %2108 = vmatpush1.bf16.msra.mxu0 0
    %2109 = vmatprep.subr.bf16.mxu0 0
    %2110 = vmatpush1.bf16.msra.mxu0 0
    %2111 = vmatprep.subr.bf16.mxu0 0
    %2112 = vmatpush1.bf16.msra.mxu0 0
    %2113 = vmatprep.subr.bf16.mxu0 0
    %2114 = vmatpush1.bf16.msra.mxu0 0
    %2115 = vmatprep.subr.bf16.mxu0 0
    %2116 = vmatpush1.bf16.msra.mxu0 0
    %2117 = vmatprep.subr.bf16.mxu0 0
    %2118 = vmatpush1.bf16.msra.mxu0 0
    %2119 = vmatprep.subr.bf16.mxu0 0
    %2120 = vmatpush1.bf16.msra.mxu0 0
    %2121 = vmatprep.mubr.bf16.mxu0 0
    %2122 = vmatmul.mubr.bf16.gmra.mrb[0].mxu0 %v1928
    %v2123 = vpop.f32.mrb[0].mxu0
    %v2124 = vadd.f32 0.0, %v2123
    %v2125 = vpop.f32.mrb[0].mxu0
    %v2126 = vadd.f32 0.0, %v2125
    %v2127 = vpop.f32.mrb[0].mxu0
    %v2128 = vadd.f32 0.0, %v2127
    %v2129 = vpop.f32.mrb[0].mxu0
    %v2130 = vadd.f32 0.0, %v2129
    %2131 = vdwg.mxu0
    %2132 = vmatprep.subr.bf16.mxu0 0
    %2133 = vmatpush1.bf16.msra.mxu0 %v2043
    %2134 = vmatprep.subr.bf16.mxu0 0
    %2135 = vmatpush1.bf16.msra.mxu0 %v2046
    %2136 = vmatprep.subr.bf16.mxu0 0
    %2137 = vmatpush1.bf16.msra.mxu0 %v2049
    %2138 = vmatprep.subr.bf16.mxu0 0
    %2139 = vmatpush1.bf16.msra.mxu0 %v2052
    %2140 = vmatprep.subr.bf16.mxu0 0
    %2141 = vmatpush1.bf16.msra.mxu0 %v2055
    %2142 = vmatprep.subr.bf16.mxu0 0
    %2143 = vmatpush1.bf16.msra.mxu0 %v2058
    %2144 = vmatprep.subr.bf16.mxu0 0
    %2145 = vmatpush1.bf16.msra.mxu0 %v2061
    %2146 = vmatprep.subr.bf16.mxu0 0
    %2147 = vmatpush1.bf16.msra.mxu0 %v2064
    %2148 = vmatprep.subr.bf16.mxu0 0
    %2149 = vmatpush1.bf16.msra.mxu0 0
    %2150 = vmatprep.subr.bf16.mxu0 0
    %2151 = vmatpush1.bf16.msra.mxu0 0
    %2152 = vmatprep.subr.bf16.mxu0 0
    %2153 = vmatpush1.bf16.msra.mxu0 0
    %2154 = vmatprep.subr.bf16.mxu0 0
    %2155 = vmatpush1.bf16.msra.mxu0 0
    %2156 = vmatprep.subr.bf16.mxu0 0
    %2157 = vmatpush1.bf16.msra.mxu0 0
    %2158 = vmatprep.subr.bf16.mxu0 0
    %2159 = vmatpush1.bf16.msra.mxu0 0
    %2160 = vmatprep.subr.bf16.mxu0 0
    %2161 = vmatpush1.bf16.msra.mxu0 0
    %2162 = vmatprep.subr.bf16.mxu0 0
    %2163 = vmatpush1.bf16.msra.mxu0 0
    %2164 = vmatprep.mubr.bf16.mxu0 0
    %2165 = vmatmul.mubr.bf16.gmra.mrb[0].mxu0 %v1928
    %v2166 = vpop.f32.mrb[0].mxu0
    %v2167 = vadd.f32 0.0, %v2166
    %v2168 = vpop.f32.mrb[0].mxu0
    %v2169 = vpop.f32.mrb[0].mxu0
    %v2170 = vadd.f32 0.0, %v2169
    %v2171 = vpop.f32.mrb[0].mxu0
    %2172 = vdwg.mxu0
    %v2173 = vadd.f32 %v1922, %v2124
    %v2174 = vadd.f32 %v1925, %v2128
    %v2175 = vxor.u32 %v2173, 2147483648
    %v2176 = vxor.u32 %v2174, 2147483648
    %v2177 = vmul.f32 %v2175, 1.442695
    %v2178 = vpow.pop %v2177
    %v2179 = vmul.f32 %v2176, 1.442695
    %v2180 = vpow.pop %v2179
    %v2181 = vadd.f32 %v2178, 1.0
    %v2182 = vadd.f32 %v2180, 1.0
    %v2183 = vrcp.pop %v2181
    %v2184 = vmul.f32 1.0, %v2183
    %v2185 = vrcp.pop %v2182
    %v2186 = vmul.f32 1.0, %v2185
    %v2187 = vadd.f32 %v1923, %v2126
    %v2188 = vadd.f32 %v1926, %v2130
    %v2189 = vxor.u32 %v2187, 2147483648
    %v2190 = vxor.u32 %v2188, 2147483648
    %v2191 = vmul.f32 %v2189, 1.442695
    %v2192 = vpow.pop %v2191
    %v2193 = vmul.f32 %v2190, 1.442695
    %v2194 = vpow.pop %v2193
    %v2195 = vadd.f32 %v2192, 1.0
    %v2196 = vadd.f32 %v2194, 1.0
    %v2197 = vrcp.pop %v2195
    %v2198 = vmul.f32 1.0, %v2197
    %v2199 = vrcp.pop %v2196
    %v2200 = vmul.f32 1.0, %v2199
    %v2201 = vadd.f32 %v1924, %v2167
    %v2202 = vadd.f32 %v1927, %v2170
    %v2203 = vadd.f32 %v2167, %v85
    %v2204 = vadd.f32 %v2170, %v85
    %v2205 = vmul.f32 %v2198, %v2203
    %v2206 = vmul.f32 %v2200, %v2204
    %v2207 = vadd.f32 %v2201, %v2205
    %v2208 = vadd.f32 %v2202, %v2206
    %v2209 = vtanh.pop %v2207
    %v2210 = vtanh.pop %v2208
    %v2211 = vsub.f32 1.0, %v2184
    %v2212 = vsub.f32 1.0, %v2186
    %v2213 = vmul.f32 %v2211, %v2209
    %v2214 = vmul.f32 %v2212, %v2210
    %v2215 = vmul.f32 %v2184, %v1912
    %v2216 = vmul.f32 %v2186, %v1913
    %v2217 = vadd.f32 %v2213, %v2215
    %v2218 = vadd.f32 %v2214, %v2216
    %s2219 = scalar_lea.vmem [#allocation11], 96
    %2220 = vst [vmem:[%s2219] sm:$0xff] %v2217
    %2221 = vst [vmem:[%s2219 + $0x8] sm:$0xff] %v2218
    %s2222 = scalar_lea.vmem [#allocation3], 168
    %v2223 = vld [vmem:[%s2222] sm:$0xff]
    %v2224 = vld [vmem:[%s2222 + $0x8] sm:$0xf]
    %v2225 = vld [vmem:[%s2222 + $0xc] sm:$0xff]
    %v2226 = vld [vmem:[%s2222 + $0x14] sm:$0xf]
    %v2227 = vunpack.c.l.bf16 %v2223
    %v2228 = vunpack.c.h.bf16 %v2223
    %v2229 = vunpack.c.l.bf16 %v2224
    %v2230 = vunpack.c.l.bf16 %v2225
    %v2231 = vunpack.c.h.bf16 %v2225
    %v2232 = vunpack.c.l.bf16 %v2226
    %v2233 = vpack.c.bf16 %v2218, %v2217
    %v2234 = vld [vmem:[#allocation8] sm:$0xff]
    %v2235 = vld [vmem:[#allocation8 + $0x8] sm:$0xf]
    %v2236 = vld [vmem:[#allocation8 + $0xc] sm:$0xff]
    %v2237 = vld [vmem:[#allocation8 + $0x14] sm:$0xf]
    %v2238 = vld [vmem:[#allocation8 + $0x18] sm:$0xff]
    %v2239 = vld [vmem:[#allocation8 + $0x20] sm:$0xf]
    %v2240 = vld [vmem:[#allocation8 + $0x24] sm:$0xff]
    %v2241 = vld [vmem:[#allocation8 + $0x2c] sm:$0xf]
    %v2242 = vld [vmem:[#allocation8 + $0x30] sm:$0xff]
    %v2243 = vld [vmem:[#allocation8 + $0x38] sm:$0xf]
    %v2244 = vld [vmem:[#allocation8 + $0x3c] sm:$0xff]
    %v2245 = vld [vmem:[#allocation8 + $0x44] sm:$0xf]
    %v2246 = vld [vmem:[#allocation8 + $0x48] sm:$0xff]
    %v2247 = vld [vmem:[#allocation8 + $0x50] sm:$0xf]
    %v2248 = vld [vmem:[#allocation8 + $0x54] sm:$0xff]
    %v2249 = vld [vmem:[#allocation8 + $0x5c] sm:$0xf]
    %v2250 = vld [vmem:[#allocation8 + $0x60] sm:$0xff]
    %v2251 = vld [vmem:[#allocation8 + $0x68] sm:$0xf]
    %v2252 = vld [vmem:[#allocation8 + $0x6c] sm:$0xff]
    %v2253 = vld [vmem:[#allocation8 + $0x74] sm:$0xf]
    %v2254 = vld [vmem:[#allocation8 + $0x78] sm:$0xff]
    %v2255 = vld [vmem:[#allocation8 + $0x80] sm:$0xf]
    %v2256 = vld [vmem:[#allocation8 + $0x84] sm:$0xff]
    %v2257 = vld [vmem:[#allocation8 + $0x8c] sm:$0xf]
    %v2258 = vld [vmem:[#allocation8 + $0x90] sm:$0xff]
    %v2259 = vld [vmem:[#allocation8 + $0x98] sm:$0xf]
    %v2260 = vld [vmem:[#allocation8 + $0x9c] sm:$0xff]
    %v2261 = vld [vmem:[#allocation8 + $0xa4] sm:$0xf]
    %v2262 = vld [vmem:[#allocation8 + $0xa8] sm:$0xff]
    %v2263 = vld [vmem:[#allocation8 + $0xb0] sm:$0xf]
    %v2264 = vld [vmem:[#allocation8 + $0xb4] sm:$0xff]
    %v2265 = vld [vmem:[#allocation8 + $0xbc] sm:$0xf]
    %v2298 = vunpack.c.l.b16 %v2234
    %v2299 = vunpack.c.h.b16 %v2234
    %v2300 = vunpack.c.l.b16 %v2235
    %v2301 = vunpack.c.l.b16 %v2236
    %v2302 = vunpack.c.h.b16 %v2236
    %v2303 = vunpack.c.l.b16 %v2237
    %v2304 = vunpack.c.l.b16 %v2238
    %v2305 = vunpack.c.h.b16 %v2238
    %v2306 = vunpack.c.l.b16 %v2239
    %v2307 = vunpack.c.l.b16 %v2240
    %v2308 = vunpack.c.h.b16 %v2240
    %v2309 = vunpack.c.l.b16 %v2241
    %v2310 = vunpack.c.l.b16 %v2242
    %v2311 = vunpack.c.h.b16 %v2242
    %v2312 = vunpack.c.l.b16 %v2243
    %v2313 = vunpack.c.l.b16 %v2244
    %v2314 = vunpack.c.h.b16 %v2244
    %v2315 = vunpack.c.l.b16 %v2245
    %v2316 = vunpack.c.l.b16 %v2246
    %v2317 = vunpack.c.h.b16 %v2246
    %v2318 = vunpack.c.l.b16 %v2247
    %v2319 = vunpack.c.l.b16 %v2248
    %v2320 = vunpack.c.h.b16 %v2248
    %v2321 = vunpack.c.l.b16 %v2249
    %v2322 = vunpack.c.l.b16 %v2250
    %v2323 = vunpack.c.h.b16 %v2250
    %v2324 = vunpack.c.l.b16 %v2251
    %v2325 = vunpack.c.l.b16 %v2252
    %v2326 = vunpack.c.h.b16 %v2252
    %v2327 = vunpack.c.l.b16 %v2253
    %v2328 = vunpack.c.l.b16 %v2254
    %v2329 = vunpack.c.h.b16 %v2254
    %v2330 = vunpack.c.l.b16 %v2255
    %v2331 = vunpack.c.l.b16 %v2256
    %v2332 = vunpack.c.h.b16 %v2256
    %v2333 = vunpack.c.l.b16 %v2257
    %v2334 = vunpack.c.l.b16 %v2258
    %v2335 = vunpack.c.h.b16 %v2258
    %v2336 = vunpack.c.l.b16 %v2259
    %v2337 = vunpack.c.l.b16 %v2260
    %v2338 = vunpack.c.h.b16 %v2260
    %v2339 = vunpack.c.l.b16 %v2261
    %v2340 = vunpack.c.l.b16 %v2262
    %v2341 = vunpack.c.h.b16 %v2262
    %v2342 = vunpack.c.l.b16 %v2263
    %v2343 = vunpack.c.l.b16 %v2264
    %v2344 = vunpack.c.h.b16 %v2264
    %v2345 = vunpack.c.l.b16 %v2265
    %v2346 = vpack.c.b16 %v2301, %v2298
    %v2347 = vpack.c.b16 %v2302, %v2299
    %v2348 = vpack.c.b16 %v2303, %v2300
    %v2349 = vpack.c.b16 %v2307, %v2304
    %v2350 = vpack.c.b16 %v2308, %v2305
    %v2351 = vpack.c.b16 %v2309, %v2306
    %v2352 = vpack.c.b16 %v2313, %v2310
    %v2353 = vpack.c.b16 %v2314, %v2311
    %v2354 = vpack.c.b16 %v2315, %v2312
    %v2355 = vpack.c.b16 %v2319, %v2316
    %v2356 = vpack.c.b16 %v2320, %v2317
    %v2357 = vpack.c.b16 %v2321, %v2318
    %v2358 = vpack.c.b16 %v2325, %v2322
    %v2359 = vpack.c.b16 %v2326, %v2323
    %v2360 = vpack.c.b16 %v2327, %v2324
    %v2361 = vpack.c.b16 %v2331, %v2328
    %v2362 = vpack.c.b16 %v2332, %v2329
    %v2363 = vpack.c.b16 %v2333, %v2330
    %v2364 = vpack.c.b16 %v2337, %v2334
    %v2365 = vpack.c.b16 %v2338, %v2335
    %v2366 = vpack.c.b16 %v2339, %v2336
    %v2367 = vpack.c.b16 %v2343, %v2340
    %v2368 = vpack.c.b16 %v2344, %v2341
    %v2369 = vpack.c.b16 %v2345, %v2342
    %2394 = vmatprep.subr.bf16.mxu0 %v2347
    %2395 = vmatpush1.bf16.msra.mxu0 %v2346
    %2396 = vmatprep.subr.bf16.mxu0 %v2350
    %2397 = vmatpush1.bf16.msra.mxu0 %v2349
    %2398 = vmatprep.subr.bf16.mxu0 %v2353
    %2399 = vmatpush1.bf16.msra.mxu0 %v2352
    %2400 = vmatprep.subr.bf16.mxu0 %v2356
    %2401 = vmatpush1.bf16.msra.mxu0 %v2355
    %2402 = vmatprep.subr.bf16.mxu0 %v2359
    %2403 = vmatpush1.bf16.msra.mxu0 %v2358
    %2404 = vmatprep.subr.bf16.mxu0 %v2362
    %2405 = vmatpush1.bf16.msra.mxu0 %v2361
    %2406 = vmatprep.subr.bf16.mxu0 %v2365
    %2407 = vmatpush1.bf16.msra.mxu0 %v2364
    %2408 = vmatprep.subr.bf16.mxu0 %v2368
    %2409 = vmatpush1.bf16.msra.mxu0 %v2367
    %2410 = vmatprep.subr.bf16.mxu0 0
    %2411 = vmatpush1.bf16.msra.mxu0 0
    %2412 = vmatprep.subr.bf16.mxu0 0
    %2413 = vmatpush1.bf16.msra.mxu0 0
    %2414 = vmatprep.subr.bf16.mxu0 0
    %2415 = vmatpush1.bf16.msra.mxu0 0
    %2416 = vmatprep.subr.bf16.mxu0 0
    %2417 = vmatpush1.bf16.msra.mxu0 0
    %2418 = vmatprep.subr.bf16.mxu0 0
    %2419 = vmatpush1.bf16.msra.mxu0 0
    %2420 = vmatprep.subr.bf16.mxu0 0
    %2421 = vmatpush1.bf16.msra.mxu0 0
    %2422 = vmatprep.subr.bf16.mxu0 0
    %2423 = vmatpush1.bf16.msra.mxu0 0
    %2424 = vmatprep.subr.bf16.mxu0 0
    %2425 = vmatpush1.bf16.msra.mxu0 0
    %2426 = vmatprep.mubr.bf16.mxu0 0
    %2427 = vmatmul.mubr.bf16.gmra.mrb[0].mxu0 %v2233
    %v2428 = vpop.f32.mrb[0].mxu0
    %v2429 = vadd.f32 0.0, %v2428
    %v2430 = vpop.f32.mrb[0].mxu0
    %v2431 = vadd.f32 0.0, %v2430
    %v2432 = vpop.f32.mrb[0].mxu0
    %v2433 = vadd.f32 0.0, %v2432
    %v2434 = vpop.f32.mrb[0].mxu0
    %v2435 = vadd.f32 0.0, %v2434
    %2436 = vdwg.mxu0
    %2437 = vmatprep.subr.bf16.mxu0 0
    %2438 = vmatpush1.bf16.msra.mxu0 %v2348
    %2439 = vmatprep.subr.bf16.mxu0 0
    %2440 = vmatpush1.bf16.msra.mxu0 %v2351
    %2441 = vmatprep.subr.bf16.mxu0 0
    %2442 = vmatpush1.bf16.msra.mxu0 %v2354
    %2443 = vmatprep.subr.bf16.mxu0 0
    %2444 = vmatpush1.bf16.msra.mxu0 %v2357
    %2445 = vmatprep.subr.bf16.mxu0 0
    %2446 = vmatpush1.bf16.msra.mxu0 %v2360
    %2447 = vmatprep.subr.bf16.mxu0 0
    %2448 = vmatpush1.bf16.msra.mxu0 %v2363
    %2449 = vmatprep.subr.bf16.mxu0 0
    %2450 = vmatpush1.bf16.msra.mxu0 %v2366
    %2451 = vmatprep.subr.bf16.mxu0 0
    %2452 = vmatpush1.bf16.msra.mxu0 %v2369
    %2453 = vmatprep.subr.bf16.mxu0 0
    %2454 = vmatpush1.bf16.msra.mxu0 0
    %2455 = vmatprep.subr.bf16.mxu0 0
    %2456 = vmatpush1.bf16.msra.mxu0 0
    %2457 = vmatprep.subr.bf16.mxu0 0
    %2458 = vmatpush1.bf16.msra.mxu0 0
    %2459 = vmatprep.subr.bf16.mxu0 0
    %2460 = vmatpush1.bf16.msra.mxu0 0
    %2461 = vmatprep.subr.bf16.mxu0 0
    %2462 = vmatpush1.bf16.msra.mxu0 0
    %2463 = vmatprep.subr.bf16.mxu0 0
    %2464 = vmatpush1.bf16.msra.mxu0 0
    %2465 = vmatprep.subr.bf16.mxu0 0
    %2466 = vmatpush1.bf16.msra.mxu0 0
    %2467 = vmatprep.subr.bf16.mxu0 0
    %2468 = vmatpush1.bf16.msra.mxu0 0
    %2469 = vmatprep.mubr.bf16.mxu0 0
    %2470 = vmatmul.mubr.bf16.gmra.mrb[0].mxu0 %v2233
    %v2471 = vpop.f32.mrb[0].mxu0
    %v2472 = vadd.f32 0.0, %v2471
    %v2473 = vpop.f32.mrb[0].mxu0
    %v2474 = vpop.f32.mrb[0].mxu0
    %v2475 = vadd.f32 0.0, %v2474
    %v2476 = vpop.f32.mrb[0].mxu0
    %2477 = vdwg.mxu0
    %v2478 = vadd.f32 %v2227, %v2429
    %v2479 = vadd.f32 %v2230, %v2433
    %v2480 = vxor.u32 %v2478, 2147483648
    %v2481 = vxor.u32 %v2479, 2147483648
    %v2482 = vmul.f32 %v2480, 1.442695
    %v2483 = vpow.pop %v2482
    %v2484 = vmul.f32 %v2481, 1.442695
    %v2485 = vpow.pop %v2484
    %v2486 = vadd.f32 %v2483, 1.0
    %v2487 = vadd.f32 %v2485, 1.0
    %v2488 = vrcp.pop %v2486
    %v2489 = vmul.f32 1.0, %v2488
    %v2490 = vrcp.pop %v2487
    %v2491 = vmul.f32 1.0, %v2490
    %v2492 = vadd.f32 %v2228, %v2431
    %v2493 = vadd.f32 %v2231, %v2435
    %v2494 = vxor.u32 %v2492, 2147483648
    %v2495 = vxor.u32 %v2493, 2147483648
    %v2496 = vmul.f32 %v2494, 1.442695
    %v2497 = vpow.pop %v2496
    %v2498 = vmul.f32 %v2495, 1.442695
    %v2499 = vpow.pop %v2498
    %v2500 = vadd.f32 %v2497, 1.0
    %v2501 = vadd.f32 %v2499, 1.0
    %v2502 = vrcp.pop %v2500
    %v2503 = vmul.f32 1.0, %v2502
    %v2504 = vrcp.pop %v2501
    %v2505 = vmul.f32 1.0, %v2504
    %v2506 = vadd.f32 %v2229, %v2472
    %v2507 = vadd.f32 %v2232, %v2475
    %v2508 = vadd.f32 %v2472, %v85
    %v2509 = vadd.f32 %v2475, %v85
    %v2510 = vmul.f32 %v2503, %v2508
    %v2511 = vmul.f32 %v2505, %v2509
    %v2512 = vadd.f32 %v2506, %v2510
    %v2513 = vadd.f32 %v2507, %v2511
    %v2514 = vtanh.pop %v2512
    %v2515 = vtanh.pop %v2513
    %v2516 = vsub.f32 1.0, %v2489
    %v2517 = vsub.f32 1.0, %v2491
    %v2518 = vmul.f32 %v2516, %v2514
    %v2519 = vmul.f32 %v2517, %v2515
    %v2520 = vmul.f32 %v2489, %v2217
    %v2521 = vmul.f32 %v2491, %v2218
    %v2522 = vadd.f32 %v2518, %v2520
    %v2523 = vadd.f32 %v2519, %v2521
    %s2524 = scalar_lea.vmem [#allocation11], 112
    %2525 = vst [vmem:[%s2524] sm:$0xff] %v2522
    %2526 = vst [vmem:[%s2524 + $0x8] sm:$0xff] %v2523
    %2527 = vst [vmem:[#allocation2] sm:$0xff] %v2522
    %2528 = vst [vmem:[#allocation2 + $0x8] sm:$0xff] %v2523
    // Predicated region
    $region38: #{gru_forward.3} parent=1 // pred_check
      _
    $region39: #{gru_forward.3} parent=1 // pred_check_branch
      %2530 = sbr.rel (0) target = $region41
    $region40: #{gru_forward.3} parent=1 // pred_region
      %s2532 = ssub.s32 2048, 2048
      %2533 = vsyncadd [#allocation5], %s2532
      %s2534 = sshll.u32 [#allocation11], 4
      %s2535 = int_to_ptr.vmem [resolvable:$true] %s2534
      %2540 = dma.vmem_to_hbm [thread:$0]  %s2535, 2048, %s4, [#allocation5], 128, 128, 8
    $region41: #{gru_forward.3} parent=1 // pred_fallthru
      _
    // Predicated region
    $region42: #{gru_forward.3} parent=1 // pred_check
      _
    $region43: #{gru_forward.3} parent=1 // pred_check_branch
      %2542 = sbr.rel (0) target = $region45
    $region44: #{gru_forward.3} parent=1 // pred_region
      %2543 = dma.done [#allocation5], 2048
    $region45: #{gru_forward.3} parent=1 // pred_fallthru
      _
    %2544 = vsyncpa [#allocation4], 1
    %2545 = vsyncpa [#allocation7], 1
    %2546 = vsyncpa [#allocation10], 1
    %2547 = vsyncpa [#allocation5], 1

</llo_original>
